<compile_context>
chip_gen: v7x
topology: tpu7x:2x2x1
jax: 0.10.0
libtpu: 0.0.40
codegen_flags: <defaults>
</compile_context>

<pallas_src>
import numpy as np
import jax
import jax.numpy as jnp
from jax.experimental import pallas as pl
from jax.experimental.pallas import tpu as pltpu

IGNORE_LABEL = 255
MAX_CLASSES = 6
MAX_VIEWS = 30          # n_view
NCE_T = 0.07            # args.nce_T


# ----------------------------------------------------------------------------
# Pallas kernel: fused contrastive loss for a chunk of Bt batch elements
#   s      = (Q/T) @ K^T                                 [Bt, P, P]
#   pos_i  = (q_i . k_i) / T                             (precomputed, == diag(s))
#   loss_i = logsumexp({pos_i} U {kept s_i,:}) - pos_i   (CrossEntropy, target 0)
# ----------------------------------------------------------------------------
def _nce_kernel(q_ref, kt_ref, pos_ref, keep_ref, loss_ref):
    q = q_ref[0]                       # (Bt, P, C) bf16, already scaled by 1/T
    kt = kt_ref[0]                     # (Bt, C, P) bf16, pre-transposed (K,N) RHS
    pos = pos_ref[0]                   # (Bt, P) f32 positive logit
    keep = keep_ref[...]               # (P, P) f32, 1.0 where column is a valid negative

    # batched similarity on the MXU, f32 accumulation, no in-kernel transpose
    s = jnp.einsum("bpc,bcq->bpq", q, kt,
                   preferred_element_type=jnp.float32)          # (Bt, P, P)

    # numerically stable logsumexp over {pos} U kept negatives.  Masked
    # entries of s are still valid upper bounds for the max, so no
    # where(-1e30) pass is needed; they are zeroed *after* the exp by the
    # resident keep mask (single VPU multiply fused with the reduce).
    m = jnp.maximum(pos, jnp.max(s, axis=-1))                   # (Bt, P)
    sumexp = jnp.exp(pos - m) + jnp.sum(
        jnp.exp(s - m[..., None]) * keep[None, :, :], axis=-1)
    loss_ref[0] = m + jnp.log(sumexp) - pos                     # (Bt, P) lane-dense


def _tpu_caps():
    """Generation-aware step sizing: Bt cap, minimum chunk count, VMEM limit."""
    kind = ""
    try:
        kind = jax.devices()[0].device_kind.lower()
    except Exception:
        pass
    if "v7" in kind or "7x" in kind:
        # 2 TensorCores but only 64 MiB VMEM/TC: keep >=2 chunks on the
        # "parallel" axis and budget Bt against the smaller VMEM.
        return dict(bt_cap=32, min_chunks=2, vmem_limit=48 << 20)
    if "v5" in kind or "v6" in kind:
        # single TensorCore, 128 MiB VMEM: fewer, fatter grid steps.
        return dict(bt_cap=64, min_chunks=1, vmem_limit=96 << 20)
    # unknown part: conservative defaults that fit a 64 MiB VMEM chip
    return dict(bt_cap=32, min_chunks=1, vmem_limit=40 << 20)


def _choose_bt(B, cap):
    """Largest Bt <= cap that divides B (no padded garbage rows); if the best
    divisor is tiny, padding a little beats many small grid steps."""
    cap = max(1, min(cap, B))
    best = 1
    for bt in range(cap, 0, -1):
        if B % bt == 0:
            best = bt
            break
    if best < max(1, cap // 2):
        best = cap
    return best


def pixel_nce_loss_pallas(feats_q_, feats_k_, nce_t=NCE_T):
    """feats_q_/feats_k_: [B, max_classes, n_view, C] sampled anchors."""
    B, NC, NV, C = feats_q_.shape
    inv_t = float(1.0 / nce_t)
    NV_pad = int(-(-NV // 8) * 8)        # 30 -> 32, sublane-friendly
    P_pad = NC * NV_pad                  # 192

    caps = _tpu_caps()
    # keep intermediates (~3 x P^2 x 4B per batch elem) + double-buffered I/O
    # inside the VMEM budget
    per_bt = 3 * P_pad * P_pad * 4 + 4 * P_pad * C * 2 + 4 * P_pad * 4
    bt_cap = max(1, min(caps["bt_cap"], int(caps["vmem_limit"] * 0.6 // per_bt)))
    if caps["min_chunks"] > 1:
        bt_cap = min(bt_cap, -(-B // caps["min_chunks"]))
    Bt = _choose_bt(B, bt_cap)
    G = -(-B // Bt)                      # cdiv
    B_pad = G * Bt

    def prep(x, scale):
        x = jnp.asarray(x, jnp.float32).reshape(B, NC, NV, C)
        if scale != 1.0:
            x = x * jnp.float32(scale)   # fold 1/T into q: P/C fewer muls than on s
        x = jnp.pad(x, ((0, B_pad - B), (0, 0), (0, NV_pad - NV), (0, 0)))
        return x.astype(jnp.bfloat16).reshape(G, Bt, P_pad, C)

    q = prep(feats_q_, inv_t)
    k = prep(feats_k_, 1.0)
    # positive logit (== diag of s), tiny (G,Bt,P) f32 computed once in the wrapper
    pos = jnp.einsum("gbpc,gbpc->gbp", q, k,
                     preferred_element_type=jnp.float32)
    kt = jnp.swapaxes(k, -1, -2)         # (G, Bt, C, P_pad): MXU RHS orientation

    # resident (P,P) keep mask: valid negatives = different-class, non-padded cols
    idx = np.arange(P_pad)
    same_class = (idx[:, None] // NV_pad) == (idx[None, :] // NV_pad)
    pad_col = (idx[None, :] % NV_pad) >= NV
    keep = jnp.asarray(~(same_class | pad_col), jnp.float32)    # (P_pad, P_pad)

    out = pl.pallas_call(
        _nce_kernel,
        out_shape=jax.ShapeDtypeStruct((G, Bt, P_pad), jnp.float32),
        grid_spec=pltpu.PrefetchScalarGridSpec(
            num_scalar_prefetch=0,
            grid=(G,),
            in_specs=[
                pl.BlockSpec((1, Bt, P_pad, C), lambda g: (g, 0, 0, 0)),
                pl.BlockSpec((1, Bt, C, P_pad), lambda g: (g, 0, 0, 0)),
                pl.BlockSpec((1, Bt, P_pad), lambda g: (g, 0, 0)),
                pl.BlockSpec((P_pad, P_pad), lambda g: (0, 0)),   # constant block -> resident
            ],
            out_specs=pl.BlockSpec((1, Bt, P_pad), lambda g: (g, 0, 0)),
        ),
        compiler_params=pltpu.CompilerParams(
            dimension_semantics=("parallel",),
            vmem_limit_bytes=caps["vmem_limit"]),
    )(q, kt, pos, keep)

    # (G, Bt, P_pad) -> (B, NC, NV_pad) -> drop padded views -> (B*NC*NV,)
    out = out.reshape(B_pad, NC, NV_pad)[:B, :, :NV]
    return out.reshape(B * NC * NV)      # reduction='none' -> one loss per patch


# ----------------------------------------------------------------------------
# Host-side glue (mirrors the PyTorch module, data-dependent / random parts)
# ----------------------------------------------------------------------------
def resize_label_nearest(labels, out_hw):
    """torch F.interpolate(mode='nearest') for integer label maps."""
    B, h, w = labels.shape
    H, W = out_hw
    ri = np.floor(np.arange(H) * (h / H)).astype(np.int64)
    ci = np.floor(np.arange(W) * (w / W)).astype(np.int64)
    return labels[:, ri][:, :, ci]


def hard_anchor_sampling_np(X_q, X_k, y_hat, y, rng,
                            ignore_label=IGNORE_LABEL,
                            max_classes=MAX_CLASSES,
                            max_views=MAX_VIEWS):
    # TODO(synk): torch.unique/nonzero/randperm have no Pallas equivalent; the
    # sampling is reproduced on host with a seeded NumPy RNG.  (The resulting
    # gather could be moved on-device with jnp.take once indices are known.)
    batch_size, n_pix, feat_dim = X_q.shape
    classes, total_classes = [], 0
    for ii in range(batch_size):
        this_y = y_hat[ii]
        cls = [c for c in np.unique(this_y) if c != ignore_label]
        cls = [c for c in cls if int(np.sum(this_y == c)) > max_views]
        classes.append(cls)
        total_classes += len(cls)
    if total_classes == 0:
        return None, None

    n_view = max_views
    Xq_ = np.zeros((batch_size, max_classes, n_view, feat_dim), np.float32)
    Xk_ = np.zeros_like(Xq_)
    for ii in range(batch_size):
        this_y_hat, this_y = y_hat[ii], y[ii]
        this_classes = classes[ii]
        this_indices = []
        if len(this_classes) == 0:
            perm = rng.permutation(n_pix)
            idx = perm[: n_view * max_classes].reshape(max_classes, n_view)
            Xq_[ii] = X_q[ii, idx]
            Xk_[ii] = X_k[ii, idx]
            continue
        n = 0
        for n, cls_id in enumerate(this_classes):
            if n == max_classes:
                break
            hard = np.nonzero((this_y_hat == cls_id) & (this_y != cls_id))[0]
            easy = np.nonzero((this_y_hat == cls_id) & (this_y == cls_id))[0]
            num_hard, num_easy = len(hard), len(easy)
            if num_hard >= n_view / 2 and num_easy >= n_view / 2:
                num_hard_keep = n_view // 2
                num_easy_keep = n_view - num_hard_keep
            elif num_hard >= n_view / 2:
                num_easy_keep = num_easy
                num_hard_keep = n_view - num_easy_keep
            elif num_easy >= n_view / 2:
                num_hard_keep = num_hard
                num_easy_keep = n_view - num_hard_keep
            hard = hard[rng.permutation(num_hard)[:num_hard_keep]]
            easy = easy[rng.permutation(num_easy)[:num_easy_keep]]
            idx = np.concatenate([hard, easy], axis=0)
            Xq_[ii, n] = X_q[ii, idx]
            Xk_[ii, n] = X_k[ii, idx]
            this_indices.append(idx)
        if len(this_classes) < max_classes:
            used = np.concatenate(this_indices)
            num_remain = max_classes - len(this_classes)
            keep = np.ones(n_pix, bool)
            keep[used] = False
            left = np.arange(n_pix)[keep]
            perm = rng.permutation(len(left))
            idx = left[perm[: n_view * num_remain]].reshape(num_remain, n_view)
            Xq_[ii, n + 1:] = X_q[ii, idx]
            Xk_[ii, n + 1:] = X_k[ii, idx]
    return Xq_, Xk_


def reference_loss_np(q_scaled, k):
    """NumPy mirror of _contrastive + CrossEntropy(reduction='none').
    q_scaled already carries the 1/T factor (same as the kernel feed)."""
    B, NC, NV, C = q_scaled.shape
    P = NC * NV
    q = q_scaled.reshape(B, P, C).astype(np.float64)
    kk = k.reshape(B, P, C).astype(np.float64)
    l_pos = np.einsum("bpc,bpc->bp", q, kk).reshape(B * P, 1)
    S = np.einsum("bpc,bqc->bpq", q, kk)
    blk = np.zeros((P, P), bool)
    for i in range(NC):
        blk[i * NV:(i + 1) * NV, i * NV:(i + 1) * NV] = True
    l_neg = S[:, ~blk].reshape(B * P, P - NV)
    out = np.concatenate([l_pos, l_neg], axis=1)
    m = out.max(axis=1, keepdims=True)
    lse = m[:, 0] + np.log(np.exp(out - m).sum(axis=1))
    return lse - out[:, 0]


# ----------------------------------------------------------------------------
if __name__ == "__main__":
    B, C, H, W = 2, 32, 16, 16   # feats_q / feats_k: NCHW like PyTorch

    key = jax.random.PRNGKey(0)
    kq, kk = jax.random.split(key)
    feats_q = jax.random.normal(kq, (B, C, H, W), jnp.float32) * 0.1
    feats_k = jax.random.normal(kk, (B, C, H, W), jnp.float32) * 0.1

    rng = np.random.default_rng(0)
    labels_small = rng.integers(0, 3, size=(B, 8, 8)).astype(np.int64)
    predict_small = rng.integers(0, 3, size=(B, 8, 8)).astype(np.int64)
    labels_small[0, 0, 0] = IGNORE_LABEL  # sprinkle an ignore pixel

    # resize_label -> (B, H*W)
    labels = resize_label_nearest(labels_small, (H, W)).reshape(B, -1)
    predict = resize_label_nearest(predict_small, (H, W)).reshape(B, -1)

    # NCHW -> (B, H*W, C), feats_k is the detached key branch
    Xq = np.asarray(jnp.transpose(feats_q, (0, 2, 3, 1)).reshape(B, H * W, C))
    Xk = np.asarray(jnp.transpose(feats_k, (0, 2, 3, 1)).reshape(B, H * W, C))

    Xq_, Xk_ = hard_anchor_sampling_np(Xq, Xk, labels, predict, rng)
    if Xq_ is None:
        loss = jnp.zeros((1,), jnp.float32)
        loss = jax.block_until_ready(loss)
        print("KERNEL_OK")
    else:
        loss = pixel_nce_loss_pallas(Xq_, Xk_, NCE_T)
        loss = jax.block_until_ready(loss)

        # reference on the same bf16-quantized (and 1/T-pre-scaled) inputs the
        # kernel consumes; kernel math stays f32, only the feed is bf16
        q_quant = np.asarray(
            (jnp.asarray(Xq_, jnp.float32) * jnp.float32(1.0 / NCE_T)
             ).astype(jnp.bfloat16).astype(jnp.float32))
        k_quant = np.asarray(
            jnp.asarray(Xk_, jnp.float32).astype(jnp.bfloat16).astype(jnp.float32))
        ref = reference_loss_np(q_quant, k_quant)
        if not np.allclose(np.asarray(loss), ref, rtol=2e-3, atol=2e-3):
            raise AssertionError("Pallas NCE loss mismatch vs reference")
        print("KERNEL_OK")
</pallas_src>

<mosaic_0001>
module attributes {stable_mosaic.version = 11 : i64} {
  func.func @_nce_kernel(%arg0: i32, %arg1: memref<1x2x192x32xbf16, #tpu.memory_space<vmem>>, %arg2: memref<1x2x32x192xbf16, #tpu.memory_space<vmem>>, %arg3: memref<1x2x192xf32, #tpu.memory_space<vmem>>, %arg4: memref<192x192xf32, #tpu.memory_space<vmem>>, %arg5: memref<1x2x192xf32, #tpu.memory_space<vmem>>) attributes {dimension_semantics = [#tpu.dimension_semantics<parallel>], iteration_bounds = array<i64: 1>, scalar_prefetch = 0 : i64, scratch_operands = 0 : i64, tpu.core_type = #tpu.core_type<tc>, window_params = [{transform_indices = @transform_0, window_bounds = array<i64: 1, 2, 192, 32>}, {transform_indices = @transform_1, window_bounds = array<i64: 1, 2, 32, 192>}, {transform_indices = @transform_2, window_bounds = array<i64: 1, 2, 192>}, {pipeline_mode = #tpu.pipeline_mode<synchronous>, transform_indices = @transform_3, window_bounds = array<i64: 192, 192>}, {transform_indices = @transform_4, window_bounds = array<i64: 1, 2, 192>}]} {
    %c0 = arith.constant 0 : index
    %c0_0 = arith.constant 0 : index
    %c0_1 = arith.constant 0 : index
    %c0_2 = arith.constant 0 : index
    %0 = vector.load %arg1[%c0, %c0_0, %c0_1, %c0_2] : memref<1x2x192x32xbf16, #tpu.memory_space<vmem>>, vector<1x2x192x32xbf16>
    %1 = vector.shape_cast %0 : vector<1x2x192x32xbf16> to vector<2x192x32xbf16>
    %c0_3 = arith.constant 0 : index
    %c0_4 = arith.constant 0 : index
    %c0_5 = arith.constant 0 : index
    %c0_6 = arith.constant 0 : index
    %2 = vector.load %arg2[%c0_3, %c0_4, %c0_5, %c0_6] : memref<1x2x32x192xbf16, #tpu.memory_space<vmem>>, vector<1x2x32x192xbf16>
    %3 = vector.shape_cast %2 : vector<1x2x32x192xbf16> to vector<2x32x192xbf16>
    %c0_7 = arith.constant 0 : index
    %c0_8 = arith.constant 0 : index
    %c0_9 = arith.constant 0 : index
    %4 = vector.load %arg3[%c0_7, %c0_8, %c0_9] : memref<1x2x192xf32, #tpu.memory_space<vmem>>, vector<1x2x192xf32>
    %5 = vector.shape_cast %4 : vector<1x2x192xf32> to vector<2x192xf32>
    %c0_10 = arith.constant 0 : index
    %c0_11 = arith.constant 0 : index
    %6 = vector.load %arg4[%c0_10, %c0_11] : memref<192x192xf32, #tpu.memory_space<vmem>>, vector<192x192xf32>
    "tpu.trace_start"() <{level = 10 : i32, message = "bpc,bcq->bpq"}> : () -> ()
    %cst = arith.constant dense<0.000000e+00> : vector<2x192x192xf32>
    %7 = tpu.matmul %1, %3, %cst {dimension_numbers = #tpu.dot_dimension_numbers<[2], [1], [1], [2], [0, 0, 0, 1, 1, 2], [0], [0]>} : vector<2x192x32xbf16>, vector<2x32x192xbf16>, vector<2x192x192xf32> -> vector<2x192x192xf32>
    "tpu.trace_stop"() : () -> ()
    %cst_12 = arith.constant dense<0xFF800000> : vector<2x192xf32>
    %8 = vector.multi_reduction <maximumf>, %7, %cst_12 [2] : vector<2x192x192xf32> to vector<2x192xf32>
    %9 = arith.maximumf %5, %8 : vector<2x192xf32>
    %10 = arith.subf %5, %9 : vector<2x192xf32>
    %11 = math.exp %10 : vector<2x192xf32>
    %12 = vector.shape_cast %9 : vector<2x192xf32> to vector<2x192x1xf32>
    %13 = vector.broadcast %12 : vector<2x192x1xf32> to vector<2x192x192xf32>
    %14 = arith.subf %7, %13 : vector<2x192x192xf32>
    %15 = math.exp %14 : vector<2x192x192xf32>
    %16 = vector.shape_cast %6 : vector<192x192xf32> to vector<1x192x192xf32>
    %17 = vector.broadcast %16 : vector<1x192x192xf32> to vector<2x192x192xf32>
    %18 = arith.mulf %15, %17 : vector<2x192x192xf32>
    %cst_13 = arith.constant dense<0.000000e+00> : vector<2x192xf32>
    %19 = vector.multi_reduction <add>, %18, %cst_13 [2] : vector<2x192x192xf32> to vector<2x192xf32>
    %20 = arith.addf %11, %19 : vector<2x192xf32>
    %21 = math.log %20 : vector<2x192xf32>
    %22 = arith.addf %9, %21 : vector<2x192xf32>
    %23 = arith.subf %22, %5 : vector<2x192xf32>
    %c0_14 = arith.constant 0 : index
    %c0_15 = arith.constant 0 : index
    %c0_16 = arith.constant 0 : index
    %24 = vector.load %arg5[%c0_14, %c0_15, %c0_16] : memref<1x2x192xf32, #tpu.memory_space<vmem>>, vector<1x2x192xf32>
    %25 = vector.shape_cast %24 : vector<1x2x192xf32> to vector<2x192xf32>
    %26 = vector.shape_cast %23 : vector<2x192xf32> to vector<1x2x192xf32>
    tpu.vector_store %arg5[%c0_14, %c0_15, %c0_16], %26 {strides = array<i32>} : memref<1x2x192xf32, #tpu.memory_space<vmem>>, vector<1x2x192xf32>,
    return
  }
  func.func @transform_0(%arg0: i32) -> (i32, i32, i32, i32) {
    %c0_i32 = arith.constant 0 : i32
    %c0_i32_0 = arith.constant 0 : i32
    %c0_i32_1 = arith.constant 0 : i32
    %c0_i32_2 = arith.constant 0 : i32
    return %arg0, %c0_i32, %c0_i32_0, %c0_i32_1 : i32, i32, i32, i32
  }
  func.func @transform_1(%arg0: i32) -> (i32, i32, i32, i32) {
    %c0_i32 = arith.constant 0 : i32
    %c0_i32_0 = arith.constant 0 : i32
    %c0_i32_1 = arith.constant 0 : i32
    %c0_i32_2 = arith.constant 0 : i32
    return %arg0, %c0_i32, %c0_i32_0, %c0_i32_1 : i32, i32, i32, i32
  }
  func.func @transform_2(%arg0: i32) -> (i32, i32, i32) {
    %c0_i32 = arith.constant 0 : i32
    %c0_i32_0 = arith.constant 0 : i32
    %c0_i32_1 = arith.constant 0 : i32
    return %arg0, %c0_i32, %c0_i32_0 : i32, i32, i32
  }
  func.func @transform_3(%arg0: i32) -> (i32, i32) {
    %c0_i32 = arith.constant 0 : i32
    %c0_i32_0 = arith.constant 0 : i32
    %c0_i32_1 = arith.constant 0 : i32
    return %c0_i32, %c0_i32_0 : i32, i32
  }
  func.func @transform_4(%arg0: i32) -> (i32, i32, i32) {
    %c0_i32 = arith.constant 0 : i32
    %c0_i32_0 = arith.constant 0 : i32
    %c0_i32_1 = arith.constant 0 : i32
    return %arg0, %c0_i32, %c0_i32_0 : i32, i32, i32
  }
}

</mosaic_0001>

<llo_original>
// kernel: tpu_custom_call.1
$region0: #{tpu_custom_call.1}
  #allocation0 [shape = 'u32[]', space=smem, size = 0x4, offset = 0x4, fixed_abs, tag = 'smem constant byte address 0x4 - core index']
  #allocation1 [shape = 'u32[144,128]{1,0:T(1,128)}', space=vmem, size = 0x12000, scoped, tag = 'internal scratch']
  %s0 = inlined_call_operand.vmem [shape: bf16[1,2,192,32], index: 0, kind: input, shape index: {}]
  %s1 = inlined_call_operand.vmem [shape: bf16[1,2,32,192], index: 1, kind: input, shape index: {}]
  %s2 = inlined_call_operand.vmem [shape: f32[1,2,192], index: 2, kind: input, shape index: {}]
  %s3 = inlined_call_operand.hbm [shape: f32[192,192], index: 3, kind: input, shape index: {}]
  %s4 = inlined_call_operand.hbm [shape: f32[1,2,192], index: 4, kind: output, shape index: {}]
  %s5 = sld [smem:[#allocation0]]
  $region30: #{tpu_custom_call.1} parent=0
    _
  %s7 = ssub.s32 1, %s5
  %s8 = scalar_select 0, %s7, %s5
  $region1: #{tpu_custom_call.1} parent=0
    #allocation2 [shape = 'u8[196608]{0}', space=vmem, size = 0x30000, scoped, tag = 'input window, operand 3, single buffered']
    #allocation3 [shape = 's32[1]{0}', space=sflag, size = 0x4, scoped, tag = 'scoped memory for tpu_custom_call.1']
    #allocation4 [shape = 's32[1]{0}', space=sflag, size = 0x4, scoped, tag = 'scoped memory for tpu_custom_call.1']
    #allocation5 [shape = 'u8[2048]{0}', space=vmem, size = 0x800, scoped, tag = 'output window, operand 0, single buffered']
    %9 = vsyncpa [#allocation3], 0
    %10 = vsyncpa [#allocation4], 0
    // Predicated region
    $region2: #{tpu_custom_call.1} parent=1 // pred_check
      _
    $region3: #{tpu_custom_call.1} parent=1 // pred_check_branch
      %12 = sbr.rel (0) target = $region5
    $region4: #{tpu_custom_call.1} parent=1 // pred_region
      _
    $region5: #{tpu_custom_call.1} parent=1 // pred_fallthru
      _
    // Predicated region
    $region6: #{tpu_custom_call.1} parent=1 // pred_check
      _
    $region7: #{tpu_custom_call.1} parent=1 // pred_check_branch
      %14 = sbr.rel (0) target = $region9
    $region8: #{tpu_custom_call.1} parent=1 // pred_region
      _
    $region9: #{tpu_custom_call.1} parent=1 // pred_fallthru
      _
    // Predicated region
    $region10: #{tpu_custom_call.1} parent=1 // pred_check
      _
    $region11: #{tpu_custom_call.1} parent=1 // pred_check_branch
      %16 = sbr.rel (0) target = $region13
    $region12: #{tpu_custom_call.1} parent=1 // pred_region
      _
    $region13: #{tpu_custom_call.1} parent=1 // pred_fallthru
      _
    // Predicated region
    $region14: #{tpu_custom_call.1} parent=1 // pred_check
      _
    $region15: #{tpu_custom_call.1} parent=1 // pred_check_branch
      %18 = sbr.rel (0) target = $region17
    $region16: #{tpu_custom_call.1} parent=1 // pred_region
      %s20 = ssub.s32 6144, 6144
      %21 = vsyncadd [#allocation3], %s20
      %s22 = sshll.u32 [#allocation2], 4
      %s23 = int_to_ptr.vmem [resolvable:$true] %s22
      %28 = dma.hbm_to_vmem [thread:$0]  %s3, 6144, %s23, [#allocation3], 256, 256, 16
    $region17: #{tpu_custom_call.1} parent=1 // pred_fallthru
      _
    // Predicated region
    $region18: #{tpu_custom_call.1} parent=1 // pred_check
      _
    $region19: #{tpu_custom_call.1} parent=1 // pred_check_branch
      %30 = sbr.rel (0) target = $region21
    $region20: #{tpu_custom_call.1} parent=1 // pred_region
      %31 = dma.done [#allocation3], 6144
    $region21: #{tpu_custom_call.1} parent=1 // pred_fallthru
      _
    %v33 = vld [vmem:[%s0] sm:$0xf]
    %v34 = vld [vmem:[%s0 + $0x4] sm:$0xf]
    %v35 = vld [vmem:[%s0 + $0x8] sm:$0xf]
    %v36 = vld [vmem:[%s0 + $0xc] sm:$0xf]
    %v37 = vld [vmem:[%s0 + $0x10] sm:$0xf]
    %v38 = vld [vmem:[%s0 + $0x14] sm:$0xf]
    %v39 = vld [vmem:[%s0 + $0x18] sm:$0xf]
    %v40 = vld [vmem:[%s0 + $0x1c] sm:$0xf]
    %v41 = vld [vmem:[%s0 + $0x20] sm:$0xf]
    %v42 = vld [vmem:[%s0 + $0x24] sm:$0xf]
    %v43 = vld [vmem:[%s0 + $0x28] sm:$0xf]
    %v44 = vld [vmem:[%s0 + $0x2c] sm:$0xf]
    %v45 = vld [vmem:[%s0 + $0x30] sm:$0xf]
    %v46 = vld [vmem:[%s0 + $0x34] sm:$0xf]
    %v47 = vld [vmem:[%s0 + $0x38] sm:$0xf]
    %v48 = vld [vmem:[%s0 + $0x3c] sm:$0xf]
    %v49 = vld [vmem:[%s0 + $0x40] sm:$0xf]
    %v50 = vld [vmem:[%s0 + $0x44] sm:$0xf]
    %v51 = vld [vmem:[%s0 + $0x48] sm:$0xf]
    %v52 = vld [vmem:[%s0 + $0x4c] sm:$0xf]
    %v53 = vld [vmem:[%s0 + $0x50] sm:$0xf]
    %v54 = vld [vmem:[%s0 + $0x54] sm:$0xf]
    %v55 = vld [vmem:[%s0 + $0x58] sm:$0xf]
    %v56 = vld [vmem:[%s0 + $0x5c] sm:$0xf]
    %v57 = vld [vmem:[%s0 + $0x60] sm:$0xf]
    %v58 = vld [vmem:[%s0 + $0x64] sm:$0xf]
    %v59 = vld [vmem:[%s0 + $0x68] sm:$0xf]
    %v60 = vld [vmem:[%s0 + $0x6c] sm:$0xf]
    %v61 = vld [vmem:[%s0 + $0x70] sm:$0xf]
    %v62 = vld [vmem:[%s0 + $0x74] sm:$0xf]
    %v63 = vld [vmem:[%s0 + $0x78] sm:$0xf]
    %v64 = vld [vmem:[%s0 + $0x7c] sm:$0xf]
    %v65 = vld [vmem:[%s0 + $0x80] sm:$0xf]
    %v66 = vld [vmem:[%s0 + $0x84] sm:$0xf]
    %v67 = vld [vmem:[%s0 + $0x88] sm:$0xf]
    %v68 = vld [vmem:[%s0 + $0x8c] sm:$0xf]
    %v69 = vld [vmem:[%s0 + $0x90] sm:$0xf]
    %v70 = vld [vmem:[%s0 + $0x94] sm:$0xf]
    %v71 = vld [vmem:[%s0 + $0x98] sm:$0xf]
    %v72 = vld [vmem:[%s0 + $0x9c] sm:$0xf]
    %v73 = vld [vmem:[%s0 + $0xa0] sm:$0xf]
    %v74 = vld [vmem:[%s0 + $0xa4] sm:$0xf]
    %v75 = vld [vmem:[%s0 + $0xa8] sm:$0xf]
    %v76 = vld [vmem:[%s0 + $0xac] sm:$0xf]
    %v77 = vld [vmem:[%s0 + $0xb0] sm:$0xf]
    %v78 = vld [vmem:[%s0 + $0xb4] sm:$0xf]
    %v79 = vld [vmem:[%s0 + $0xb8] sm:$0xf]
    %v80 = vld [vmem:[%s0 + $0xbc] sm:$0xf]
    %v81 = vld [vmem:[%s1] sm:$0xff]
    %v82 = vld [vmem:[%s1 + $0x8] sm:$0xff]
    %v83 = vld [vmem:[%s1 + $0x10] sm:$0xff]
    %v84 = vld [vmem:[%s1 + $0x18] sm:$0xff]
    %v85 = vld [vmem:[%s1 + $0x20] sm:$0xff]
    %v86 = vld [vmem:[%s1 + $0x28] sm:$0xff]
    %v87 = vld [vmem:[%s1 + $0x30] sm:$0xff]
    %v88 = vld [vmem:[%s1 + $0x38] sm:$0xff]
    %v89 = vld [vmem:[%s2] sm:$0xf]
    %v90 = vld [vmem:[#allocation2] sm:$0xff]
    %v91 = vld [vmem:[#allocation2 + $0x8] sm:$0xff]
    %v92 = vld [vmem:[#allocation2 + $0x10] sm:$0xff]
    %v93 = vld [vmem:[#allocation2 + $0x18] sm:$0xff]
    %v94 = vld [vmem:[#allocation2 + $0x20] sm:$0xff]
    %v95 = vld [vmem:[#allocation2 + $0x28] sm:$0xff]
    %v96 = vld [vmem:[#allocation2 + $0x30] sm:$0xff]
    %v97 = vld [vmem:[#allocation2 + $0x38] sm:$0xff]
    %v98 = vld [vmem:[#allocation2 + $0x40] sm:$0xff]
    %v99 = vld [vmem:[#allocation2 + $0x48] sm:$0xff]
    %v100 = vld [vmem:[#allocation2 + $0x50] sm:$0xff]
    %v101 = vld [vmem:[#allocation2 + $0x58] sm:$0xff]
    %v102 = vld [vmem:[#allocation2 + $0x60] sm:$0xff]
    %v103 = vld [vmem:[#allocation2 + $0x68] sm:$0xff]
    %v104 = vld [vmem:[#allocation2 + $0x70] sm:$0xff]
    %v105 = vld [vmem:[#allocation2 + $0x78] sm:$0xff]
    %v106 = vld [vmem:[#allocation2 + $0x80] sm:$0xff]
    %v107 = vld [vmem:[#allocation2 + $0x88] sm:$0xff]
    %v108 = vld [vmem:[#allocation2 + $0x90] sm:$0xff]
    %v109 = vld [vmem:[#allocation2 + $0x98] sm:$0xff]
    %v110 = vld [vmem:[#allocation2 + $0xa0] sm:$0xff]
    %v111 = vld [vmem:[#allocation2 + $0xa8] sm:$0xff]
    %v112 = vld [vmem:[#allocation2 + $0xb0] sm:$0xff]
    %v113 = vld [vmem:[#allocation2 + $0xb8] sm:$0xff]
    %v114 = vld [vmem:[#allocation2 + $0xc0] sm:$0xff]
    %v115 = vld [vmem:[#allocation2 + $0xc8] sm:$0xff]
    %v116 = vld [vmem:[#allocation2 + $0xd0] sm:$0xff]
    %v117 = vld [vmem:[#allocation2 + $0xd8] sm:$0xff]
    %v118 = vld [vmem:[#allocation2 + $0xe0] sm:$0xff]
    %v119 = vld [vmem:[#allocation2 + $0xe8] sm:$0xff]
    %v120 = vld [vmem:[#allocation2 + $0xf0] sm:$0xff]
    %v121 = vld [vmem:[#allocation2 + $0xf8] sm:$0xff]
    %v122 = vld [vmem:[#allocation2 + $0x100] sm:$0xff]
    %v123 = vld [vmem:[#allocation2 + $0x108] sm:$0xff]
    %v124 = vld [vmem:[#allocation2 + $0x110] sm:$0xff]
    %v125 = vld [vmem:[#allocation2 + $0x118] sm:$0xff]
    %v126 = vld [vmem:[#allocation2 + $0x120] sm:$0xff]
    %v127 = vld [vmem:[#allocation2 + $0x128] sm:$0xff]
    %v128 = vld [vmem:[#allocation2 + $0x130] sm:$0xff]
    %v129 = vld [vmem:[#allocation2 + $0x138] sm:$0xff]
    %v130 = vld [vmem:[#allocation2 + $0x140] sm:$0xff]
    %v131 = vld [vmem:[#allocation2 + $0x148] sm:$0xff]
    %v132 = vld [vmem:[#allocation2 + $0x150] sm:$0xff]
    %v133 = vld [vmem:[#allocation2 + $0x158] sm:$0xff]
    %v134 = vld [vmem:[#allocation2 + $0x160] sm:$0xff]
    %v135 = vld [vmem:[#allocation2 + $0x168] sm:$0xff]
    %v136 = vld [vmem:[#allocation2 + $0x170] sm:$0xff]
    %v137 = vld [vmem:[#allocation2 + $0x178] sm:$0xff]
    %v162 = vunpack.c.l.b16 %v33
    %v163 = vunpack.c.l.b16 %v34
    %v164 = vunpack.c.l.b16 %v35
    %v165 = vunpack.c.l.b16 %v36
    %v166 = vunpack.c.l.b16 %v37
    %v167 = vunpack.c.l.b16 %v38
    %v168 = vunpack.c.l.b16 %v39
    %v169 = vunpack.c.l.b16 %v40
    %v170 = vunpack.c.l.b16 %v41
    %v171 = vunpack.c.l.b16 %v42
    %v172 = vunpack.c.l.b16 %v43
    %v173 = vunpack.c.l.b16 %v44
    %v174 = vunpack.c.l.b16 %v45
    %v175 = vunpack.c.l.b16 %v46
    %v176 = vunpack.c.l.b16 %v47
    %v177 = vunpack.c.l.b16 %v48
    %v178 = vunpack.c.l.b16 %v49
    %v179 = vunpack.c.l.b16 %v50
    %v180 = vunpack.c.l.b16 %v51
    %v181 = vunpack.c.l.b16 %v52
    %v182 = vunpack.c.l.b16 %v53
    %v183 = vunpack.c.l.b16 %v54
    %v184 = vunpack.c.l.b16 %v55
    %v185 = vunpack.c.l.b16 %v56
    %v186 = vpack.c.b16 %v163, %v162
    %v187 = vpack.c.b16 %v165, %v164
    %v188 = vpack.c.b16 %v167, %v166
    %v189 = vpack.c.b16 %v169, %v168
    %v190 = vpack.c.b16 %v171, %v170
    %v191 = vpack.c.b16 %v173, %v172
    %v192 = vpack.c.b16 %v175, %v174
    %v193 = vpack.c.b16 %v177, %v176
    %v194 = vpack.c.b16 %v179, %v178
    %v195 = vpack.c.b16 %v181, %v180
    %v196 = vpack.c.b16 %v183, %v182
    %v197 = vpack.c.b16 %v185, %v184
    %v202 = vunpack.c.l.b16 %v81
    %v203 = vunpack.c.h.b16 %v81
    %v204 = vunpack.c.l.b16 %v82
    %v205 = vunpack.c.h.b16 %v82
    %v206 = vunpack.c.l.b16 %v83
    %v207 = vunpack.c.h.b16 %v83
    %v208 = vunpack.c.l.b16 %v84
    %v209 = vunpack.c.h.b16 %v84
    %v210 = vpack.c.b16 %v204, %v202
    %v211 = vpack.c.b16 %v205, %v203
    %v212 = vpack.c.b16 %v208, %v206
    %v213 = vpack.c.b16 %v209, %v207
    %vm218 = vcmask 261120
    %v220 = vsel %vm218, %v186, 0
    %v223 = vsel %vm218, %v187, 0
    %v226 = vsel %vm218, %v188, 0
    %v229 = vsel %vm218, %v189, 0
    %v232 = vsel %vm218, %v190, 0
    %v235 = vsel %vm218, %v191, 0
    %v238 = vsel %vm218, %v192, 0
    %v241 = vsel %vm218, %v193, 0
    %v244 = vsel %vm218, %v194, 0
    %v247 = vsel %vm218, %v195, 0
    %v250 = vsel %vm218, %v196, 0
    %v253 = vsel %vm218, %v197, 0
    %255 = vmatprep.subr.bf16.mxu0 %v211
    %256 = vmatpush1.bf16.msra.mxu0 %v210
    %257 = vmatprep.subr.bf16.mxu0 %v213
    %258 = vmatpush1.bf16.msra.mxu0 %v212
    %259 = vmatprep.subr.bf16.mxu0 0
    %260 = vmatpush1.bf16.msra.mxu0 0
    %261 = vmatprep.subr.bf16.mxu0 0
    %262 = vmatpush1.bf16.msra.mxu0 0
    %263 = vmatprep.subr.bf16.mxu0 0
    %264 = vmatpush1.bf16.msra.mxu0 0
    %265 = vmatprep.subr.bf16.mxu0 0
    %266 = vmatpush1.bf16.msra.mxu0 0
    %267 = vmatprep.subr.bf16.mxu0 0
    %268 = vmatpush1.bf16.msra.mxu0 0
    %269 = vmatprep.subr.bf16.mxu0 0
    %270 = vmatpush1.bf16.msra.mxu0 0
    %271 = vmatprep.subr.bf16.mxu0 0
    %272 = vmatpush1.bf16.msra.mxu0 0
    %273 = vmatprep.subr.bf16.mxu0 0
    %274 = vmatpush1.bf16.msra.mxu0 0
    %275 = vmatprep.subr.bf16.mxu0 0
    %276 = vmatpush1.bf16.msra.mxu0 0
    %277 = vmatprep.subr.bf16.mxu0 0
    %278 = vmatpush1.bf16.msra.mxu0 0
    %279 = vmatprep.subr.bf16.mxu0 0
    %280 = vmatpush1.bf16.msra.mxu0 0
    %281 = vmatprep.subr.bf16.mxu0 0
    %282 = vmatpush1.bf16.msra.mxu0 0
    %283 = vmatprep.subr.bf16.mxu0 0
    %284 = vmatpush1.bf16.msra.mxu0 0
    %285 = vmatprep.subr.bf16.mxu0 0
    %286 = vmatpush1.bf16.msra.mxu0 0
    %287 = vmatprep.mubr.bf16.mxu0 0
    %288 = vmatmul.mubr.bf16.gmra.mrb[0].mxu0 %v220
    %v289 = vpop.f32.mrb[0].mxu0
    %v290 = vadd.f32 0.0, %v289
    %v291 = vpop.f32.mrb[0].mxu0
    %v292 = vadd.f32 0.0, %v291
    %v293 = vpop.f32.mrb[0].mxu0
    %v294 = vadd.f32 0.0, %v293
    %v295 = vpop.f32.mrb[0].mxu0
    %v296 = vadd.f32 0.0, %v295
    %297 = vmatprep.mubr.bf16.mxu0 0
    %298 = vmatmul.mubr.bf16.gmra.mrb[0].mxu0 %v223
    %v299 = vpop.f32.mrb[0].mxu0
    %v300 = vadd.f32 0.0, %v299
    %v301 = vpop.f32.mrb[0].mxu0
    %v302 = vadd.f32 0.0, %v301
    %v303 = vpop.f32.mrb[0].mxu0
    %v304 = vadd.f32 0.0, %v303
    %v305 = vpop.f32.mrb[0].mxu0
    %v306 = vadd.f32 0.0, %v305
    %307 = vmatprep.mubr.bf16.mxu0 0
    %308 = vmatmul.mubr.bf16.gmra.mrb[0].mxu0 %v226
    %v309 = vpop.f32.mrb[0].mxu0
    %v310 = vadd.f32 0.0, %v309
    %v311 = vpop.f32.mrb[0].mxu0
    %v312 = vadd.f32 0.0, %v311
    %v313 = vpop.f32.mrb[0].mxu0
    %v314 = vadd.f32 0.0, %v313
    %v315 = vpop.f32.mrb[0].mxu0
    %v316 = vadd.f32 0.0, %v315
    %317 = vmatprep.mubr.bf16.mxu0 0
    %318 = vmatmul.mubr.bf16.gmra.mrb[0].mxu0 %v229
    %v319 = vpop.f32.mrb[0].mxu0
    %v320 = vadd.f32 0.0, %v319
    %v321 = vpop.f32.mrb[0].mxu0
    %v322 = vadd.f32 0.0, %v321
    %v323 = vpop.f32.mrb[0].mxu0
    %v324 = vadd.f32 0.0, %v323
    %v325 = vpop.f32.mrb[0].mxu0
    %v326 = vadd.f32 0.0, %v325
    %327 = vmatprep.mubr.bf16.mxu0 0
    %328 = vmatmul.mubr.bf16.gmra.mrb[0].mxu0 %v232
    %v329 = vpop.f32.mrb[0].mxu0
    %v330 = vadd.f32 0.0, %v329
    %v331 = vpop.f32.mrb[0].mxu0
    %v332 = vadd.f32 0.0, %v331
    %v333 = vpop.f32.mrb[0].mxu0
    %v334 = vadd.f32 0.0, %v333
    %v335 = vpop.f32.mrb[0].mxu0
    %v336 = vadd.f32 0.0, %v335
    %337 = vmatprep.mubr.bf16.mxu0 0
    %338 = vmatmul.mubr.bf16.gmra.mrb[0].mxu0 %v235
    %v339 = vpop.f32.mrb[0].mxu0
    %v340 = vadd.f32 0.0, %v339
    %v341 = vpop.f32.mrb[0].mxu0
    %v342 = vadd.f32 0.0, %v341
    %v343 = vpop.f32.mrb[0].mxu0
    %v344 = vadd.f32 0.0, %v343
    %v345 = vpop.f32.mrb[0].mxu0
    %v346 = vadd.f32 0.0, %v345
    %347 = vmatprep.mubr.bf16.mxu0 0
    %348 = vmatmul.mubr.bf16.gmra.mrb[0].mxu0 %v238
    %v349 = vpop.f32.mrb[0].mxu0
    %v350 = vadd.f32 0.0, %v349
    %v351 = vpop.f32.mrb[0].mxu0
    %v352 = vadd.f32 0.0, %v351
    %v353 = vpop.f32.mrb[0].mxu0
    %v354 = vadd.f32 0.0, %v353
    %v355 = vpop.f32.mrb[0].mxu0
    %v356 = vadd.f32 0.0, %v355
    %357 = vmatprep.mubr.bf16.mxu0 0
    %358 = vmatmul.mubr.bf16.gmra.mrb[0].mxu0 %v241
    %v359 = vpop.f32.mrb[0].mxu0
    %v360 = vadd.f32 0.0, %v359
    %v361 = vpop.f32.mrb[0].mxu0
    %v362 = vadd.f32 0.0, %v361
    %v363 = vpop.f32.mrb[0].mxu0
    %v364 = vadd.f32 0.0, %v363
    %v365 = vpop.f32.mrb[0].mxu0
    %v366 = vadd.f32 0.0, %v365
    %367 = vmatprep.mubr.bf16.mxu0 0
    %368 = vmatmul.mubr.bf16.gmra.mrb[0].mxu0 %v244
    %v369 = vpop.f32.mrb[0].mxu0
    %v370 = vadd.f32 0.0, %v369
    %v371 = vpop.f32.mrb[0].mxu0
    %v372 = vadd.f32 0.0, %v371
    %v373 = vpop.f32.mrb[0].mxu0
    %v374 = vadd.f32 0.0, %v373
    %v375 = vpop.f32.mrb[0].mxu0
    %v376 = vadd.f32 0.0, %v375
    %377 = vmatprep.mubr.bf16.mxu0 0
    %378 = vmatmul.mubr.bf16.gmra.mrb[0].mxu0 %v247
    %v379 = vpop.f32.mrb[0].mxu0
    %v380 = vadd.f32 0.0, %v379
    %v381 = vpop.f32.mrb[0].mxu0
    %v382 = vadd.f32 0.0, %v381
    %v383 = vpop.f32.mrb[0].mxu0
    %v384 = vadd.f32 0.0, %v383
    %v385 = vpop.f32.mrb[0].mxu0
    %v386 = vadd.f32 0.0, %v385
    %387 = vmatprep.mubr.bf16.mxu0 0
    %388 = vmatmul.mubr.bf16.gmra.mrb[0].mxu0 %v250
    %v389 = vpop.f32.mrb[0].mxu0
    %v390 = vadd.f32 0.0, %v389
    %v391 = vpop.f32.mrb[0].mxu0
    %v392 = vadd.f32 0.0, %v391
    %v393 = vpop.f32.mrb[0].mxu0
    %v394 = vadd.f32 0.0, %v393
    %v395 = vpop.f32.mrb[0].mxu0
    %v396 = vadd.f32 0.0, %v395
    %397 = vmatprep.mubr.bf16.mxu0 0
    %398 = vmatmul.mubr.bf16.gmra.mrb[0].mxu0 %v253
    %v399 = vpop.f32.mrb[0].mxu0
    %v400 = vadd.f32 0.0, %v399
    %v401 = vpop.f32.mrb[0].mxu0
    %v402 = vadd.f32 0.0, %v401
    %v403 = vpop.f32.mrb[0].mxu0
    %v404 = vadd.f32 0.0, %v403
    %v405 = vpop.f32.mrb[0].mxu0
    %v406 = vadd.f32 0.0, %v405
    %407 = vdwg.mxu0
    %v432 = vunpack.c.l.b16 %v57
    %v433 = vunpack.c.l.b16 %v58
    %v434 = vunpack.c.l.b16 %v59
    %v435 = vunpack.c.l.b16 %v60
    %v436 = vunpack.c.l.b16 %v61
    %v437 = vunpack.c.l.b16 %v62
    %v438 = vunpack.c.l.b16 %v63
    %v439 = vunpack.c.l.b16 %v64
    %v440 = vunpack.c.l.b16 %v65
    %v441 = vunpack.c.l.b16 %v66
    %v442 = vunpack.c.l.b16 %v67
    %v443 = vunpack.c.l.b16 %v68
    %v444 = vunpack.c.l.b16 %v69
    %v445 = vunpack.c.l.b16 %v70
    %v446 = vunpack.c.l.b16 %v71
    %v447 = vunpack.c.l.b16 %v72
    %v448 = vunpack.c.l.b16 %v73
    %v449 = vunpack.c.l.b16 %v74
    %v450 = vunpack.c.l.b16 %v75
    %v451 = vunpack.c.l.b16 %v76
    %v452 = vunpack.c.l.b16 %v77
    %v453 = vunpack.c.l.b16 %v78
    %v454 = vunpack.c.l.b16 %v79
    %v455 = vunpack.c.l.b16 %v80
    %v456 = vpack.c.b16 %v433, %v432
    %v457 = vpack.c.b16 %v435, %v434
    %v458 = vpack.c.b16 %v437, %v436
    %v459 = vpack.c.b16 %v439, %v438
    %v460 = vpack.c.b16 %v441, %v440
    %v461 = vpack.c.b16 %v443, %v442
    %v462 = vpack.c.b16 %v445, %v444
    %v463 = vpack.c.b16 %v447, %v446
    %v464 = vpack.c.b16 %v449, %v448
    %v465 = vpack.c.b16 %v451, %v450
    %v466 = vpack.c.b16 %v453, %v452
    %v467 = vpack.c.b16 %v455, %v454
    %v472 = vunpack.c.l.b16 %v85
    %v473 = vunpack.c.h.b16 %v85
    %v474 = vunpack.c.l.b16 %v86
    %v475 = vunpack.c.h.b16 %v86
    %v476 = vunpack.c.l.b16 %v87
    %v477 = vunpack.c.h.b16 %v87
    %v478 = vunpack.c.l.b16 %v88
    %v479 = vunpack.c.h.b16 %v88
    %v480 = vpack.c.b16 %v474, %v472
    %v481 = vpack.c.b16 %v475, %v473
    %v482 = vpack.c.b16 %v478, %v476
    %v483 = vpack.c.b16 %v479, %v477
    %v489 = vsel %vm218, %v456, 0
    %v492 = vsel %vm218, %v457, 0
    %v495 = vsel %vm218, %v458, 0
    %v498 = vsel %vm218, %v459, 0
    %v501 = vsel %vm218, %v460, 0
    %v504 = vsel %vm218, %v461, 0
    %v507 = vsel %vm218, %v462, 0
    %v510 = vsel %vm218, %v463, 0
    %v513 = vsel %vm218, %v464, 0
    %v516 = vsel %vm218, %v465, 0
    %v519 = vsel %vm218, %v466, 0
    %v522 = vsel %vm218, %v467, 0
    %524 = vmatprep.subr.bf16.mxu0 %v481
    %525 = vmatpush1.bf16.msra.mxu0 %v480
    %526 = vmatprep.subr.bf16.mxu0 %v483
    %527 = vmatpush1.bf16.msra.mxu0 %v482
    %528 = vmatprep.subr.bf16.mxu0 0
    %529 = vmatpush1.bf16.msra.mxu0 0
    %530 = vmatprep.subr.bf16.mxu0 0
    %531 = vmatpush1.bf16.msra.mxu0 0
    %532 = vmatprep.subr.bf16.mxu0 0
    %533 = vmatpush1.bf16.msra.mxu0 0
    %534 = vmatprep.subr.bf16.mxu0 0
    %535 = vmatpush1.bf16.msra.mxu0 0
    %536 = vmatprep.subr.bf16.mxu0 0
    %537 = vmatpush1.bf16.msra.mxu0 0
    %538 = vmatprep.subr.bf16.mxu0 0
    %539 = vmatpush1.bf16.msra.mxu0 0
    %540 = vmatprep.subr.bf16.mxu0 0
    %541 = vmatpush1.bf16.msra.mxu0 0
    %542 = vmatprep.subr.bf16.mxu0 0
    %543 = vmatpush1.bf16.msra.mxu0 0
    %544 = vmatprep.subr.bf16.mxu0 0
    %545 = vmatpush1.bf16.msra.mxu0 0
    %546 = vmatprep.subr.bf16.mxu0 0
    %547 = vmatpush1.bf16.msra.mxu0 0
    %548 = vmatprep.subr.bf16.mxu0 0
    %549 = vmatpush1.bf16.msra.mxu0 0
    %550 = vmatprep.subr.bf16.mxu0 0
    %551 = vmatpush1.bf16.msra.mxu0 0
    %552 = vmatprep.subr.bf16.mxu0 0
    %553 = vmatpush1.bf16.msra.mxu0 0
    %554 = vmatprep.subr.bf16.mxu0 0
    %555 = vmatpush1.bf16.msra.mxu0 0
    %556 = vmatprep.mubr.bf16.mxu0 0
    %557 = vmatmul.mubr.bf16.gmra.mrb[0].mxu0 %v489
    %v558 = vpop.f32.mrb[0].mxu0
    %v559 = vadd.f32 0.0, %v558
    %v560 = vpop.f32.mrb[0].mxu0
    %v561 = vadd.f32 0.0, %v560
    %v562 = vpop.f32.mrb[0].mxu0
    %v563 = vadd.f32 0.0, %v562
    %v564 = vpop.f32.mrb[0].mxu0
    %v565 = vadd.f32 0.0, %v564
    %566 = vmatprep.mubr.bf16.mxu0 0
    %567 = vmatmul.mubr.bf16.gmra.mrb[0].mxu0 %v492
    %v568 = vpop.f32.mrb[0].mxu0
    %v569 = vadd.f32 0.0, %v568
    %v570 = vpop.f32.mrb[0].mxu0
    %v571 = vadd.f32 0.0, %v570
    %v572 = vpop.f32.mrb[0].mxu0
    %v573 = vadd.f32 0.0, %v572
    %v574 = vpop.f32.mrb[0].mxu0
    %v575 = vadd.f32 0.0, %v574
    %576 = vmatprep.mubr.bf16.mxu0 0
    %577 = vmatmul.mubr.bf16.gmra.mrb[0].mxu0 %v495
    %v578 = vpop.f32.mrb[0].mxu0
    %v579 = vadd.f32 0.0, %v578
    %v580 = vpop.f32.mrb[0].mxu0
    %v581 = vadd.f32 0.0, %v580
    %v582 = vpop.f32.mrb[0].mxu0
    %v583 = vadd.f32 0.0, %v582
    %v584 = vpop.f32.mrb[0].mxu0
    %v585 = vadd.f32 0.0, %v584
    %586 = vmatprep.mubr.bf16.mxu0 0
    %587 = vmatmul.mubr.bf16.gmra.mrb[0].mxu0 %v498
    %v588 = vpop.f32.mrb[0].mxu0
    %v589 = vadd.f32 0.0, %v588
    %v590 = vpop.f32.mrb[0].mxu0
    %v591 = vadd.f32 0.0, %v590
    %v592 = vpop.f32.mrb[0].mxu0
    %v593 = vadd.f32 0.0, %v592
    %v594 = vpop.f32.mrb[0].mxu0
    %v595 = vadd.f32 0.0, %v594
    %596 = vmatprep.mubr.bf16.mxu0 0
    %597 = vmatmul.mubr.bf16.gmra.mrb[0].mxu0 %v501
    %v598 = vpop.f32.mrb[0].mxu0
    %v599 = vadd.f32 0.0, %v598
    %v600 = vpop.f32.mrb[0].mxu0
    %v601 = vadd.f32 0.0, %v600
    %v602 = vpop.f32.mrb[0].mxu0
    %v603 = vadd.f32 0.0, %v602
    %v604 = vpop.f32.mrb[0].mxu0
    %v605 = vadd.f32 0.0, %v604
    %606 = vmatprep.mubr.bf16.mxu0 0
    %607 = vmatmul.mubr.bf16.gmra.mrb[0].mxu0 %v504
    %v608 = vpop.f32.mrb[0].mxu0
    %v609 = vadd.f32 0.0, %v608
    %v610 = vpop.f32.mrb[0].mxu0
    %v611 = vadd.f32 0.0, %v610
    %v612 = vpop.f32.mrb[0].mxu0
    %v613 = vadd.f32 0.0, %v612
    %v614 = vpop.f32.mrb[0].mxu0
    %v615 = vadd.f32 0.0, %v614
    %616 = vmatprep.mubr.bf16.mxu0 0
    %617 = vmatmul.mubr.bf16.gmra.mrb[0].mxu0 %v507
    %v618 = vpop.f32.mrb[0].mxu0
    %v619 = vadd.f32 0.0, %v618
    %v620 = vpop.f32.mrb[0].mxu0
    %v621 = vadd.f32 0.0, %v620
    %v622 = vpop.f32.mrb[0].mxu0
    %v623 = vadd.f32 0.0, %v622
    %v624 = vpop.f32.mrb[0].mxu0
    %v625 = vadd.f32 0.0, %v624
    %626 = vmatprep.mubr.bf16.mxu0 0
    %627 = vmatmul.mubr.bf16.gmra.mrb[0].mxu0 %v510
    %v628 = vpop.f32.mrb[0].mxu0
    %v629 = vadd.f32 0.0, %v628
    %v630 = vpop.f32.mrb[0].mxu0
    %v631 = vadd.f32 0.0, %v630
    %v632 = vpop.f32.mrb[0].mxu0
    %v633 = vadd.f32 0.0, %v632
    %v634 = vpop.f32.mrb[0].mxu0
    %v635 = vadd.f32 0.0, %v634
    %636 = vmatprep.mubr.bf16.mxu0 0
    %637 = vmatmul.mubr.bf16.gmra.mrb[0].mxu0 %v513
    %v638 = vpop.f32.mrb[0].mxu0
    %v639 = vadd.f32 0.0, %v638
    %v640 = vpop.f32.mrb[0].mxu0
    %v641 = vadd.f32 0.0, %v640
    %v642 = vpop.f32.mrb[0].mxu0
    %v643 = vadd.f32 0.0, %v642
    %v644 = vpop.f32.mrb[0].mxu0
    %v645 = vadd.f32 0.0, %v644
    %646 = vmatprep.mubr.bf16.mxu0 0
    %647 = vmatmul.mubr.bf16.gmra.mrb[0].mxu0 %v516
    %v648 = vpop.f32.mrb[0].mxu0
    %v649 = vadd.f32 0.0, %v648
    %v650 = vpop.f32.mrb[0].mxu0
    %v651 = vadd.f32 0.0, %v650
    %v652 = vpop.f32.mrb[0].mxu0
    %v653 = vadd.f32 0.0, %v652
    %v654 = vpop.f32.mrb[0].mxu0
    %v655 = vadd.f32 0.0, %v654
    %656 = vmatprep.mubr.bf16.mxu0 0
    %657 = vmatmul.mubr.bf16.gmra.mrb[0].mxu0 %v519
    %v658 = vpop.f32.mrb[0].mxu0
    %v659 = vadd.f32 0.0, %v658
    %v660 = vpop.f32.mrb[0].mxu0
    %v661 = vadd.f32 0.0, %v660
    %v662 = vpop.f32.mrb[0].mxu0
    %v663 = vadd.f32 0.0, %v662
    %v664 = vpop.f32.mrb[0].mxu0
    %v665 = vadd.f32 0.0, %v664
    %666 = vmatprep.mubr.bf16.mxu0 0
    %667 = vmatmul.mubr.bf16.gmra.mrb[0].mxu0 %v522
    %v668 = vpop.f32.mrb[0].mxu0
    %v669 = vadd.f32 0.0, %v668
    %v670 = vpop.f32.mrb[0].mxu0
    %v671 = vadd.f32 0.0, %v670
    %v672 = vpop.f32.mrb[0].mxu0
    %v673 = vadd.f32 0.0, %v672
    %v674 = vpop.f32.mrb[0].mxu0
    %v675 = vadd.f32 0.0, %v674
    %676 = vdwg.mxu0
    %vm677 = vcmask 523264
    %v678 = vsel %vm677, %v292, -inf
    %v679 = vmax.f32 %v290, %v678
    %680 = vmax.xlane.f32.xlu0 %v679
    %v681 = vpop.xlane.xlu0 %680
    %v682 = vsel %vm677, %v296, -inf
    %v683 = vmax.f32 %v294, %v682
    %684 = vmax.xlane.f32.xlu0 %v683
    %v685 = vpop.xlane.xlu0 %684
    %v686 = vsel %vm677, %v302, -inf
    %v687 = vmax.f32 %v300, %v686
    %688 = vmax.xlane.f32.xlu0 %v687
    %v689 = vpop.xlane.xlu0 %688
    %v690 = vsel %vm677, %v306, -inf
    %v691 = vmax.f32 %v304, %v690
    %692 = vmax.xlane.f32.xlu0 %v691
    %v693 = vpop.xlane.xlu0 %692
    %v694 = vsel %vm677, %v312, -inf
    %v695 = vmax.f32 %v310, %v694
    %696 = vmax.xlane.f32.xlu0 %v695
    %v697 = vpop.xlane.xlu0 %696
    %v698 = vsel %vm677, %v316, -inf
    %v699 = vmax.f32 %v314, %v698
    %700 = vmax.xlane.f32.xlu0 %v699
    %v701 = vpop.xlane.xlu0 %700
    %v702 = vsel %vm677, %v322, -inf
    %v703 = vmax.f32 %v320, %v702
    %704 = vmax.xlane.f32.xlu0 %v703
    %v705 = vpop.xlane.xlu0 %704
    %v706 = vsel %vm677, %v326, -inf
    %v707 = vmax.f32 %v324, %v706
    %708 = vmax.xlane.f32.xlu0 %v707
    %v709 = vpop.xlane.xlu0 %708
    %v710 = vsel %vm677, %v332, -inf
    %v711 = vmax.f32 %v330, %v710
    %712 = vmax.xlane.f32.xlu0 %v711
    %v713 = vpop.xlane.xlu0 %712
    %v714 = vsel %vm677, %v336, -inf
    %v715 = vmax.f32 %v334, %v714
    %716 = vmax.xlane.f32.xlu0 %v715
    %v717 = vpop.xlane.xlu0 %716
    %v718 = vsel %vm677, %v342, -inf
    %v719 = vmax.f32 %v340, %v718
    %720 = vmax.xlane.f32.xlu0 %v719
    %v721 = vpop.xlane.xlu0 %720
    %v722 = vsel %vm677, %v346, -inf
    %v723 = vmax.f32 %v344, %v722
    %724 = vmax.xlane.f32.xlu0 %v723
    %v725 = vpop.xlane.xlu0 %724
    %v726 = vsel %vm677, %v352, -inf
    %v727 = vmax.f32 %v350, %v726
    %728 = vmax.xlane.f32.xlu0 %v727
    %v729 = vpop.xlane.xlu0 %728
    %v730 = vsel %vm677, %v356, -inf
    %v731 = vmax.f32 %v354, %v730
    %732 = vmax.xlane.f32.xlu0 %v731
    %v733 = vpop.xlane.xlu0 %732
    %v734 = vsel %vm677, %v362, -inf
    %v735 = vmax.f32 %v360, %v734
    %736 = vmax.xlane.f32.xlu0 %v735
    %v737 = vpop.xlane.xlu0 %736
    %v738 = vsel %vm677, %v366, -inf
    %v739 = vmax.f32 %v364, %v738
    %740 = vmax.xlane.f32.xlu0 %v739
    %v741 = vpop.xlane.xlu0 %740
    %v742 = vsel %vm677, %v372, -inf
    %v743 = vmax.f32 %v370, %v742
    %744 = vmax.xlane.f32.xlu0 %v743
    %v745 = vpop.xlane.xlu0 %744
    %v746 = vsel %vm677, %v376, -inf
    %v747 = vmax.f32 %v374, %v746
    %748 = vmax.xlane.f32.xlu0 %v747
    %v749 = vpop.xlane.xlu0 %748
    %v750 = vsel %vm677, %v382, -inf
    %v751 = vmax.f32 %v380, %v750
    %752 = vmax.xlane.f32.xlu0 %v751
    %v753 = vpop.xlane.xlu0 %752
    %v754 = vsel %vm677, %v386, -inf
    %v755 = vmax.f32 %v384, %v754
    %756 = vmax.xlane.f32.xlu0 %v755
    %v757 = vpop.xlane.xlu0 %756
    %v758 = vsel %vm677, %v392, -inf
    %v759 = vmax.f32 %v390, %v758
    %760 = vmax.xlane.f32.xlu0 %v759
    %v761 = vpop.xlane.xlu0 %760
    %v762 = vsel %vm677, %v396, -inf
    %v763 = vmax.f32 %v394, %v762
    %764 = vmax.xlane.f32.xlu0 %v763
    %v765 = vpop.xlane.xlu0 %764
    %v766 = vsel %vm677, %v402, -inf
    %v767 = vmax.f32 %v400, %v766
    %768 = vmax.xlane.f32.xlu0 %v767
    %v769 = vpop.xlane.xlu0 %768
    %v770 = vsel %vm677, %v406, -inf
    %v771 = vmax.f32 %v404, %v770
    %772 = vmax.xlane.f32.xlu0 %v771
    %v773 = vpop.xlane.xlu0 %772
    %v774 = vsel %vm677, %v561, -inf
    %v775 = vmax.f32 %v559, %v774
    %776 = vmax.xlane.f32.xlu0 %v775
    %v777 = vpop.xlane.xlu0 %776
    %v778 = vsel %vm677, %v565, -inf
    %v779 = vmax.f32 %v563, %v778
    %780 = vmax.xlane.f32.xlu0 %v779
    %v781 = vpop.xlane.xlu0 %780
    %v782 = vsel %vm677, %v571, -inf
    %v783 = vmax.f32 %v569, %v782
    %784 = vmax.xlane.f32.xlu0 %v783
    %v785 = vpop.xlane.xlu0 %784
    %v786 = vsel %vm677, %v575, -inf
    %v787 = vmax.f32 %v573, %v786
    %788 = vmax.xlane.f32.xlu0 %v787
    %v789 = vpop.xlane.xlu0 %788
    %v790 = vsel %vm677, %v581, -inf
    %v791 = vmax.f32 %v579, %v790
    %792 = vmax.xlane.f32.xlu0 %v791
    %v793 = vpop.xlane.xlu0 %792
    %v794 = vsel %vm677, %v585, -inf
    %v795 = vmax.f32 %v583, %v794
    %796 = vmax.xlane.f32.xlu0 %v795
    %v797 = vpop.xlane.xlu0 %796
    %v798 = vsel %vm677, %v591, -inf
    %v799 = vmax.f32 %v589, %v798
    %800 = vmax.xlane.f32.xlu0 %v799
    %v801 = vpop.xlane.xlu0 %800
    %v802 = vsel %vm677, %v595, -inf
    %v803 = vmax.f32 %v593, %v802
    %804 = vmax.xlane.f32.xlu0 %v803
    %v805 = vpop.xlane.xlu0 %804
    %v806 = vsel %vm677, %v601, -inf
    %v807 = vmax.f32 %v599, %v806
    %808 = vmax.xlane.f32.xlu0 %v807
    %v809 = vpop.xlane.xlu0 %808
    %v810 = vsel %vm677, %v605, -inf
    %v811 = vmax.f32 %v603, %v810
    %812 = vmax.xlane.f32.xlu0 %v811
    %v813 = vpop.xlane.xlu0 %812
    %v814 = vsel %vm677, %v611, -inf
    %v815 = vmax.f32 %v609, %v814
    %816 = vmax.xlane.f32.xlu0 %v815
    %v817 = vpop.xlane.xlu0 %816
    %v818 = vsel %vm677, %v615, -inf
    %v819 = vmax.f32 %v613, %v818
    %820 = vmax.xlane.f32.xlu0 %v819
    %v821 = vpop.xlane.xlu0 %820
    %v822 = vsel %vm677, %v621, -inf
    %v823 = vmax.f32 %v619, %v822
    %824 = vmax.xlane.f32.xlu0 %v823
    %v825 = vpop.xlane.xlu0 %824
    %v826 = vsel %vm677, %v625, -inf
    %v827 = vmax.f32 %v623, %v826
    %828 = vmax.xlane.f32.xlu0 %v827
    %v829 = vpop.xlane.xlu0 %828
    %v830 = vsel %vm677, %v631, -inf
    %v831 = vmax.f32 %v629, %v830
    %832 = vmax.xlane.f32.xlu0 %v831
    %v833 = vpop.xlane.xlu0 %832
    %v834 = vsel %vm677, %v635, -inf
    %v835 = vmax.f32 %v633, %v834
    %836 = vmax.xlane.f32.xlu0 %v835
    %v837 = vpop.xlane.xlu0 %836
    %v838 = vsel %vm677, %v641, -inf
    %v839 = vmax.f32 %v639, %v838
    %840 = vmax.xlane.f32.xlu0 %v839
    %v841 = vpop.xlane.xlu0 %840
    %v842 = vsel %vm677, %v645, -inf
    %v843 = vmax.f32 %v643, %v842
    %844 = vmax.xlane.f32.xlu0 %v843
    %v845 = vpop.xlane.xlu0 %844
    %v846 = vsel %vm677, %v651, -inf
    %v847 = vmax.f32 %v649, %v846
    %848 = vmax.xlane.f32.xlu0 %v847
    %v849 = vpop.xlane.xlu0 %848
    %v850 = vsel %vm677, %v655, -inf
    %v851 = vmax.f32 %v653, %v850
    %852 = vmax.xlane.f32.xlu0 %v851
    %v853 = vpop.xlane.xlu0 %852
    %v854 = vsel %vm677, %v661, -inf
    %v855 = vmax.f32 %v659, %v854
    %856 = vmax.xlane.f32.xlu0 %v855
    %v857 = vpop.xlane.xlu0 %856
    %v858 = vsel %vm677, %v665, -inf
    %v859 = vmax.f32 %v663, %v858
    %860 = vmax.xlane.f32.xlu0 %v859
    %v861 = vpop.xlane.xlu0 %860
    %v862 = vsel %vm677, %v671, -inf
    %v863 = vmax.f32 %v669, %v862
    %864 = vmax.xlane.f32.xlu0 %v863
    %v865 = vpop.xlane.xlu0 %864
    %v866 = vsel %vm677, %v675, -inf
    %v867 = vmax.f32 %v673, %v866
    %868 = vmax.xlane.f32.xlu0 %v867
    %v869 = vpop.xlane.xlu0 %868
    %v919 = vunpack.c.l.s4 269488144
    %v920 = vunpack.c.0.s8 %v919
    %v921 = vlaneseq
    %v922 = vshrl.u32 %v921, 7
    %v923 = vsub.s32 %v920, %v922
    %v924 = vrot.slane %v681, %v923
    %v926 = vunpack.c.l.s4 842150450
    %v927 = vunpack.c.0.s8 %v926
    %v928 = vlaneseq
    %v929 = vshrl.u32 %v928, 7
    %v930 = vsub.s32 %v927, %v929
    %v931 = vrot.slane %v681, %v930
    %v933 = vunpack.c.l.s4 1414812756
    %v934 = vunpack.c.0.s8 %v933
    %v935 = vlaneseq
    %v936 = vshrl.u32 %v935, 7
    %v937 = vsub.s32 %v934, %v936
    %v938 = vrot.slane %v681, %v937
    %v940 = vunpack.c.l.s4 1987475062
    %v941 = vunpack.c.0.s8 %v940
    %v942 = vlaneseq
    %v943 = vshrl.u32 %v942, 7
    %v944 = vsub.s32 %v941, %v943
    %v945 = vrot.slane %v681, %v944
    %v947 = vunpack.c.l.s4 269488144
    %v948 = vunpack.c.0.s8 %v947
    %v949 = vlaneseq
    %v950 = vshrl.u32 %v949, 7
    %v951 = vsub.s32 %v948, %v950
    %v952 = vrot.slane %v685, %v951
    %v954 = vunpack.c.l.s4 842150450
    %v955 = vunpack.c.0.s8 %v954
    %v956 = vlaneseq
    %v957 = vshrl.u32 %v956, 7
    %v958 = vsub.s32 %v955, %v957
    %v959 = vrot.slane %v685, %v958
    %v961 = vunpack.c.l.s4 1414812756
    %v962 = vunpack.c.0.s8 %v961
    %v963 = vlaneseq
    %v964 = vshrl.u32 %v963, 7
    %v965 = vsub.s32 %v962, %v964
    %v966 = vrot.slane %v685, %v965
    %v968 = vunpack.c.l.s4 1987475062
    %v969 = vunpack.c.0.s8 %v968
    %v970 = vlaneseq
    %v971 = vshrl.u32 %v970, 7
    %v972 = vsub.s32 %v969, %v971
    %v973 = vrot.slane %v685, %v972
    %v975 = vunpack.c.l.s4 269488144
    %v976 = vunpack.c.0.s8 %v975
    %v977 = vlaneseq
    %v978 = vshrl.u32 %v977, 7
    %v979 = vsub.s32 %v976, %v978
    %v980 = vrot.slane %v689, %v979
    %v982 = vunpack.c.l.s4 842150450
    %v983 = vunpack.c.0.s8 %v982
    %v984 = vlaneseq
    %v985 = vshrl.u32 %v984, 7
    %v986 = vsub.s32 %v983, %v985
    %v987 = vrot.slane %v689, %v986
    %v989 = vunpack.c.l.s4 1414812756
    %v990 = vunpack.c.0.s8 %v989
    %v991 = vlaneseq
    %v992 = vshrl.u32 %v991, 7
    %v993 = vsub.s32 %v990, %v992
    %v994 = vrot.slane %v689, %v993
    %v996 = vunpack.c.l.s4 1987475062
    %v997 = vunpack.c.0.s8 %v996
    %v998 = vlaneseq
    %v999 = vshrl.u32 %v998, 7
    %v1000 = vsub.s32 %v997, %v999
    %v1001 = vrot.slane %v689, %v1000
    %v1003 = vunpack.c.l.s4 269488144
    %v1004 = vunpack.c.0.s8 %v1003
    %v1005 = vlaneseq
    %v1006 = vshrl.u32 %v1005, 7
    %v1007 = vsub.s32 %v1004, %v1006
    %v1008 = vrot.slane %v693, %v1007
    %v1010 = vunpack.c.l.s4 842150450
    %v1011 = vunpack.c.0.s8 %v1010
    %v1012 = vlaneseq
    %v1013 = vshrl.u32 %v1012, 7
    %v1014 = vsub.s32 %v1011, %v1013
    %v1015 = vrot.slane %v693, %v1014
    %v1017 = vunpack.c.l.s4 1414812756
    %v1018 = vunpack.c.0.s8 %v1017
    %v1019 = vlaneseq
    %v1020 = vshrl.u32 %v1019, 7
    %v1021 = vsub.s32 %v1018, %v1020
    %v1022 = vrot.slane %v693, %v1021
    %v1024 = vunpack.c.l.s4 1987475062
    %v1025 = vunpack.c.0.s8 %v1024
    %v1026 = vlaneseq
    %v1027 = vshrl.u32 %v1026, 7
    %v1028 = vsub.s32 %v1025, %v1027
    %v1029 = vrot.slane %v693, %v1028
    %v1031 = vunpack.c.l.s4 269488144
    %v1032 = vunpack.c.0.s8 %v1031
    %v1033 = vlaneseq
    %v1034 = vshrl.u32 %v1033, 7
    %v1035 = vsub.s32 %v1032, %v1034
    %v1036 = vrot.slane %v697, %v1035
    %v1038 = vunpack.c.l.s4 842150450
    %v1039 = vunpack.c.0.s8 %v1038
    %v1040 = vlaneseq
    %v1041 = vshrl.u32 %v1040, 7
    %v1042 = vsub.s32 %v1039, %v1041
    %v1043 = vrot.slane %v697, %v1042
    %v1045 = vunpack.c.l.s4 1414812756
    %v1046 = vunpack.c.0.s8 %v1045
    %v1047 = vlaneseq
    %v1048 = vshrl.u32 %v1047, 7
    %v1049 = vsub.s32 %v1046, %v1048
    %v1050 = vrot.slane %v697, %v1049
    %v1052 = vunpack.c.l.s4 1987475062
    %v1053 = vunpack.c.0.s8 %v1052
    %v1054 = vlaneseq
    %v1055 = vshrl.u32 %v1054, 7
    %v1056 = vsub.s32 %v1053, %v1055
    %v1057 = vrot.slane %v697, %v1056
    %v1059 = vunpack.c.l.s4 269488144
    %v1060 = vunpack.c.0.s8 %v1059
    %v1061 = vlaneseq
    %v1062 = vshrl.u32 %v1061, 7
    %v1063 = vsub.s32 %v1060, %v1062
    %v1064 = vrot.slane %v701, %v1063
    %v1066 = vunpack.c.l.s4 842150450
    %v1067 = vunpack.c.0.s8 %v1066
    %v1068 = vlaneseq
    %v1069 = vshrl.u32 %v1068, 7
    %v1070 = vsub.s32 %v1067, %v1069
    %v1071 = vrot.slane %v701, %v1070
    %v1073 = vunpack.c.l.s4 1414812756
    %v1074 = vunpack.c.0.s8 %v1073
    %v1075 = vlaneseq
    %v1076 = vshrl.u32 %v1075, 7
    %v1077 = vsub.s32 %v1074, %v1076
    %v1078 = vrot.slane %v701, %v1077
    %v1080 = vunpack.c.l.s4 1987475062
    %v1081 = vunpack.c.0.s8 %v1080
    %v1082 = vlaneseq
    %v1083 = vshrl.u32 %v1082, 7
    %v1084 = vsub.s32 %v1081, %v1083
    %v1085 = vrot.slane %v701, %v1084
    %v1087 = vunpack.c.l.s4 269488144
    %v1088 = vunpack.c.0.s8 %v1087
    %v1089 = vlaneseq
    %v1090 = vshrl.u32 %v1089, 7
    %v1091 = vsub.s32 %v1088, %v1090
    %v1092 = vrot.slane %v705, %v1091
    %v1094 = vunpack.c.l.s4 842150450
    %v1095 = vunpack.c.0.s8 %v1094
    %v1096 = vlaneseq
    %v1097 = vshrl.u32 %v1096, 7
    %v1098 = vsub.s32 %v1095, %v1097
    %v1099 = vrot.slane %v705, %v1098
    %v1101 = vunpack.c.l.s4 1414812756
    %v1102 = vunpack.c.0.s8 %v1101
    %v1103 = vlaneseq
    %v1104 = vshrl.u32 %v1103, 7
    %v1105 = vsub.s32 %v1102, %v1104
    %v1106 = vrot.slane %v705, %v1105
    %v1108 = vunpack.c.l.s4 1987475062
    %v1109 = vunpack.c.0.s8 %v1108
    %v1110 = vlaneseq
    %v1111 = vshrl.u32 %v1110, 7
    %v1112 = vsub.s32 %v1109, %v1111
    %v1113 = vrot.slane %v705, %v1112
    %v1115 = vunpack.c.l.s4 269488144
    %v1116 = vunpack.c.0.s8 %v1115
    %v1117 = vlaneseq
    %v1118 = vshrl.u32 %v1117, 7
    %v1119 = vsub.s32 %v1116, %v1118
    %v1120 = vrot.slane %v709, %v1119
    %v1122 = vunpack.c.l.s4 842150450
    %v1123 = vunpack.c.0.s8 %v1122
    %v1124 = vlaneseq
    %v1125 = vshrl.u32 %v1124, 7
    %v1126 = vsub.s32 %v1123, %v1125
    %v1127 = vrot.slane %v709, %v1126
    %v1129 = vunpack.c.l.s4 1414812756
    %v1130 = vunpack.c.0.s8 %v1129
    %v1131 = vlaneseq
    %v1132 = vshrl.u32 %v1131, 7
    %v1133 = vsub.s32 %v1130, %v1132
    %v1134 = vrot.slane %v709, %v1133
    %v1136 = vunpack.c.l.s4 1987475062
    %v1137 = vunpack.c.0.s8 %v1136
    %v1138 = vlaneseq
    %v1139 = vshrl.u32 %v1138, 7
    %v1140 = vsub.s32 %v1137, %v1139
    %v1141 = vrot.slane %v709, %v1140
    %v1143 = vunpack.c.l.s4 269488144
    %v1144 = vunpack.c.0.s8 %v1143
    %v1145 = vlaneseq
    %v1146 = vshrl.u32 %v1145, 7
    %v1147 = vsub.s32 %v1144, %v1146
    %v1148 = vrot.slane %v713, %v1147
    %v1150 = vunpack.c.l.s4 842150450
    %v1151 = vunpack.c.0.s8 %v1150
    %v1152 = vlaneseq
    %v1153 = vshrl.u32 %v1152, 7
    %v1154 = vsub.s32 %v1151, %v1153
    %v1155 = vrot.slane %v713, %v1154
    %v1157 = vunpack.c.l.s4 1414812756
    %v1158 = vunpack.c.0.s8 %v1157
    %v1159 = vlaneseq
    %v1160 = vshrl.u32 %v1159, 7
    %v1161 = vsub.s32 %v1158, %v1160
    %v1162 = vrot.slane %v713, %v1161
    %v1164 = vunpack.c.l.s4 1987475062
    %v1165 = vunpack.c.0.s8 %v1164
    %v1166 = vlaneseq
    %v1167 = vshrl.u32 %v1166, 7
    %v1168 = vsub.s32 %v1165, %v1167
    %v1169 = vrot.slane %v713, %v1168
    %v1171 = vunpack.c.l.s4 269488144
    %v1172 = vunpack.c.0.s8 %v1171
    %v1173 = vlaneseq
    %v1174 = vshrl.u32 %v1173, 7
    %v1175 = vsub.s32 %v1172, %v1174
    %v1176 = vrot.slane %v717, %v1175
    %v1178 = vunpack.c.l.s4 842150450
    %v1179 = vunpack.c.0.s8 %v1178
    %v1180 = vlaneseq
    %v1181 = vshrl.u32 %v1180, 7
    %v1182 = vsub.s32 %v1179, %v1181
    %v1183 = vrot.slane %v717, %v1182
    %v1185 = vunpack.c.l.s4 1414812756
    %v1186 = vunpack.c.0.s8 %v1185
    %v1187 = vlaneseq
    %v1188 = vshrl.u32 %v1187, 7
    %v1189 = vsub.s32 %v1186, %v1188
    %v1190 = vrot.slane %v717, %v1189
    %v1192 = vunpack.c.l.s4 1987475062
    %v1193 = vunpack.c.0.s8 %v1192
    %v1194 = vlaneseq
    %v1195 = vshrl.u32 %v1194, 7
    %v1196 = vsub.s32 %v1193, %v1195
    %v1197 = vrot.slane %v717, %v1196
    %v1199 = vunpack.c.l.s4 269488144
    %v1200 = vunpack.c.0.s8 %v1199
    %v1201 = vlaneseq
    %v1202 = vshrl.u32 %v1201, 7
    %v1203 = vsub.s32 %v1200, %v1202
    %v1204 = vrot.slane %v721, %v1203
    %v1206 = vunpack.c.l.s4 842150450
    %v1207 = vunpack.c.0.s8 %v1206
    %v1208 = vlaneseq
    %v1209 = vshrl.u32 %v1208, 7
    %v1210 = vsub.s32 %v1207, %v1209
    %v1211 = vrot.slane %v721, %v1210
    %v1213 = vunpack.c.l.s4 1414812756
    %v1214 = vunpack.c.0.s8 %v1213
    %v1215 = vlaneseq
    %v1216 = vshrl.u32 %v1215, 7
    %v1217 = vsub.s32 %v1214, %v1216
    %v1218 = vrot.slane %v721, %v1217
    %v1220 = vunpack.c.l.s4 1987475062
    %v1221 = vunpack.c.0.s8 %v1220
    %v1222 = vlaneseq
    %v1223 = vshrl.u32 %v1222, 7
    %v1224 = vsub.s32 %v1221, %v1223
    %v1225 = vrot.slane %v721, %v1224
    %v1227 = vunpack.c.l.s4 269488144
    %v1228 = vunpack.c.0.s8 %v1227
    %v1229 = vlaneseq
    %v1230 = vshrl.u32 %v1229, 7
    %v1231 = vsub.s32 %v1228, %v1230
    %v1232 = vrot.slane %v725, %v1231
    %v1234 = vunpack.c.l.s4 842150450
    %v1235 = vunpack.c.0.s8 %v1234
    %v1236 = vlaneseq
    %v1237 = vshrl.u32 %v1236, 7
    %v1238 = vsub.s32 %v1235, %v1237
    %v1239 = vrot.slane %v725, %v1238
    %v1241 = vunpack.c.l.s4 1414812756
    %v1242 = vunpack.c.0.s8 %v1241
    %v1243 = vlaneseq
    %v1244 = vshrl.u32 %v1243, 7
    %v1245 = vsub.s32 %v1242, %v1244
    %v1246 = vrot.slane %v725, %v1245
    %v1248 = vunpack.c.l.s4 1987475062
    %v1249 = vunpack.c.0.s8 %v1248
    %v1250 = vlaneseq
    %v1251 = vshrl.u32 %v1250, 7
    %v1252 = vsub.s32 %v1249, %v1251
    %v1253 = vrot.slane %v725, %v1252
    %v1255 = vunpack.c.l.s4 269488144
    %v1256 = vunpack.c.0.s8 %v1255
    %v1257 = vlaneseq
    %v1258 = vshrl.u32 %v1257, 7
    %v1259 = vsub.s32 %v1256, %v1258
    %v1260 = vrot.slane %v729, %v1259
    %v1262 = vunpack.c.l.s4 842150450
    %v1263 = vunpack.c.0.s8 %v1262
    %v1264 = vlaneseq
    %v1265 = vshrl.u32 %v1264, 7
    %v1266 = vsub.s32 %v1263, %v1265
    %v1267 = vrot.slane %v729, %v1266
    %v1269 = vunpack.c.l.s4 1414812756
    %v1270 = vunpack.c.0.s8 %v1269
    %v1271 = vlaneseq
    %v1272 = vshrl.u32 %v1271, 7
    %v1273 = vsub.s32 %v1270, %v1272
    %v1274 = vrot.slane %v729, %v1273
    %v1276 = vunpack.c.l.s4 1987475062
    %v1277 = vunpack.c.0.s8 %v1276
    %v1278 = vlaneseq
    %v1279 = vshrl.u32 %v1278, 7
    %v1280 = vsub.s32 %v1277, %v1279
    %v1281 = vrot.slane %v729, %v1280
    %v1283 = vunpack.c.l.s4 269488144
    %v1284 = vunpack.c.0.s8 %v1283
    %v1285 = vlaneseq
    %v1286 = vshrl.u32 %v1285, 7
    %v1287 = vsub.s32 %v1284, %v1286
    %v1288 = vrot.slane %v733, %v1287
    %v1290 = vunpack.c.l.s4 842150450
    %v1291 = vunpack.c.0.s8 %v1290
    %v1292 = vlaneseq
    %v1293 = vshrl.u32 %v1292, 7
    %v1294 = vsub.s32 %v1291, %v1293
    %v1295 = vrot.slane %v733, %v1294
    %v1297 = vunpack.c.l.s4 1414812756
    %v1298 = vunpack.c.0.s8 %v1297
    %v1299 = vlaneseq
    %v1300 = vshrl.u32 %v1299, 7
    %v1301 = vsub.s32 %v1298, %v1300
    %v1302 = vrot.slane %v733, %v1301
    %v1304 = vunpack.c.l.s4 1987475062
    %v1305 = vunpack.c.0.s8 %v1304
    %v1306 = vlaneseq
    %v1307 = vshrl.u32 %v1306, 7
    %v1308 = vsub.s32 %v1305, %v1307
    %v1309 = vrot.slane %v733, %v1308
    %v1311 = vunpack.c.l.s4 269488144
    %v1312 = vunpack.c.0.s8 %v1311
    %v1313 = vlaneseq
    %v1314 = vshrl.u32 %v1313, 7
    %v1315 = vsub.s32 %v1312, %v1314
    %v1316 = vrot.slane %v737, %v1315
    %v1318 = vunpack.c.l.s4 842150450
    %v1319 = vunpack.c.0.s8 %v1318
    %v1320 = vlaneseq
    %v1321 = vshrl.u32 %v1320, 7
    %v1322 = vsub.s32 %v1319, %v1321
    %v1323 = vrot.slane %v737, %v1322
    %v1325 = vunpack.c.l.s4 1414812756
    %v1326 = vunpack.c.0.s8 %v1325
    %v1327 = vlaneseq
    %v1328 = vshrl.u32 %v1327, 7
    %v1329 = vsub.s32 %v1326, %v1328
    %v1330 = vrot.slane %v737, %v1329
    %v1332 = vunpack.c.l.s4 1987475062
    %v1333 = vunpack.c.0.s8 %v1332
    %v1334 = vlaneseq
    %v1335 = vshrl.u32 %v1334, 7
    %v1336 = vsub.s32 %v1333, %v1335
    %v1337 = vrot.slane %v737, %v1336
    %v1339 = vunpack.c.l.s4 269488144
    %v1340 = vunpack.c.0.s8 %v1339
    %v1341 = vlaneseq
    %v1342 = vshrl.u32 %v1341, 7
    %v1343 = vsub.s32 %v1340, %v1342
    %v1344 = vrot.slane %v741, %v1343
    %v1346 = vunpack.c.l.s4 842150450
    %v1347 = vunpack.c.0.s8 %v1346
    %v1348 = vlaneseq
    %v1349 = vshrl.u32 %v1348, 7
    %v1350 = vsub.s32 %v1347, %v1349
    %v1351 = vrot.slane %v741, %v1350
    %v1353 = vunpack.c.l.s4 1414812756
    %v1354 = vunpack.c.0.s8 %v1353
    %v1355 = vlaneseq
    %v1356 = vshrl.u32 %v1355, 7
    %v1357 = vsub.s32 %v1354, %v1356
    %v1358 = vrot.slane %v741, %v1357
    %v1360 = vunpack.c.l.s4 1987475062
    %v1361 = vunpack.c.0.s8 %v1360
    %v1362 = vlaneseq
    %v1363 = vshrl.u32 %v1362, 7
    %v1364 = vsub.s32 %v1361, %v1363
    %v1365 = vrot.slane %v741, %v1364
    %v1367 = vunpack.c.l.s4 269488144
    %v1368 = vunpack.c.0.s8 %v1367
    %v1369 = vlaneseq
    %v1370 = vshrl.u32 %v1369, 7
    %v1371 = vsub.s32 %v1368, %v1370
    %v1372 = vrot.slane %v745, %v1371
    %v1374 = vunpack.c.l.s4 842150450
    %v1375 = vunpack.c.0.s8 %v1374
    %v1376 = vlaneseq
    %v1377 = vshrl.u32 %v1376, 7
    %v1378 = vsub.s32 %v1375, %v1377
    %v1379 = vrot.slane %v745, %v1378
    %v1381 = vunpack.c.l.s4 1414812756
    %v1382 = vunpack.c.0.s8 %v1381
    %v1383 = vlaneseq
    %v1384 = vshrl.u32 %v1383, 7
    %v1385 = vsub.s32 %v1382, %v1384
    %v1386 = vrot.slane %v745, %v1385
    %v1388 = vunpack.c.l.s4 1987475062
    %v1389 = vunpack.c.0.s8 %v1388
    %v1390 = vlaneseq
    %v1391 = vshrl.u32 %v1390, 7
    %v1392 = vsub.s32 %v1389, %v1391
    %v1393 = vrot.slane %v745, %v1392
    %v1395 = vunpack.c.l.s4 269488144
    %v1396 = vunpack.c.0.s8 %v1395
    %v1397 = vlaneseq
    %v1398 = vshrl.u32 %v1397, 7
    %v1399 = vsub.s32 %v1396, %v1398
    %v1400 = vrot.slane %v749, %v1399
    %v1402 = vunpack.c.l.s4 842150450
    %v1403 = vunpack.c.0.s8 %v1402
    %v1404 = vlaneseq
    %v1405 = vshrl.u32 %v1404, 7
    %v1406 = vsub.s32 %v1403, %v1405
    %v1407 = vrot.slane %v749, %v1406
    %v1409 = vunpack.c.l.s4 1414812756
    %v1410 = vunpack.c.0.s8 %v1409
    %v1411 = vlaneseq
    %v1412 = vshrl.u32 %v1411, 7
    %v1413 = vsub.s32 %v1410, %v1412
    %v1414 = vrot.slane %v749, %v1413
    %v1416 = vunpack.c.l.s4 1987475062
    %v1417 = vunpack.c.0.s8 %v1416
    %v1418 = vlaneseq
    %v1419 = vshrl.u32 %v1418, 7
    %v1420 = vsub.s32 %v1417, %v1419
    %v1421 = vrot.slane %v749, %v1420
    %v1423 = vunpack.c.l.s4 269488144
    %v1424 = vunpack.c.0.s8 %v1423
    %v1425 = vlaneseq
    %v1426 = vshrl.u32 %v1425, 7
    %v1427 = vsub.s32 %v1424, %v1426
    %v1428 = vrot.slane %v753, %v1427
    %v1430 = vunpack.c.l.s4 842150450
    %v1431 = vunpack.c.0.s8 %v1430
    %v1432 = vlaneseq
    %v1433 = vshrl.u32 %v1432, 7
    %v1434 = vsub.s32 %v1431, %v1433
    %v1435 = vrot.slane %v753, %v1434
    %v1437 = vunpack.c.l.s4 1414812756
    %v1438 = vunpack.c.0.s8 %v1437
    %v1439 = vlaneseq
    %v1440 = vshrl.u32 %v1439, 7
    %v1441 = vsub.s32 %v1438, %v1440
    %v1442 = vrot.slane %v753, %v1441
    %v1444 = vunpack.c.l.s4 1987475062
    %v1445 = vunpack.c.0.s8 %v1444
    %v1446 = vlaneseq
    %v1447 = vshrl.u32 %v1446, 7
    %v1448 = vsub.s32 %v1445, %v1447
    %v1449 = vrot.slane %v753, %v1448
    %v1451 = vunpack.c.l.s4 269488144
    %v1452 = vunpack.c.0.s8 %v1451
    %v1453 = vlaneseq
    %v1454 = vshrl.u32 %v1453, 7
    %v1455 = vsub.s32 %v1452, %v1454
    %v1456 = vrot.slane %v757, %v1455
    %v1458 = vunpack.c.l.s4 842150450
    %v1459 = vunpack.c.0.s8 %v1458
    %v1460 = vlaneseq
    %v1461 = vshrl.u32 %v1460, 7
    %v1462 = vsub.s32 %v1459, %v1461
    %v1463 = vrot.slane %v757, %v1462
    %v1465 = vunpack.c.l.s4 1414812756
    %v1466 = vunpack.c.0.s8 %v1465
    %v1467 = vlaneseq
    %v1468 = vshrl.u32 %v1467, 7
    %v1469 = vsub.s32 %v1466, %v1468
    %v1470 = vrot.slane %v757, %v1469
    %v1472 = vunpack.c.l.s4 1987475062
    %v1473 = vunpack.c.0.s8 %v1472
    %v1474 = vlaneseq
    %v1475 = vshrl.u32 %v1474, 7
    %v1476 = vsub.s32 %v1473, %v1475
    %v1477 = vrot.slane %v757, %v1476
    %v1479 = vunpack.c.l.s4 269488144
    %v1480 = vunpack.c.0.s8 %v1479
    %v1481 = vlaneseq
    %v1482 = vshrl.u32 %v1481, 7
    %v1483 = vsub.s32 %v1480, %v1482
    %v1484 = vrot.slane %v761, %v1483
    %v1486 = vunpack.c.l.s4 842150450
    %v1487 = vunpack.c.0.s8 %v1486
    %v1488 = vlaneseq
    %v1489 = vshrl.u32 %v1488, 7
    %v1490 = vsub.s32 %v1487, %v1489
    %v1491 = vrot.slane %v761, %v1490
    %v1493 = vunpack.c.l.s4 1414812756
    %v1494 = vunpack.c.0.s8 %v1493
    %v1495 = vlaneseq
    %v1496 = vshrl.u32 %v1495, 7
    %v1497 = vsub.s32 %v1494, %v1496
    %v1498 = vrot.slane %v761, %v1497
    %v1500 = vunpack.c.l.s4 1987475062
    %v1501 = vunpack.c.0.s8 %v1500
    %v1502 = vlaneseq
    %v1503 = vshrl.u32 %v1502, 7
    %v1504 = vsub.s32 %v1501, %v1503
    %v1505 = vrot.slane %v761, %v1504
    %v1507 = vunpack.c.l.s4 269488144
    %v1508 = vunpack.c.0.s8 %v1507
    %v1509 = vlaneseq
    %v1510 = vshrl.u32 %v1509, 7
    %v1511 = vsub.s32 %v1508, %v1510
    %v1512 = vrot.slane %v765, %v1511
    %v1514 = vunpack.c.l.s4 842150450
    %v1515 = vunpack.c.0.s8 %v1514
    %v1516 = vlaneseq
    %v1517 = vshrl.u32 %v1516, 7
    %v1518 = vsub.s32 %v1515, %v1517
    %v1519 = vrot.slane %v765, %v1518
    %v1521 = vunpack.c.l.s4 1414812756
    %v1522 = vunpack.c.0.s8 %v1521
    %v1523 = vlaneseq
    %v1524 = vshrl.u32 %v1523, 7
    %v1525 = vsub.s32 %v1522, %v1524
    %v1526 = vrot.slane %v765, %v1525
    %v1528 = vunpack.c.l.s4 1987475062
    %v1529 = vunpack.c.0.s8 %v1528
    %v1530 = vlaneseq
    %v1531 = vshrl.u32 %v1530, 7
    %v1532 = vsub.s32 %v1529, %v1531
    %v1533 = vrot.slane %v765, %v1532
    %v1535 = vunpack.c.l.s4 269488144
    %v1536 = vunpack.c.0.s8 %v1535
    %v1537 = vlaneseq
    %v1538 = vshrl.u32 %v1537, 7
    %v1539 = vsub.s32 %v1536, %v1538
    %v1540 = vrot.slane %v769, %v1539
    %v1542 = vunpack.c.l.s4 842150450
    %v1543 = vunpack.c.0.s8 %v1542
    %v1544 = vlaneseq
    %v1545 = vshrl.u32 %v1544, 7
    %v1546 = vsub.s32 %v1543, %v1545
    %v1547 = vrot.slane %v769, %v1546
    %v1549 = vunpack.c.l.s4 1414812756
    %v1550 = vunpack.c.0.s8 %v1549
    %v1551 = vlaneseq
    %v1552 = vshrl.u32 %v1551, 7
    %v1553 = vsub.s32 %v1550, %v1552
    %v1554 = vrot.slane %v769, %v1553
    %v1556 = vunpack.c.l.s4 1987475062
    %v1557 = vunpack.c.0.s8 %v1556
    %v1558 = vlaneseq
    %v1559 = vshrl.u32 %v1558, 7
    %v1560 = vsub.s32 %v1557, %v1559
    %v1561 = vrot.slane %v769, %v1560
    %v1563 = vunpack.c.l.s4 269488144
    %v1564 = vunpack.c.0.s8 %v1563
    %v1565 = vlaneseq
    %v1566 = vshrl.u32 %v1565, 7
    %v1567 = vsub.s32 %v1564, %v1566
    %v1568 = vrot.slane %v773, %v1567
    %v1570 = vunpack.c.l.s4 842150450
    %v1571 = vunpack.c.0.s8 %v1570
    %v1572 = vlaneseq
    %v1573 = vshrl.u32 %v1572, 7
    %v1574 = vsub.s32 %v1571, %v1573
    %v1575 = vrot.slane %v773, %v1574
    %v1577 = vunpack.c.l.s4 1414812756
    %v1578 = vunpack.c.0.s8 %v1577
    %v1579 = vlaneseq
    %v1580 = vshrl.u32 %v1579, 7
    %v1581 = vsub.s32 %v1578, %v1580
    %v1582 = vrot.slane %v773, %v1581
    %v1584 = vunpack.c.l.s4 1987475062
    %v1585 = vunpack.c.0.s8 %v1584
    %v1586 = vlaneseq
    %v1587 = vshrl.u32 %v1586, 7
    %v1588 = vsub.s32 %v1585, %v1587
    %v1589 = vrot.slane %v773, %v1588
    %v1591 = vunpack.c.l.s4 269488144
    %v1592 = vunpack.c.0.s8 %v1591
    %v1593 = vlaneseq
    %v1594 = vshrl.u32 %v1593, 7
    %v1595 = vsub.s32 %v1592, %v1594
    %v1596 = vrot.slane %v777, %v1595
    %v1598 = vunpack.c.l.s4 842150450
    %v1599 = vunpack.c.0.s8 %v1598
    %v1600 = vlaneseq
    %v1601 = vshrl.u32 %v1600, 7
    %v1602 = vsub.s32 %v1599, %v1601
    %v1603 = vrot.slane %v777, %v1602
    %v1605 = vunpack.c.l.s4 1414812756
    %v1606 = vunpack.c.0.s8 %v1605
    %v1607 = vlaneseq
    %v1608 = vshrl.u32 %v1607, 7
    %v1609 = vsub.s32 %v1606, %v1608
    %v1610 = vrot.slane %v777, %v1609
    %v1612 = vunpack.c.l.s4 1987475062
    %v1613 = vunpack.c.0.s8 %v1612
    %v1614 = vlaneseq
    %v1615 = vshrl.u32 %v1614, 7
    %v1616 = vsub.s32 %v1613, %v1615
    %v1617 = vrot.slane %v777, %v1616
    %v1619 = vunpack.c.l.s4 269488144
    %v1620 = vunpack.c.0.s8 %v1619
    %v1621 = vlaneseq
    %v1622 = vshrl.u32 %v1621, 7
    %v1623 = vsub.s32 %v1620, %v1622
    %v1624 = vrot.slane %v781, %v1623
    %v1626 = vunpack.c.l.s4 842150450
    %v1627 = vunpack.c.0.s8 %v1626
    %v1628 = vlaneseq
    %v1629 = vshrl.u32 %v1628, 7
    %v1630 = vsub.s32 %v1627, %v1629
    %v1631 = vrot.slane %v781, %v1630
    %v1633 = vunpack.c.l.s4 1414812756
    %v1634 = vunpack.c.0.s8 %v1633
    %v1635 = vlaneseq
    %v1636 = vshrl.u32 %v1635, 7
    %v1637 = vsub.s32 %v1634, %v1636
    %v1638 = vrot.slane %v781, %v1637
    %v1640 = vunpack.c.l.s4 1987475062
    %v1641 = vunpack.c.0.s8 %v1640
    %v1642 = vlaneseq
    %v1643 = vshrl.u32 %v1642, 7
    %v1644 = vsub.s32 %v1641, %v1643
    %v1645 = vrot.slane %v781, %v1644
    %v1647 = vunpack.c.l.s4 269488144
    %v1648 = vunpack.c.0.s8 %v1647
    %v1649 = vlaneseq
    %v1650 = vshrl.u32 %v1649, 7
    %v1651 = vsub.s32 %v1648, %v1650
    %v1652 = vrot.slane %v785, %v1651
    %v1654 = vunpack.c.l.s4 842150450
    %v1655 = vunpack.c.0.s8 %v1654
    %v1656 = vlaneseq
    %v1657 = vshrl.u32 %v1656, 7
    %v1658 = vsub.s32 %v1655, %v1657
    %v1659 = vrot.slane %v785, %v1658
    %v1661 = vunpack.c.l.s4 1414812756
    %v1662 = vunpack.c.0.s8 %v1661
    %v1663 = vlaneseq
    %v1664 = vshrl.u32 %v1663, 7
    %v1665 = vsub.s32 %v1662, %v1664
    %v1666 = vrot.slane %v785, %v1665
    %v1668 = vunpack.c.l.s4 1987475062
    %v1669 = vunpack.c.0.s8 %v1668
    %v1670 = vlaneseq
    %v1671 = vshrl.u32 %v1670, 7
    %v1672 = vsub.s32 %v1669, %v1671
    %v1673 = vrot.slane %v785, %v1672
    %v1675 = vunpack.c.l.s4 269488144
    %v1676 = vunpack.c.0.s8 %v1675
    %v1677 = vlaneseq
    %v1678 = vshrl.u32 %v1677, 7
    %v1679 = vsub.s32 %v1676, %v1678
    %v1680 = vrot.slane %v789, %v1679
    %v1682 = vunpack.c.l.s4 842150450
    %v1683 = vunpack.c.0.s8 %v1682
    %v1684 = vlaneseq
    %v1685 = vshrl.u32 %v1684, 7
    %v1686 = vsub.s32 %v1683, %v1685
    %v1687 = vrot.slane %v789, %v1686
    %v1689 = vunpack.c.l.s4 1414812756
    %v1690 = vunpack.c.0.s8 %v1689
    %v1691 = vlaneseq
    %v1692 = vshrl.u32 %v1691, 7
    %v1693 = vsub.s32 %v1690, %v1692
    %v1694 = vrot.slane %v789, %v1693
    %v1696 = vunpack.c.l.s4 1987475062
    %v1697 = vunpack.c.0.s8 %v1696
    %v1698 = vlaneseq
    %v1699 = vshrl.u32 %v1698, 7
    %v1700 = vsub.s32 %v1697, %v1699
    %v1701 = vrot.slane %v789, %v1700
    %v1703 = vunpack.c.l.s4 269488144
    %v1704 = vunpack.c.0.s8 %v1703
    %v1705 = vlaneseq
    %v1706 = vshrl.u32 %v1705, 7
    %v1707 = vsub.s32 %v1704, %v1706
    %v1708 = vrot.slane %v793, %v1707
    %v1710 = vunpack.c.l.s4 842150450
    %v1711 = vunpack.c.0.s8 %v1710
    %v1712 = vlaneseq
    %v1713 = vshrl.u32 %v1712, 7
    %v1714 = vsub.s32 %v1711, %v1713
    %v1715 = vrot.slane %v793, %v1714
    %v1717 = vunpack.c.l.s4 1414812756
    %v1718 = vunpack.c.0.s8 %v1717
    %v1719 = vlaneseq
    %v1720 = vshrl.u32 %v1719, 7
    %v1721 = vsub.s32 %v1718, %v1720
    %v1722 = vrot.slane %v793, %v1721
    %v1724 = vunpack.c.l.s4 1987475062
    %v1725 = vunpack.c.0.s8 %v1724
    %v1726 = vlaneseq
    %v1727 = vshrl.u32 %v1726, 7
    %v1728 = vsub.s32 %v1725, %v1727
    %v1729 = vrot.slane %v793, %v1728
    %v1731 = vunpack.c.l.s4 269488144
    %v1732 = vunpack.c.0.s8 %v1731
    %v1733 = vlaneseq
    %v1734 = vshrl.u32 %v1733, 7
    %v1735 = vsub.s32 %v1732, %v1734
    %v1736 = vrot.slane %v797, %v1735
    %v1738 = vunpack.c.l.s4 842150450
    %v1739 = vunpack.c.0.s8 %v1738
    %v1740 = vlaneseq
    %v1741 = vshrl.u32 %v1740, 7
    %v1742 = vsub.s32 %v1739, %v1741
    %v1743 = vrot.slane %v797, %v1742
    %v1745 = vunpack.c.l.s4 1414812756
    %v1746 = vunpack.c.0.s8 %v1745
    %v1747 = vlaneseq
    %v1748 = vshrl.u32 %v1747, 7
    %v1749 = vsub.s32 %v1746, %v1748
    %v1750 = vrot.slane %v797, %v1749
    %v1752 = vunpack.c.l.s4 1987475062
    %v1753 = vunpack.c.0.s8 %v1752
    %v1754 = vlaneseq
    %v1755 = vshrl.u32 %v1754, 7
    %v1756 = vsub.s32 %v1753, %v1755
    %v1757 = vrot.slane %v797, %v1756
    %v1759 = vunpack.c.l.s4 269488144
    %v1760 = vunpack.c.0.s8 %v1759
    %v1761 = vlaneseq
    %v1762 = vshrl.u32 %v1761, 7
    %v1763 = vsub.s32 %v1760, %v1762
    %v1764 = vrot.slane %v801, %v1763
    %v1766 = vunpack.c.l.s4 842150450
    %v1767 = vunpack.c.0.s8 %v1766
    %v1768 = vlaneseq
    %v1769 = vshrl.u32 %v1768, 7
    %v1770 = vsub.s32 %v1767, %v1769
    %v1771 = vrot.slane %v801, %v1770
    %v1773 = vunpack.c.l.s4 1414812756
    %v1774 = vunpack.c.0.s8 %v1773
    %v1775 = vlaneseq
    %v1776 = vshrl.u32 %v1775, 7
    %v1777 = vsub.s32 %v1774, %v1776
    %v1778 = vrot.slane %v801, %v1777
    %v1780 = vunpack.c.l.s4 1987475062
    %v1781 = vunpack.c.0.s8 %v1780
    %v1782 = vlaneseq
    %v1783 = vshrl.u32 %v1782, 7
    %v1784 = vsub.s32 %v1781, %v1783
    %v1785 = vrot.slane %v801, %v1784
    %v1787 = vunpack.c.l.s4 269488144
    %v1788 = vunpack.c.0.s8 %v1787
    %v1789 = vlaneseq
    %v1790 = vshrl.u32 %v1789, 7
    %v1791 = vsub.s32 %v1788, %v1790
    %v1792 = vrot.slane %v805, %v1791
    %v1794 = vunpack.c.l.s4 842150450
    %v1795 = vunpack.c.0.s8 %v1794
    %v1796 = vlaneseq
    %v1797 = vshrl.u32 %v1796, 7
    %v1798 = vsub.s32 %v1795, %v1797
    %v1799 = vrot.slane %v805, %v1798
    %v1801 = vunpack.c.l.s4 1414812756
    %v1802 = vunpack.c.0.s8 %v1801
    %v1803 = vlaneseq
    %v1804 = vshrl.u32 %v1803, 7
    %v1805 = vsub.s32 %v1802, %v1804
    %v1806 = vrot.slane %v805, %v1805
    %v1808 = vunpack.c.l.s4 1987475062
    %v1809 = vunpack.c.0.s8 %v1808
    %v1810 = vlaneseq
    %v1811 = vshrl.u32 %v1810, 7
    %v1812 = vsub.s32 %v1809, %v1811
    %v1813 = vrot.slane %v805, %v1812
    %v1815 = vunpack.c.l.s4 269488144
    %v1816 = vunpack.c.0.s8 %v1815
    %v1817 = vlaneseq
    %v1818 = vshrl.u32 %v1817, 7
    %v1819 = vsub.s32 %v1816, %v1818
    %v1820 = vrot.slane %v809, %v1819
    %v1822 = vunpack.c.l.s4 842150450
    %v1823 = vunpack.c.0.s8 %v1822
    %v1824 = vlaneseq
    %v1825 = vshrl.u32 %v1824, 7
    %v1826 = vsub.s32 %v1823, %v1825
    %v1827 = vrot.slane %v809, %v1826
    %v1829 = vunpack.c.l.s4 1414812756
    %v1830 = vunpack.c.0.s8 %v1829
    %v1831 = vlaneseq
    %v1832 = vshrl.u32 %v1831, 7
    %v1833 = vsub.s32 %v1830, %v1832
    %v1834 = vrot.slane %v809, %v1833
    %v1836 = vunpack.c.l.s4 1987475062
    %v1837 = vunpack.c.0.s8 %v1836
    %v1838 = vlaneseq
    %v1839 = vshrl.u32 %v1838, 7
    %v1840 = vsub.s32 %v1837, %v1839
    %v1841 = vrot.slane %v809, %v1840
    %v1843 = vunpack.c.l.s4 269488144
    %v1844 = vunpack.c.0.s8 %v1843
    %v1845 = vlaneseq
    %v1846 = vshrl.u32 %v1845, 7
    %v1847 = vsub.s32 %v1844, %v1846
    %v1848 = vrot.slane %v813, %v1847
    %v1850 = vunpack.c.l.s4 842150450
    %v1851 = vunpack.c.0.s8 %v1850
    %v1852 = vlaneseq
    %v1853 = vshrl.u32 %v1852, 7
    %v1854 = vsub.s32 %v1851, %v1853
    %v1855 = vrot.slane %v813, %v1854
    %v1857 = vunpack.c.l.s4 1414812756
    %v1858 = vunpack.c.0.s8 %v1857
    %v1859 = vlaneseq
    %v1860 = vshrl.u32 %v1859, 7
    %v1861 = vsub.s32 %v1858, %v1860
    %v1862 = vrot.slane %v813, %v1861
    %v1864 = vunpack.c.l.s4 1987475062
    %v1865 = vunpack.c.0.s8 %v1864
    %v1866 = vlaneseq
    %v1867 = vshrl.u32 %v1866, 7
    %v1868 = vsub.s32 %v1865, %v1867
    %v1869 = vrot.slane %v813, %v1868
    %v1871 = vunpack.c.l.s4 269488144
    %v1872 = vunpack.c.0.s8 %v1871
    %v1873 = vlaneseq
    %v1874 = vshrl.u32 %v1873, 7
    %v1875 = vsub.s32 %v1872, %v1874
    %v1876 = vrot.slane %v817, %v1875
    %v1878 = vunpack.c.l.s4 842150450
    %v1879 = vunpack.c.0.s8 %v1878
    %v1880 = vlaneseq
    %v1881 = vshrl.u32 %v1880, 7
    %v1882 = vsub.s32 %v1879, %v1881
    %v1883 = vrot.slane %v817, %v1882
    %v1885 = vunpack.c.l.s4 1414812756
    %v1886 = vunpack.c.0.s8 %v1885
    %v1887 = vlaneseq
    %v1888 = vshrl.u32 %v1887, 7
    %v1889 = vsub.s32 %v1886, %v1888
    %v1890 = vrot.slane %v817, %v1889
    %v1892 = vunpack.c.l.s4 1987475062
    %v1893 = vunpack.c.0.s8 %v1892
    %v1894 = vlaneseq
    %v1895 = vshrl.u32 %v1894, 7
    %v1896 = vsub.s32 %v1893, %v1895
    %v1897 = vrot.slane %v817, %v1896
    %v1899 = vunpack.c.l.s4 269488144
    %v1900 = vunpack.c.0.s8 %v1899
    %v1901 = vlaneseq
    %v1902 = vshrl.u32 %v1901, 7
    %v1903 = vsub.s32 %v1900, %v1902
    %v1904 = vrot.slane %v821, %v1903
    %v1906 = vunpack.c.l.s4 842150450
    %v1907 = vunpack.c.0.s8 %v1906
    %v1908 = vlaneseq
    %v1909 = vshrl.u32 %v1908, 7
    %v1910 = vsub.s32 %v1907, %v1909
    %v1911 = vrot.slane %v821, %v1910
    %v1913 = vunpack.c.l.s4 1414812756
    %v1914 = vunpack.c.0.s8 %v1913
    %v1915 = vlaneseq
    %v1916 = vshrl.u32 %v1915, 7
    %v1917 = vsub.s32 %v1914, %v1916
    %v1918 = vrot.slane %v821, %v1917
    %v1920 = vunpack.c.l.s4 1987475062
    %v1921 = vunpack.c.0.s8 %v1920
    %v1922 = vlaneseq
    %v1923 = vshrl.u32 %v1922, 7
    %v1924 = vsub.s32 %v1921, %v1923
    %v1925 = vrot.slane %v821, %v1924
    %v1927 = vunpack.c.l.s4 269488144
    %v1928 = vunpack.c.0.s8 %v1927
    %v1929 = vlaneseq
    %v1930 = vshrl.u32 %v1929, 7
    %v1931 = vsub.s32 %v1928, %v1930
    %v1932 = vrot.slane %v825, %v1931
    %v1934 = vunpack.c.l.s4 842150450
    %v1935 = vunpack.c.0.s8 %v1934
    %v1936 = vlaneseq
    %v1937 = vshrl.u32 %v1936, 7
    %v1938 = vsub.s32 %v1935, %v1937
    %v1939 = vrot.slane %v825, %v1938
    %v1941 = vunpack.c.l.s4 1414812756
    %v1942 = vunpack.c.0.s8 %v1941
    %v1943 = vlaneseq
    %v1944 = vshrl.u32 %v1943, 7
    %v1945 = vsub.s32 %v1942, %v1944
    %v1946 = vrot.slane %v825, %v1945
    %v1948 = vunpack.c.l.s4 1987475062
    %v1949 = vunpack.c.0.s8 %v1948
    %v1950 = vlaneseq
    %v1951 = vshrl.u32 %v1950, 7
    %v1952 = vsub.s32 %v1949, %v1951
    %v1953 = vrot.slane %v825, %v1952
    %v1955 = vunpack.c.l.s4 269488144
    %v1956 = vunpack.c.0.s8 %v1955
    %v1957 = vlaneseq
    %v1958 = vshrl.u32 %v1957, 7
    %v1959 = vsub.s32 %v1956, %v1958
    %v1960 = vrot.slane %v829, %v1959
    %v1962 = vunpack.c.l.s4 842150450
    %v1963 = vunpack.c.0.s8 %v1962
    %v1964 = vlaneseq
    %v1965 = vshrl.u32 %v1964, 7
    %v1966 = vsub.s32 %v1963, %v1965
    %v1967 = vrot.slane %v829, %v1966
    %v1969 = vunpack.c.l.s4 1414812756
    %v1970 = vunpack.c.0.s8 %v1969
    %v1971 = vlaneseq
    %v1972 = vshrl.u32 %v1971, 7
    %v1973 = vsub.s32 %v1970, %v1972
    %v1974 = vrot.slane %v829, %v1973
    %v1976 = vunpack.c.l.s4 1987475062
    %v1977 = vunpack.c.0.s8 %v1976
    %v1978 = vlaneseq
    %v1979 = vshrl.u32 %v1978, 7
    %v1980 = vsub.s32 %v1977, %v1979
    %v1981 = vrot.slane %v829, %v1980
    %v1983 = vunpack.c.l.s4 269488144
    %v1984 = vunpack.c.0.s8 %v1983
    %v1985 = vlaneseq
    %v1986 = vshrl.u32 %v1985, 7
    %v1987 = vsub.s32 %v1984, %v1986
    %v1988 = vrot.slane %v833, %v1987
    %v1990 = vunpack.c.l.s4 842150450
    %v1991 = vunpack.c.0.s8 %v1990
    %v1992 = vlaneseq
    %v1993 = vshrl.u32 %v1992, 7
    %v1994 = vsub.s32 %v1991, %v1993
    %v1995 = vrot.slane %v833, %v1994
    %v1997 = vunpack.c.l.s4 1414812756
    %v1998 = vunpack.c.0.s8 %v1997
    %v1999 = vlaneseq
    %v2000 = vshrl.u32 %v1999, 7
    %v2001 = vsub.s32 %v1998, %v2000
    %v2002 = vrot.slane %v833, %v2001
    %v2004 = vunpack.c.l.s4 1987475062
    %v2005 = vunpack.c.0.s8 %v2004
    %v2006 = vlaneseq
    %v2007 = vshrl.u32 %v2006, 7
    %v2008 = vsub.s32 %v2005, %v2007
    %v2009 = vrot.slane %v833, %v2008
    %v2011 = vunpack.c.l.s4 269488144
    %v2012 = vunpack.c.0.s8 %v2011
    %v2013 = vlaneseq
    %v2014 = vshrl.u32 %v2013, 7
    %v2015 = vsub.s32 %v2012, %v2014
    %v2016 = vrot.slane %v837, %v2015
    %v2018 = vunpack.c.l.s4 842150450
    %v2019 = vunpack.c.0.s8 %v2018
    %v2020 = vlaneseq
    %v2021 = vshrl.u32 %v2020, 7
    %v2022 = vsub.s32 %v2019, %v2021
    %v2023 = vrot.slane %v837, %v2022
    %v2025 = vunpack.c.l.s4 1414812756
    %v2026 = vunpack.c.0.s8 %v2025
    %v2027 = vlaneseq
    %v2028 = vshrl.u32 %v2027, 7
    %v2029 = vsub.s32 %v2026, %v2028
    %v2030 = vrot.slane %v837, %v2029
    %v2032 = vunpack.c.l.s4 1987475062
    %v2033 = vunpack.c.0.s8 %v2032
    %v2034 = vlaneseq
    %v2035 = vshrl.u32 %v2034, 7
    %v2036 = vsub.s32 %v2033, %v2035
    %v2037 = vrot.slane %v837, %v2036
    %v2039 = vunpack.c.l.s4 269488144
    %v2040 = vunpack.c.0.s8 %v2039
    %v2041 = vlaneseq
    %v2042 = vshrl.u32 %v2041, 7
    %v2043 = vsub.s32 %v2040, %v2042
    %v2044 = vrot.slane %v841, %v2043
    %v2046 = vunpack.c.l.s4 842150450
    %v2047 = vunpack.c.0.s8 %v2046
    %v2048 = vlaneseq
    %v2049 = vshrl.u32 %v2048, 7
    %v2050 = vsub.s32 %v2047, %v2049
    %v2051 = vrot.slane %v841, %v2050
    %v2053 = vunpack.c.l.s4 1414812756
    %v2054 = vunpack.c.0.s8 %v2053
    %v2055 = vlaneseq
    %v2056 = vshrl.u32 %v2055, 7
    %v2057 = vsub.s32 %v2054, %v2056
    %v2058 = vrot.slane %v841, %v2057
    %v2060 = vunpack.c.l.s4 1987475062
    %v2061 = vunpack.c.0.s8 %v2060
    %v2062 = vlaneseq
    %v2063 = vshrl.u32 %v2062, 7
    %v2064 = vsub.s32 %v2061, %v2063
    %v2065 = vrot.slane %v841, %v2064
    %v2067 = vunpack.c.l.s4 269488144
    %v2068 = vunpack.c.0.s8 %v2067
    %v2069 = vlaneseq
    %v2070 = vshrl.u32 %v2069, 7
    %v2071 = vsub.s32 %v2068, %v2070
    %v2072 = vrot.slane %v845, %v2071
    %v2074 = vunpack.c.l.s4 842150450
    %v2075 = vunpack.c.0.s8 %v2074
    %v2076 = vlaneseq
    %v2077 = vshrl.u32 %v2076, 7
    %v2078 = vsub.s32 %v2075, %v2077
    %v2079 = vrot.slane %v845, %v2078
    %v2081 = vunpack.c.l.s4 1414812756
    %v2082 = vunpack.c.0.s8 %v2081
    %v2083 = vlaneseq
    %v2084 = vshrl.u32 %v2083, 7
    %v2085 = vsub.s32 %v2082, %v2084
    %v2086 = vrot.slane %v845, %v2085
    %v2088 = vunpack.c.l.s4 1987475062
    %v2089 = vunpack.c.0.s8 %v2088
    %v2090 = vlaneseq
    %v2091 = vshrl.u32 %v2090, 7
    %v2092 = vsub.s32 %v2089, %v2091
    %v2093 = vrot.slane %v845, %v2092
    %v2095 = vunpack.c.l.s4 269488144
    %v2096 = vunpack.c.0.s8 %v2095
    %v2097 = vlaneseq
    %v2098 = vshrl.u32 %v2097, 7
    %v2099 = vsub.s32 %v2096, %v2098
    %v2100 = vrot.slane %v849, %v2099
    %v2102 = vunpack.c.l.s4 842150450
    %v2103 = vunpack.c.0.s8 %v2102
    %v2104 = vlaneseq
    %v2105 = vshrl.u32 %v2104, 7
    %v2106 = vsub.s32 %v2103, %v2105
    %v2107 = vrot.slane %v849, %v2106
    %v2109 = vunpack.c.l.s4 1414812756
    %v2110 = vunpack.c.0.s8 %v2109
    %v2111 = vlaneseq
    %v2112 = vshrl.u32 %v2111, 7
    %v2113 = vsub.s32 %v2110, %v2112
    %v2114 = vrot.slane %v849, %v2113
    %v2116 = vunpack.c.l.s4 1987475062
    %v2117 = vunpack.c.0.s8 %v2116
    %v2118 = vlaneseq
    %v2119 = vshrl.u32 %v2118, 7
    %v2120 = vsub.s32 %v2117, %v2119
    %v2121 = vrot.slane %v849, %v2120
    %v2123 = vunpack.c.l.s4 269488144
    %v2124 = vunpack.c.0.s8 %v2123
    %v2125 = vlaneseq
    %v2126 = vshrl.u32 %v2125, 7
    %v2127 = vsub.s32 %v2124, %v2126
    %v2128 = vrot.slane %v853, %v2127
    %v2130 = vunpack.c.l.s4 842150450
    %v2131 = vunpack.c.0.s8 %v2130
    %v2132 = vlaneseq
    %v2133 = vshrl.u32 %v2132, 7
    %v2134 = vsub.s32 %v2131, %v2133
    %v2135 = vrot.slane %v853, %v2134
    %v2137 = vunpack.c.l.s4 1414812756
    %v2138 = vunpack.c.0.s8 %v2137
    %v2139 = vlaneseq
    %v2140 = vshrl.u32 %v2139, 7
    %v2141 = vsub.s32 %v2138, %v2140
    %v2142 = vrot.slane %v853, %v2141
    %v2144 = vunpack.c.l.s4 1987475062
    %v2145 = vunpack.c.0.s8 %v2144
    %v2146 = vlaneseq
    %v2147 = vshrl.u32 %v2146, 7
    %v2148 = vsub.s32 %v2145, %v2147
    %v2149 = vrot.slane %v853, %v2148
    %v2151 = vunpack.c.l.s4 269488144
    %v2152 = vunpack.c.0.s8 %v2151
    %v2153 = vlaneseq
    %v2154 = vshrl.u32 %v2153, 7
    %v2155 = vsub.s32 %v2152, %v2154
    %v2156 = vrot.slane %v857, %v2155
    %v2158 = vunpack.c.l.s4 842150450
    %v2159 = vunpack.c.0.s8 %v2158
    %v2160 = vlaneseq
    %v2161 = vshrl.u32 %v2160, 7
    %v2162 = vsub.s32 %v2159, %v2161
    %v2163 = vrot.slane %v857, %v2162
    %v2165 = vunpack.c.l.s4 1414812756
    %v2166 = vunpack.c.0.s8 %v2165
    %v2167 = vlaneseq
    %v2168 = vshrl.u32 %v2167, 7
    %v2169 = vsub.s32 %v2166, %v2168
    %v2170 = vrot.slane %v857, %v2169
    %v2172 = vunpack.c.l.s4 1987475062
    %v2173 = vunpack.c.0.s8 %v2172
    %v2174 = vlaneseq
    %v2175 = vshrl.u32 %v2174, 7
    %v2176 = vsub.s32 %v2173, %v2175
    %v2177 = vrot.slane %v857, %v2176
    %v2179 = vunpack.c.l.s4 269488144
    %v2180 = vunpack.c.0.s8 %v2179
    %v2181 = vlaneseq
    %v2182 = vshrl.u32 %v2181, 7
    %v2183 = vsub.s32 %v2180, %v2182
    %v2184 = vrot.slane %v861, %v2183
    %v2186 = vunpack.c.l.s4 842150450
    %v2187 = vunpack.c.0.s8 %v2186
    %v2188 = vlaneseq
    %v2189 = vshrl.u32 %v2188, 7
    %v2190 = vsub.s32 %v2187, %v2189
    %v2191 = vrot.slane %v861, %v2190
    %v2193 = vunpack.c.l.s4 1414812756
    %v2194 = vunpack.c.0.s8 %v2193
    %v2195 = vlaneseq
    %v2196 = vshrl.u32 %v2195, 7
    %v2197 = vsub.s32 %v2194, %v2196
    %v2198 = vrot.slane %v861, %v2197
    %v2200 = vunpack.c.l.s4 1987475062
    %v2201 = vunpack.c.0.s8 %v2200
    %v2202 = vlaneseq
    %v2203 = vshrl.u32 %v2202, 7
    %v2204 = vsub.s32 %v2201, %v2203
    %v2205 = vrot.slane %v861, %v2204
    %v2207 = vunpack.c.l.s4 269488144
    %v2208 = vunpack.c.0.s8 %v2207
    %v2209 = vlaneseq
    %v2210 = vshrl.u32 %v2209, 7
    %v2211 = vsub.s32 %v2208, %v2210
    %v2212 = vrot.slane %v865, %v2211
    %v2214 = vunpack.c.l.s4 842150450
    %v2215 = vunpack.c.0.s8 %v2214
    %v2216 = vlaneseq
    %v2217 = vshrl.u32 %v2216, 7
    %v2218 = vsub.s32 %v2215, %v2217
    %v2219 = vrot.slane %v865, %v2218
    %v2221 = vunpack.c.l.s4 1414812756
    %v2222 = vunpack.c.0.s8 %v2221
    %v2223 = vlaneseq
    %v2224 = vshrl.u32 %v2223, 7
    %v2225 = vsub.s32 %v2222, %v2224
    %v2226 = vrot.slane %v865, %v2225
    %v2228 = vunpack.c.l.s4 1987475062
    %v2229 = vunpack.c.0.s8 %v2228
    %v2230 = vlaneseq
    %v2231 = vshrl.u32 %v2230, 7
    %v2232 = vsub.s32 %v2229, %v2231
    %v2233 = vrot.slane %v865, %v2232
    %v2235 = vunpack.c.l.s4 269488144
    %v2236 = vunpack.c.0.s8 %v2235
    %v2237 = vlaneseq
    %v2238 = vshrl.u32 %v2237, 7
    %v2239 = vsub.s32 %v2236, %v2238
    %v2240 = vrot.slane %v869, %v2239
    %v2242 = vunpack.c.l.s4 842150450
    %v2243 = vunpack.c.0.s8 %v2242
    %v2244 = vlaneseq
    %v2245 = vshrl.u32 %v2244, 7
    %v2246 = vsub.s32 %v2243, %v2245
    %v2247 = vrot.slane %v869, %v2246
    %v2249 = vunpack.c.l.s4 1414812756
    %v2250 = vunpack.c.0.s8 %v2249
    %v2251 = vlaneseq
    %v2252 = vshrl.u32 %v2251, 7
    %v2253 = vsub.s32 %v2250, %v2252
    %v2254 = vrot.slane %v869, %v2253
    %v2256 = vunpack.c.l.s4 1987475062
    %v2257 = vunpack.c.0.s8 %v2256
    %v2258 = vlaneseq
    %v2259 = vshrl.u32 %v2258, 7
    %v2260 = vsub.s32 %v2257, %v2259
    %v2261 = vrot.slane %v869, %v2260
    %v2262 = vcombine.low %v924, %v931
    %v2263 = vcombine.low %v938, %v945
    %v2265 = vunpack.c.l.s4 1983009808
    %v2266 = vunpack.c.0.s8 %v2265
    %v2267 = vlaneseq
    %v2268 = vshrl.u32 %v2267, 7
    %v2269 = vsub.s32 %v2266, %v2268
    %v2270 = vrot.slane %v2262, %v2269
    %v2272 = vunpack.c.l.s4 1983009808
    %v2273 = vunpack.c.0.s8 %v2272
    %v2274 = vlaneseq
    %v2275 = vshrl.u32 %v2274, 7
    %v2276 = vsub.s32 %v2273, %v2275
    %v2277 = vrot.slane %v2263, %v2276
    %v2278 = vcombine.low %v2270, %v2277
    %v2279 = vcombine.low %v952, %v959
    %v2280 = vcombine.low %v966, %v973
    %v2282 = vunpack.c.l.s4 1983009808
    %v2283 = vunpack.c.0.s8 %v2282
    %v2284 = vlaneseq
    %v2285 = vshrl.u32 %v2284, 7
    %v2286 = vsub.s32 %v2283, %v2285
    %v2287 = vrot.slane %v2279, %v2286
    %v2289 = vunpack.c.l.s4 1983009808
    %v2290 = vunpack.c.0.s8 %v2289
    %v2291 = vlaneseq
    %v2292 = vshrl.u32 %v2291, 7
    %v2293 = vsub.s32 %v2290, %v2292
    %v2294 = vrot.slane %v2280, %v2293
    %v2295 = vcombine.low %v2287, %v2294
    %v2296 = vcombine.low %v980, %v987
    %v2297 = vcombine.low %v994, %v1001
    %v2299 = vunpack.c.l.s4 1983009808
    %v2300 = vunpack.c.0.s8 %v2299
    %v2301 = vlaneseq
    %v2302 = vshrl.u32 %v2301, 7
    %v2303 = vsub.s32 %v2300, %v2302
    %v2304 = vrot.slane %v2296, %v2303
    %v2306 = vunpack.c.l.s4 1983009808
    %v2307 = vunpack.c.0.s8 %v2306
    %v2308 = vlaneseq
    %v2309 = vshrl.u32 %v2308, 7
    %v2310 = vsub.s32 %v2307, %v2309
    %v2311 = vrot.slane %v2297, %v2310
    %v2312 = vcombine.low %v2304, %v2311
    %v2313 = vcombine.low %v1008, %v1015
    %v2314 = vcombine.low %v1022, %v1029
    %v2316 = vunpack.c.l.s4 1983009808
    %v2317 = vunpack.c.0.s8 %v2316
    %v2318 = vlaneseq
    %v2319 = vshrl.u32 %v2318, 7
    %v2320 = vsub.s32 %v2317, %v2319
    %v2321 = vrot.slane %v2313, %v2320
    %v2323 = vunpack.c.l.s4 1983009808
    %v2324 = vunpack.c.0.s8 %v2323
    %v2325 = vlaneseq
    %v2326 = vshrl.u32 %v2325, 7
    %v2327 = vsub.s32 %v2324, %v2326
    %v2328 = vrot.slane %v2314, %v2327
    %v2329 = vcombine.low %v2321, %v2328
    %v2330 = vcombine.low %v1036, %v1043
    %v2331 = vcombine.low %v1050, %v1057
    %v2333 = vunpack.c.l.s4 1983009808
    %v2334 = vunpack.c.0.s8 %v2333
    %v2335 = vlaneseq
    %v2336 = vshrl.u32 %v2335, 7
    %v2337 = vsub.s32 %v2334, %v2336
    %v2338 = vrot.slane %v2330, %v2337
    %v2340 = vunpack.c.l.s4 1983009808
    %v2341 = vunpack.c.0.s8 %v2340
    %v2342 = vlaneseq
    %v2343 = vshrl.u32 %v2342, 7
    %v2344 = vsub.s32 %v2341, %v2343
    %v2345 = vrot.slane %v2331, %v2344
    %v2346 = vcombine.low %v2338, %v2345
    %v2347 = vcombine.low %v1064, %v1071
    %v2348 = vcombine.low %v1078, %v1085
    %v2350 = vunpack.c.l.s4 1983009808
    %v2351 = vunpack.c.0.s8 %v2350
    %v2352 = vlaneseq
    %v2353 = vshrl.u32 %v2352, 7
    %v2354 = vsub.s32 %v2351, %v2353
    %v2355 = vrot.slane %v2347, %v2354
    %v2357 = vunpack.c.l.s4 1983009808
    %v2358 = vunpack.c.0.s8 %v2357
    %v2359 = vlaneseq
    %v2360 = vshrl.u32 %v2359, 7
    %v2361 = vsub.s32 %v2358, %v2360
    %v2362 = vrot.slane %v2348, %v2361
    %v2363 = vcombine.low %v2355, %v2362
    %v2364 = vcombine.low %v1092, %v1099
    %v2365 = vcombine.low %v1106, %v1113
    %v2367 = vunpack.c.l.s4 1983009808
    %v2368 = vunpack.c.0.s8 %v2367
    %v2369 = vlaneseq
    %v2370 = vshrl.u32 %v2369, 7
    %v2371 = vsub.s32 %v2368, %v2370
    %v2372 = vrot.slane %v2364, %v2371
    %v2374 = vunpack.c.l.s4 1983009808
    %v2375 = vunpack.c.0.s8 %v2374
    %v2376 = vlaneseq
    %v2377 = vshrl.u32 %v2376, 7
    %v2378 = vsub.s32 %v2375, %v2377
    %v2379 = vrot.slane %v2365, %v2378
    %v2380 = vcombine.low %v2372, %v2379
    %v2381 = vcombine.low %v1120, %v1127
    %v2382 = vcombine.low %v1134, %v1141
    %v2384 = vunpack.c.l.s4 1983009808
    %v2385 = vunpack.c.0.s8 %v2384
    %v2386 = vlaneseq
    %v2387 = vshrl.u32 %v2386, 7
    %v2388 = vsub.s32 %v2385, %v2387
    %v2389 = vrot.slane %v2381, %v2388
    %v2391 = vunpack.c.l.s4 1983009808
    %v2392 = vunpack.c.0.s8 %v2391
    %v2393 = vlaneseq
    %v2394 = vshrl.u32 %v2393, 7
    %v2395 = vsub.s32 %v2392, %v2394
    %v2396 = vrot.slane %v2382, %v2395
    %v2397 = vcombine.low %v2389, %v2396
    %v2398 = vcombine.low %v1148, %v1155
    %v2399 = vcombine.low %v1162, %v1169
    %v2401 = vunpack.c.l.s4 1983009808
    %v2402 = vunpack.c.0.s8 %v2401
    %v2403 = vlaneseq
    %v2404 = vshrl.u32 %v2403, 7
    %v2405 = vsub.s32 %v2402, %v2404
    %v2406 = vrot.slane %v2398, %v2405
    %v2408 = vunpack.c.l.s4 1983009808
    %v2409 = vunpack.c.0.s8 %v2408
    %v2410 = vlaneseq
    %v2411 = vshrl.u32 %v2410, 7
    %v2412 = vsub.s32 %v2409, %v2411
    %v2413 = vrot.slane %v2399, %v2412
    %v2414 = vcombine.low %v2406, %v2413
    %v2415 = vcombine.low %v1176, %v1183
    %v2416 = vcombine.low %v1190, %v1197
    %v2418 = vunpack.c.l.s4 1983009808
    %v2419 = vunpack.c.0.s8 %v2418
    %v2420 = vlaneseq
    %v2421 = vshrl.u32 %v2420, 7
    %v2422 = vsub.s32 %v2419, %v2421
    %v2423 = vrot.slane %v2415, %v2422
    %v2425 = vunpack.c.l.s4 1983009808
    %v2426 = vunpack.c.0.s8 %v2425
    %v2427 = vlaneseq
    %v2428 = vshrl.u32 %v2427, 7
    %v2429 = vsub.s32 %v2426, %v2428
    %v2430 = vrot.slane %v2416, %v2429
    %v2431 = vcombine.low %v2423, %v2430
    %v2432 = vcombine.low %v1204, %v1211
    %v2433 = vcombine.low %v1218, %v1225
    %v2435 = vunpack.c.l.s4 1983009808
    %v2436 = vunpack.c.0.s8 %v2435
    %v2437 = vlaneseq
    %v2438 = vshrl.u32 %v2437, 7
    %v2439 = vsub.s32 %v2436, %v2438
    %v2440 = vrot.slane %v2432, %v2439
    %v2442 = vunpack.c.l.s4 1983009808
    %v2443 = vunpack.c.0.s8 %v2442
    %v2444 = vlaneseq
    %v2445 = vshrl.u32 %v2444, 7
    %v2446 = vsub.s32 %v2443, %v2445
    %v2447 = vrot.slane %v2433, %v2446
    %v2448 = vcombine.low %v2440, %v2447
    %v2449 = vcombine.low %v1232, %v1239
    %v2450 = vcombine.low %v1246, %v1253
    %v2452 = vunpack.c.l.s4 1983009808
    %v2453 = vunpack.c.0.s8 %v2452
    %v2454 = vlaneseq
    %v2455 = vshrl.u32 %v2454, 7
    %v2456 = vsub.s32 %v2453, %v2455
    %v2457 = vrot.slane %v2449, %v2456
    %v2459 = vunpack.c.l.s4 1983009808
    %v2460 = vunpack.c.0.s8 %v2459
    %v2461 = vlaneseq
    %v2462 = vshrl.u32 %v2461, 7
    %v2463 = vsub.s32 %v2460, %v2462
    %v2464 = vrot.slane %v2450, %v2463
    %v2465 = vcombine.low %v2457, %v2464
    %v2466 = vcombine.low %v1260, %v1267
    %v2467 = vcombine.low %v1274, %v1281
    %v2469 = vunpack.c.l.s4 1983009808
    %v2470 = vunpack.c.0.s8 %v2469
    %v2471 = vlaneseq
    %v2472 = vshrl.u32 %v2471, 7
    %v2473 = vsub.s32 %v2470, %v2472
    %v2474 = vrot.slane %v2466, %v2473
    %v2476 = vunpack.c.l.s4 1983009808
    %v2477 = vunpack.c.0.s8 %v2476
    %v2478 = vlaneseq
    %v2479 = vshrl.u32 %v2478, 7
    %v2480 = vsub.s32 %v2477, %v2479
    %v2481 = vrot.slane %v2467, %v2480
    %v2482 = vcombine.low %v2474, %v2481
    %v2483 = vcombine.low %v1288, %v1295
    %v2484 = vcombine.low %v1302, %v1309
    %v2486 = vunpack.c.l.s4 1983009808
    %v2487 = vunpack.c.0.s8 %v2486
    %v2488 = vlaneseq
    %v2489 = vshrl.u32 %v2488, 7
    %v2490 = vsub.s32 %v2487, %v2489
    %v2491 = vrot.slane %v2483, %v2490
    %v2493 = vunpack.c.l.s4 1983009808
    %v2494 = vunpack.c.0.s8 %v2493
    %v2495 = vlaneseq
    %v2496 = vshrl.u32 %v2495, 7
    %v2497 = vsub.s32 %v2494, %v2496
    %v2498 = vrot.slane %v2484, %v2497
    %v2499 = vcombine.low %v2491, %v2498
    %v2500 = vcombine.low %v1316, %v1323
    %v2501 = vcombine.low %v1330, %v1337
    %v2503 = vunpack.c.l.s4 1983009808
    %v2504 = vunpack.c.0.s8 %v2503
    %v2505 = vlaneseq
    %v2506 = vshrl.u32 %v2505, 7
    %v2507 = vsub.s32 %v2504, %v2506
    %v2508 = vrot.slane %v2500, %v2507
    %v2510 = vunpack.c.l.s4 1983009808
    %v2511 = vunpack.c.0.s8 %v2510
    %v2512 = vlaneseq
    %v2513 = vshrl.u32 %v2512, 7
    %v2514 = vsub.s32 %v2511, %v2513
    %v2515 = vrot.slane %v2501, %v2514
    %v2516 = vcombine.low %v2508, %v2515
    %v2517 = vcombine.low %v1344, %v1351
    %v2518 = vcombine.low %v1358, %v1365
    %v2520 = vunpack.c.l.s4 1983009808
    %v2521 = vunpack.c.0.s8 %v2520
    %v2522 = vlaneseq
    %v2523 = vshrl.u32 %v2522, 7
    %v2524 = vsub.s32 %v2521, %v2523
    %v2525 = vrot.slane %v2517, %v2524
    %v2527 = vunpack.c.l.s4 1983009808
    %v2528 = vunpack.c.0.s8 %v2527
    %v2529 = vlaneseq
    %v2530 = vshrl.u32 %v2529, 7
    %v2531 = vsub.s32 %v2528, %v2530
    %v2532 = vrot.slane %v2518, %v2531
    %v2533 = vcombine.low %v2525, %v2532
    %v2534 = vcombine.low %v1372, %v1379
    %v2535 = vcombine.low %v1386, %v1393
    %v2537 = vunpack.c.l.s4 1983009808
    %v2538 = vunpack.c.0.s8 %v2537
    %v2539 = vlaneseq
    %v2540 = vshrl.u32 %v2539, 7
    %v2541 = vsub.s32 %v2538, %v2540
    %v2542 = vrot.slane %v2534, %v2541
    %v2544 = vunpack.c.l.s4 1983009808
    %v2545 = vunpack.c.0.s8 %v2544
    %v2546 = vlaneseq
    %v2547 = vshrl.u32 %v2546, 7
    %v2548 = vsub.s32 %v2545, %v2547
    %v2549 = vrot.slane %v2535, %v2548
    %v2550 = vcombine.low %v2542, %v2549
    %v2551 = vcombine.low %v1400, %v1407
    %v2552 = vcombine.low %v1414, %v1421
    %v2554 = vunpack.c.l.s4 1983009808
    %v2555 = vunpack.c.0.s8 %v2554
    %v2556 = vlaneseq
    %v2557 = vshrl.u32 %v2556, 7
    %v2558 = vsub.s32 %v2555, %v2557
    %v2559 = vrot.slane %v2551, %v2558
    %v2561 = vunpack.c.l.s4 1983009808
    %v2562 = vunpack.c.0.s8 %v2561
    %v2563 = vlaneseq
    %v2564 = vshrl.u32 %v2563, 7
    %v2565 = vsub.s32 %v2562, %v2564
    %v2566 = vrot.slane %v2552, %v2565
    %v2567 = vcombine.low %v2559, %v2566
    %v2568 = vcombine.low %v1428, %v1435
    %v2569 = vcombine.low %v1442, %v1449
    %v2571 = vunpack.c.l.s4 1983009808
    %v2572 = vunpack.c.0.s8 %v2571
    %v2573 = vlaneseq
    %v2574 = vshrl.u32 %v2573, 7
    %v2575 = vsub.s32 %v2572, %v2574
    %v2576 = vrot.slane %v2568, %v2575
    %v2578 = vunpack.c.l.s4 1983009808
    %v2579 = vunpack.c.0.s8 %v2578
    %v2580 = vlaneseq
    %v2581 = vshrl.u32 %v2580, 7
    %v2582 = vsub.s32 %v2579, %v2581
    %v2583 = vrot.slane %v2569, %v2582
    %v2584 = vcombine.low %v2576, %v2583
    %v2585 = vcombine.low %v1456, %v1463
    %v2586 = vcombine.low %v1470, %v1477
    %v2588 = vunpack.c.l.s4 1983009808
    %v2589 = vunpack.c.0.s8 %v2588
    %v2590 = vlaneseq
    %v2591 = vshrl.u32 %v2590, 7
    %v2592 = vsub.s32 %v2589, %v2591
    %v2593 = vrot.slane %v2585, %v2592
    %v2595 = vunpack.c.l.s4 1983009808
    %v2596 = vunpack.c.0.s8 %v2595
    %v2597 = vlaneseq
    %v2598 = vshrl.u32 %v2597, 7
    %v2599 = vsub.s32 %v2596, %v2598
    %v2600 = vrot.slane %v2586, %v2599
    %v2601 = vcombine.low %v2593, %v2600
    %v2602 = vcombine.low %v1484, %v1491
    %v2603 = vcombine.low %v1498, %v1505
    %v2605 = vunpack.c.l.s4 1983009808
    %v2606 = vunpack.c.0.s8 %v2605
    %v2607 = vlaneseq
    %v2608 = vshrl.u32 %v2607, 7
    %v2609 = vsub.s32 %v2606, %v2608
    %v2610 = vrot.slane %v2602, %v2609
    %v2612 = vunpack.c.l.s4 1983009808
    %v2613 = vunpack.c.0.s8 %v2612
    %v2614 = vlaneseq
    %v2615 = vshrl.u32 %v2614, 7
    %v2616 = vsub.s32 %v2613, %v2615
    %v2617 = vrot.slane %v2603, %v2616
    %v2618 = vcombine.low %v2610, %v2617
    %v2619 = vcombine.low %v1512, %v1519
    %v2620 = vcombine.low %v1526, %v1533
    %v2622 = vunpack.c.l.s4 1983009808
    %v2623 = vunpack.c.0.s8 %v2622
    %v2624 = vlaneseq
    %v2625 = vshrl.u32 %v2624, 7
    %v2626 = vsub.s32 %v2623, %v2625
    %v2627 = vrot.slane %v2619, %v2626
    %v2629 = vunpack.c.l.s4 1983009808
    %v2630 = vunpack.c.0.s8 %v2629
    %v2631 = vlaneseq
    %v2632 = vshrl.u32 %v2631, 7
    %v2633 = vsub.s32 %v2630, %v2632
    %v2634 = vrot.slane %v2620, %v2633
    %v2635 = vcombine.low %v2627, %v2634
    %v2636 = vcombine.low %v1540, %v1547
    %v2637 = vcombine.low %v1554, %v1561
    %v2639 = vunpack.c.l.s4 1983009808
    %v2640 = vunpack.c.0.s8 %v2639
    %v2641 = vlaneseq
    %v2642 = vshrl.u32 %v2641, 7
    %v2643 = vsub.s32 %v2640, %v2642
    %v2644 = vrot.slane %v2636, %v2643
    %v2646 = vunpack.c.l.s4 1983009808
    %v2647 = vunpack.c.0.s8 %v2646
    %v2648 = vlaneseq
    %v2649 = vshrl.u32 %v2648, 7
    %v2650 = vsub.s32 %v2647, %v2649
    %v2651 = vrot.slane %v2637, %v2650
    %v2652 = vcombine.low %v2644, %v2651
    %v2653 = vcombine.low %v1568, %v1575
    %v2654 = vcombine.low %v1582, %v1589
    %v2656 = vunpack.c.l.s4 1983009808
    %v2657 = vunpack.c.0.s8 %v2656
    %v2658 = vlaneseq
    %v2659 = vshrl.u32 %v2658, 7
    %v2660 = vsub.s32 %v2657, %v2659
    %v2661 = vrot.slane %v2653, %v2660
    %v2663 = vunpack.c.l.s4 1983009808
    %v2664 = vunpack.c.0.s8 %v2663
    %v2665 = vlaneseq
    %v2666 = vshrl.u32 %v2665, 7
    %v2667 = vsub.s32 %v2664, %v2666
    %v2668 = vrot.slane %v2654, %v2667
    %v2669 = vcombine.low %v2661, %v2668
    %v2670 = vcombine.low %v1596, %v1603
    %v2671 = vcombine.low %v1610, %v1617
    %v2673 = vunpack.c.l.s4 1983009808
    %v2674 = vunpack.c.0.s8 %v2673
    %v2675 = vlaneseq
    %v2676 = vshrl.u32 %v2675, 7
    %v2677 = vsub.s32 %v2674, %v2676
    %v2678 = vrot.slane %v2670, %v2677
    %v2680 = vunpack.c.l.s4 1983009808
    %v2681 = vunpack.c.0.s8 %v2680
    %v2682 = vlaneseq
    %v2683 = vshrl.u32 %v2682, 7
    %v2684 = vsub.s32 %v2681, %v2683
    %v2685 = vrot.slane %v2671, %v2684
    %v2686 = vcombine.low %v2678, %v2685
    %v2687 = vcombine.low %v1624, %v1631
    %v2688 = vcombine.low %v1638, %v1645
    %v2690 = vunpack.c.l.s4 1983009808
    %v2691 = vunpack.c.0.s8 %v2690
    %v2692 = vlaneseq
    %v2693 = vshrl.u32 %v2692, 7
    %v2694 = vsub.s32 %v2691, %v2693
    %v2695 = vrot.slane %v2687, %v2694
    %v2697 = vunpack.c.l.s4 1983009808
    %v2698 = vunpack.c.0.s8 %v2697
    %v2699 = vlaneseq
    %v2700 = vshrl.u32 %v2699, 7
    %v2701 = vsub.s32 %v2698, %v2700
    %v2702 = vrot.slane %v2688, %v2701
    %v2703 = vcombine.low %v2695, %v2702
    %v2704 = vcombine.low %v1652, %v1659
    %v2705 = vcombine.low %v1666, %v1673
    %v2707 = vunpack.c.l.s4 1983009808
    %v2708 = vunpack.c.0.s8 %v2707
    %v2709 = vlaneseq
    %v2710 = vshrl.u32 %v2709, 7
    %v2711 = vsub.s32 %v2708, %v2710
    %v2712 = vrot.slane %v2704, %v2711
    %v2714 = vunpack.c.l.s4 1983009808
    %v2715 = vunpack.c.0.s8 %v2714
    %v2716 = vlaneseq
    %v2717 = vshrl.u32 %v2716, 7
    %v2718 = vsub.s32 %v2715, %v2717
    %v2719 = vrot.slane %v2705, %v2718
    %v2720 = vcombine.low %v2712, %v2719
    %v2721 = vcombine.low %v1680, %v1687
    %v2722 = vcombine.low %v1694, %v1701
    %v2724 = vunpack.c.l.s4 1983009808
    %v2725 = vunpack.c.0.s8 %v2724
    %v2726 = vlaneseq
    %v2727 = vshrl.u32 %v2726, 7
    %v2728 = vsub.s32 %v2725, %v2727
    %v2729 = vrot.slane %v2721, %v2728
    %v2731 = vunpack.c.l.s4 1983009808
    %v2732 = vunpack.c.0.s8 %v2731
    %v2733 = vlaneseq
    %v2734 = vshrl.u32 %v2733, 7
    %v2735 = vsub.s32 %v2732, %v2734
    %v2736 = vrot.slane %v2722, %v2735
    %v2737 = vcombine.low %v2729, %v2736
    %v2738 = vcombine.low %v1708, %v1715
    %v2739 = vcombine.low %v1722, %v1729
    %v2741 = vunpack.c.l.s4 1983009808
    %v2742 = vunpack.c.0.s8 %v2741
    %v2743 = vlaneseq
    %v2744 = vshrl.u32 %v2743, 7
    %v2745 = vsub.s32 %v2742, %v2744
    %v2746 = vrot.slane %v2738, %v2745
    %v2748 = vunpack.c.l.s4 1983009808
    %v2749 = vunpack.c.0.s8 %v2748
    %v2750 = vlaneseq
    %v2751 = vshrl.u32 %v2750, 7
    %v2752 = vsub.s32 %v2749, %v2751
    %v2753 = vrot.slane %v2739, %v2752
    %v2754 = vcombine.low %v2746, %v2753
    %v2755 = vcombine.low %v1736, %v1743
    %v2756 = vcombine.low %v1750, %v1757
    %v2758 = vunpack.c.l.s4 1983009808
    %v2759 = vunpack.c.0.s8 %v2758
    %v2760 = vlaneseq
    %v2761 = vshrl.u32 %v2760, 7
    %v2762 = vsub.s32 %v2759, %v2761
    %v2763 = vrot.slane %v2755, %v2762
    %v2765 = vunpack.c.l.s4 1983009808
    %v2766 = vunpack.c.0.s8 %v2765
    %v2767 = vlaneseq
    %v2768 = vshrl.u32 %v2767, 7
    %v2769 = vsub.s32 %v2766, %v2768
    %v2770 = vrot.slane %v2756, %v2769
    %v2771 = vcombine.low %v2763, %v2770
    %v2772 = vcombine.low %v1764, %v1771
    %v2773 = vcombine.low %v1778, %v1785
    %v2775 = vunpack.c.l.s4 1983009808
    %v2776 = vunpack.c.0.s8 %v2775
    %v2777 = vlaneseq
    %v2778 = vshrl.u32 %v2777, 7
    %v2779 = vsub.s32 %v2776, %v2778
    %v2780 = vrot.slane %v2772, %v2779
    %v2782 = vunpack.c.l.s4 1983009808
    %v2783 = vunpack.c.0.s8 %v2782
    %v2784 = vlaneseq
    %v2785 = vshrl.u32 %v2784, 7
    %v2786 = vsub.s32 %v2783, %v2785
    %v2787 = vrot.slane %v2773, %v2786
    %v2788 = vcombine.low %v2780, %v2787
    %v2789 = vcombine.low %v1792, %v1799
    %v2790 = vcombine.low %v1806, %v1813
    %v2792 = vunpack.c.l.s4 1983009808
    %v2793 = vunpack.c.0.s8 %v2792
    %v2794 = vlaneseq
    %v2795 = vshrl.u32 %v2794, 7
    %v2796 = vsub.s32 %v2793, %v2795
    %v2797 = vrot.slane %v2789, %v2796
    %v2799 = vunpack.c.l.s4 1983009808
    %v2800 = vunpack.c.0.s8 %v2799
    %v2801 = vlaneseq
    %v2802 = vshrl.u32 %v2801, 7
    %v2803 = vsub.s32 %v2800, %v2802
    %v2804 = vrot.slane %v2790, %v2803
    %v2805 = vcombine.low %v2797, %v2804
    %v2806 = vcombine.low %v1820, %v1827
    %v2807 = vcombine.low %v1834, %v1841
    %v2809 = vunpack.c.l.s4 1983009808
    %v2810 = vunpack.c.0.s8 %v2809
    %v2811 = vlaneseq
    %v2812 = vshrl.u32 %v2811, 7
    %v2813 = vsub.s32 %v2810, %v2812
    %v2814 = vrot.slane %v2806, %v2813
    %v2816 = vunpack.c.l.s4 1983009808
    %v2817 = vunpack.c.0.s8 %v2816
    %v2818 = vlaneseq
    %v2819 = vshrl.u32 %v2818, 7
    %v2820 = vsub.s32 %v2817, %v2819
    %v2821 = vrot.slane %v2807, %v2820
    %v2822 = vcombine.low %v2814, %v2821
    %v2823 = vcombine.low %v1848, %v1855
    %v2824 = vcombine.low %v1862, %v1869
    %v2826 = vunpack.c.l.s4 1983009808
    %v2827 = vunpack.c.0.s8 %v2826
    %v2828 = vlaneseq
    %v2829 = vshrl.u32 %v2828, 7
    %v2830 = vsub.s32 %v2827, %v2829
    %v2831 = vrot.slane %v2823, %v2830
    %v2833 = vunpack.c.l.s4 1983009808
    %v2834 = vunpack.c.0.s8 %v2833
    %v2835 = vlaneseq
    %v2836 = vshrl.u32 %v2835, 7
    %v2837 = vsub.s32 %v2834, %v2836
    %v2838 = vrot.slane %v2824, %v2837
    %v2839 = vcombine.low %v2831, %v2838
    %v2840 = vcombine.low %v1876, %v1883
    %v2841 = vcombine.low %v1890, %v1897
    %v2843 = vunpack.c.l.s4 1983009808
    %v2844 = vunpack.c.0.s8 %v2843
    %v2845 = vlaneseq
    %v2846 = vshrl.u32 %v2845, 7
    %v2847 = vsub.s32 %v2844, %v2846
    %v2848 = vrot.slane %v2840, %v2847
    %v2850 = vunpack.c.l.s4 1983009808
    %v2851 = vunpack.c.0.s8 %v2850
    %v2852 = vlaneseq
    %v2853 = vshrl.u32 %v2852, 7
    %v2854 = vsub.s32 %v2851, %v2853
    %v2855 = vrot.slane %v2841, %v2854
    %v2856 = vcombine.low %v2848, %v2855
    %v2857 = vcombine.low %v1904, %v1911
    %v2858 = vcombine.low %v1918, %v1925
    %v2860 = vunpack.c.l.s4 1983009808
    %v2861 = vunpack.c.0.s8 %v2860
    %v2862 = vlaneseq
    %v2863 = vshrl.u32 %v2862, 7
    %v2864 = vsub.s32 %v2861, %v2863
    %v2865 = vrot.slane %v2857, %v2864
    %v2867 = vunpack.c.l.s4 1983009808
    %v2868 = vunpack.c.0.s8 %v2867
    %v2869 = vlaneseq
    %v2870 = vshrl.u32 %v2869, 7
    %v2871 = vsub.s32 %v2868, %v2870
    %v2872 = vrot.slane %v2858, %v2871
    %v2873 = vcombine.low %v2865, %v2872
    %v2874 = vcombine.low %v1932, %v1939
    %v2875 = vcombine.low %v1946, %v1953
    %v2877 = vunpack.c.l.s4 1983009808
    %v2878 = vunpack.c.0.s8 %v2877
    %v2879 = vlaneseq
    %v2880 = vshrl.u32 %v2879, 7
    %v2881 = vsub.s32 %v2878, %v2880
    %v2882 = vrot.slane %v2874, %v2881
    %v2884 = vunpack.c.l.s4 1983009808
    %v2885 = vunpack.c.0.s8 %v2884
    %v2886 = vlaneseq
    %v2887 = vshrl.u32 %v2886, 7
    %v2888 = vsub.s32 %v2885, %v2887
    %v2889 = vrot.slane %v2875, %v2888
    %v2890 = vcombine.low %v2882, %v2889
    %v2891 = vcombine.low %v1960, %v1967
    %v2892 = vcombine.low %v1974, %v1981
    %v2894 = vunpack.c.l.s4 1983009808
    %v2895 = vunpack.c.0.s8 %v2894
    %v2896 = vlaneseq
    %v2897 = vshrl.u32 %v2896, 7
    %v2898 = vsub.s32 %v2895, %v2897
    %v2899 = vrot.slane %v2891, %v2898
    %v2901 = vunpack.c.l.s4 1983009808
    %v2902 = vunpack.c.0.s8 %v2901
    %v2903 = vlaneseq
    %v2904 = vshrl.u32 %v2903, 7
    %v2905 = vsub.s32 %v2902, %v2904
    %v2906 = vrot.slane %v2892, %v2905
    %v2907 = vcombine.low %v2899, %v2906
    %v2908 = vcombine.low %v1988, %v1995
    %v2909 = vcombine.low %v2002, %v2009
    %v2911 = vunpack.c.l.s4 1983009808
    %v2912 = vunpack.c.0.s8 %v2911
    %v2913 = vlaneseq
    %v2914 = vshrl.u32 %v2913, 7
    %v2915 = vsub.s32 %v2912, %v2914
    %v2916 = vrot.slane %v2908, %v2915
    %v2918 = vunpack.c.l.s4 1983009808
    %v2919 = vunpack.c.0.s8 %v2918
    %v2920 = vlaneseq
    %v2921 = vshrl.u32 %v2920, 7
    %v2922 = vsub.s32 %v2919, %v2921
    %v2923 = vrot.slane %v2909, %v2922
    %v2924 = vcombine.low %v2916, %v2923
    %v2925 = vcombine.low %v2016, %v2023
    %v2926 = vcombine.low %v2030, %v2037
    %v2928 = vunpack.c.l.s4 1983009808
    %v2929 = vunpack.c.0.s8 %v2928
    %v2930 = vlaneseq
    %v2931 = vshrl.u32 %v2930, 7
    %v2932 = vsub.s32 %v2929, %v2931
    %v2933 = vrot.slane %v2925, %v2932
    %v2935 = vunpack.c.l.s4 1983009808
    %v2936 = vunpack.c.0.s8 %v2935
    %v2937 = vlaneseq
    %v2938 = vshrl.u32 %v2937, 7
    %v2939 = vsub.s32 %v2936, %v2938
    %v2940 = vrot.slane %v2926, %v2939
    %v2941 = vcombine.low %v2933, %v2940
    %v2942 = vcombine.low %v2044, %v2051
    %v2943 = vcombine.low %v2058, %v2065
    %v2945 = vunpack.c.l.s4 1983009808
    %v2946 = vunpack.c.0.s8 %v2945
    %v2947 = vlaneseq
    %v2948 = vshrl.u32 %v2947, 7
    %v2949 = vsub.s32 %v2946, %v2948
    %v2950 = vrot.slane %v2942, %v2949
    %v2952 = vunpack.c.l.s4 1983009808
    %v2953 = vunpack.c.0.s8 %v2952
    %v2954 = vlaneseq
    %v2955 = vshrl.u32 %v2954, 7
    %v2956 = vsub.s32 %v2953, %v2955
    %v2957 = vrot.slane %v2943, %v2956
    %v2958 = vcombine.low %v2950, %v2957
    %v2959 = vcombine.low %v2072, %v2079
    %v2960 = vcombine.low %v2086, %v2093
    %v2962 = vunpack.c.l.s4 1983009808
    %v2963 = vunpack.c.0.s8 %v2962
    %v2964 = vlaneseq
    %v2965 = vshrl.u32 %v2964, 7
    %v2966 = vsub.s32 %v2963, %v2965
    %v2967 = vrot.slane %v2959, %v2966
    %v2969 = vunpack.c.l.s4 1983009808
    %v2970 = vunpack.c.0.s8 %v2969
    %v2971 = vlaneseq
    %v2972 = vshrl.u32 %v2971, 7
    %v2973 = vsub.s32 %v2970, %v2972
    %v2974 = vrot.slane %v2960, %v2973
    %v2975 = vcombine.low %v2967, %v2974
    %v2976 = vcombine.low %v2100, %v2107
    %v2977 = vcombine.low %v2114, %v2121
    %v2979 = vunpack.c.l.s4 1983009808
    %v2980 = vunpack.c.0.s8 %v2979
    %v2981 = vlaneseq
    %v2982 = vshrl.u32 %v2981, 7
    %v2983 = vsub.s32 %v2980, %v2982
    %v2984 = vrot.slane %v2976, %v2983
    %v2986 = vunpack.c.l.s4 1983009808
    %v2987 = vunpack.c.0.s8 %v2986
    %v2988 = vlaneseq
    %v2989 = vshrl.u32 %v2988, 7
    %v2990 = vsub.s32 %v2987, %v2989
    %v2991 = vrot.slane %v2977, %v2990
    %v2992 = vcombine.low %v2984, %v2991
    %v2993 = vcombine.low %v2128, %v2135
    %v2994 = vcombine.low %v2142, %v2149
    %v2996 = vunpack.c.l.s4 1983009808
    %v2997 = vunpack.c.0.s8 %v2996
    %v2998 = vlaneseq
    %v2999 = vshrl.u32 %v2998, 7
    %v3000 = vsub.s32 %v2997, %v2999
    %v3001 = vrot.slane %v2993, %v3000
    %v3003 = vunpack.c.l.s4 1983009808
    %v3004 = vunpack.c.0.s8 %v3003
    %v3005 = vlaneseq
    %v3006 = vshrl.u32 %v3005, 7
    %v3007 = vsub.s32 %v3004, %v3006
    %v3008 = vrot.slane %v2994, %v3007
    %v3009 = vcombine.low %v3001, %v3008
    %v3010 = vcombine.low %v2156, %v2163
    %v3011 = vcombine.low %v2170, %v2177
    %v3013 = vunpack.c.l.s4 1983009808
    %v3014 = vunpack.c.0.s8 %v3013
    %v3015 = vlaneseq
    %v3016 = vshrl.u32 %v3015, 7
    %v3017 = vsub.s32 %v3014, %v3016
    %v3018 = vrot.slane %v3010, %v3017
    %v3020 = vunpack.c.l.s4 1983009808
    %v3021 = vunpack.c.0.s8 %v3020
    %v3022 = vlaneseq
    %v3023 = vshrl.u32 %v3022, 7
    %v3024 = vsub.s32 %v3021, %v3023
    %v3025 = vrot.slane %v3011, %v3024
    %v3026 = vcombine.low %v3018, %v3025
    %v3027 = vcombine.low %v2184, %v2191
    %v3028 = vcombine.low %v2198, %v2205
    %v3030 = vunpack.c.l.s4 1983009808
    %v3031 = vunpack.c.0.s8 %v3030
    %v3032 = vlaneseq
    %v3033 = vshrl.u32 %v3032, 7
    %v3034 = vsub.s32 %v3031, %v3033
    %v3035 = vrot.slane %v3027, %v3034
    %v3037 = vunpack.c.l.s4 1983009808
    %v3038 = vunpack.c.0.s8 %v3037
    %v3039 = vlaneseq
    %v3040 = vshrl.u32 %v3039, 7
    %v3041 = vsub.s32 %v3038, %v3040
    %v3042 = vrot.slane %v3028, %v3041
    %v3043 = vcombine.low %v3035, %v3042
    %v3044 = vcombine.low %v2212, %v2219
    %v3045 = vcombine.low %v2226, %v2233
    %v3047 = vunpack.c.l.s4 1983009808
    %v3048 = vunpack.c.0.s8 %v3047
    %v3049 = vlaneseq
    %v3050 = vshrl.u32 %v3049, 7
    %v3051 = vsub.s32 %v3048, %v3050
    %v3052 = vrot.slane %v3044, %v3051
    %v3054 = vunpack.c.l.s4 1983009808
    %v3055 = vunpack.c.0.s8 %v3054
    %v3056 = vlaneseq
    %v3057 = vshrl.u32 %v3056, 7
    %v3058 = vsub.s32 %v3055, %v3057
    %v3059 = vrot.slane %v3045, %v3058
    %v3060 = vcombine.low %v3052, %v3059
    %v3061 = vcombine.low %v2240, %v2247
    %v3062 = vcombine.low %v2254, %v2261
    %v3064 = vunpack.c.l.s4 1983009808
    %v3065 = vunpack.c.0.s8 %v3064
    %v3066 = vlaneseq
    %v3067 = vshrl.u32 %v3066, 7
    %v3068 = vsub.s32 %v3065, %v3067
    %v3069 = vrot.slane %v3061, %v3068
    %v3071 = vunpack.c.l.s4 1983009808
    %v3072 = vunpack.c.0.s8 %v3071
    %v3073 = vlaneseq
    %v3074 = vshrl.u32 %v3073, 7
    %v3075 = vsub.s32 %v3072, %v3074
    %v3076 = vrot.slane %v3062, %v3075
    %v3077 = vcombine.low %v3069, %v3076
    %3078 = vset.pattern.permute.xlu0 0
    %3079 = vperm.xlu0 %3078, %v2278
    %v3080 = vpop.permute.xlu0 %3079
    %3081 = vset.pattern.permute.xlu0 0
    %3082 = vperm.xlu0 %3081, %v2295
    %v3083 = vpop.permute.xlu0 %3082
    %3084 = vset.pattern.permute.xlu0 0
    %3085 = vperm.xlu0 %3084, %v2312
    %v3086 = vpop.permute.xlu0 %3085
    %3087 = vset.pattern.permute.xlu0 0
    %3088 = vperm.xlu0 %3087, %v2329
    %v3089 = vpop.permute.xlu0 %3088
    %3090 = vset.pattern.permute.xlu0 0
    %3091 = vperm.xlu0 %3090, %v2346
    %v3092 = vpop.permute.xlu0 %3091
    %3093 = vset.pattern.permute.xlu0 0
    %3094 = vperm.xlu0 %3093, %v2363
    %v3095 = vpop.permute.xlu0 %3094
    %3096 = vset.pattern.permute.xlu0 0
    %3097 = vperm.xlu0 %3096, %v2380
    %v3098 = vpop.permute.xlu0 %3097
    %3099 = vset.pattern.permute.xlu0 0
    %3100 = vperm.xlu0 %3099, %v2397
    %v3101 = vpop.permute.xlu0 %3100
    %3102 = vset.pattern.permute.xlu0 0
    %3103 = vperm.xlu0 %3102, %v2414
    %v3104 = vpop.permute.xlu0 %3103
    %3105 = vset.pattern.permute.xlu0 0
    %3106 = vperm.xlu0 %3105, %v2431
    %v3107 = vpop.permute.xlu0 %3106
    %3108 = vset.pattern.permute.xlu0 0
    %3109 = vperm.xlu0 %3108, %v2448
    %v3110 = vpop.permute.xlu0 %3109
    %3111 = vset.pattern.permute.xlu0 0
    %3112 = vperm.xlu0 %3111, %v2465
    %v3113 = vpop.permute.xlu0 %3112
    %3114 = vset.pattern.permute.xlu0 0
    %3115 = vperm.xlu0 %3114, %v2482
    %v3116 = vpop.permute.xlu0 %3115
    %3117 = vset.pattern.permute.xlu0 0
    %3118 = vperm.xlu0 %3117, %v2499
    %v3119 = vpop.permute.xlu0 %3118
    %3120 = vset.pattern.permute.xlu0 0
    %3121 = vperm.xlu0 %3120, %v2516
    %v3122 = vpop.permute.xlu0 %3121
    %3123 = vset.pattern.permute.xlu0 0
    %3124 = vperm.xlu0 %3123, %v2533
    %v3125 = vpop.permute.xlu0 %3124
    %3126 = vset.pattern.permute.xlu0 0
    %3127 = vperm.xlu0 %3126, %v2550
    %v3128 = vpop.permute.xlu0 %3127
    %3129 = vset.pattern.permute.xlu0 0
    %3130 = vperm.xlu0 %3129, %v2567
    %v3131 = vpop.permute.xlu0 %3130
    %3132 = vset.pattern.permute.xlu0 0
    %3133 = vperm.xlu0 %3132, %v2584
    %v3134 = vpop.permute.xlu0 %3133
    %3135 = vset.pattern.permute.xlu0 0
    %3136 = vperm.xlu0 %3135, %v2601
    %v3137 = vpop.permute.xlu0 %3136
    %3138 = vset.pattern.permute.xlu0 0
    %3139 = vperm.xlu0 %3138, %v2618
    %v3140 = vpop.permute.xlu0 %3139
    %3141 = vset.pattern.permute.xlu0 0
    %3142 = vperm.xlu0 %3141, %v2635
    %v3143 = vpop.permute.xlu0 %3142
    %3144 = vset.pattern.permute.xlu0 0
    %3145 = vperm.xlu0 %3144, %v2652
    %v3146 = vpop.permute.xlu0 %3145
    %3147 = vset.pattern.permute.xlu0 0
    %3148 = vperm.xlu0 %3147, %v2669
    %v3149 = vpop.permute.xlu0 %3148
    %3150 = vset.pattern.permute.xlu0 0
    %3151 = vperm.xlu0 %3150, %v2686
    %v3152 = vpop.permute.xlu0 %3151
    %3153 = vset.pattern.permute.xlu0 0
    %3154 = vperm.xlu0 %3153, %v2703
    %v3155 = vpop.permute.xlu0 %3154
    %3156 = vset.pattern.permute.xlu0 0
    %3157 = vperm.xlu0 %3156, %v2720
    %v3158 = vpop.permute.xlu0 %3157
    %3159 = vset.pattern.permute.xlu0 0
    %3160 = vperm.xlu0 %3159, %v2737
    %v3161 = vpop.permute.xlu0 %3160
    %3162 = vset.pattern.permute.xlu0 0
    %3163 = vperm.xlu0 %3162, %v2754
    %v3164 = vpop.permute.xlu0 %3163
    %3165 = vset.pattern.permute.xlu0 0
    %3166 = vperm.xlu0 %3165, %v2771
    %v3167 = vpop.permute.xlu0 %3166
    %3168 = vset.pattern.permute.xlu0 0
    %3169 = vperm.xlu0 %3168, %v2788
    %v3170 = vpop.permute.xlu0 %3169
    %3171 = vset.pattern.permute.xlu0 0
    %3172 = vperm.xlu0 %3171, %v2805
    %v3173 = vpop.permute.xlu0 %3172
    %3174 = vset.pattern.permute.xlu0 0
    %3175 = vperm.xlu0 %3174, %v2822
    %v3176 = vpop.permute.xlu0 %3175
    %3177 = vset.pattern.permute.xlu0 0
    %3178 = vperm.xlu0 %3177, %v2839
    %v3179 = vpop.permute.xlu0 %3178
    %3180 = vset.pattern.permute.xlu0 0
    %3181 = vperm.xlu0 %3180, %v2856
    %v3182 = vpop.permute.xlu0 %3181
    %3183 = vset.pattern.permute.xlu0 0
    %3184 = vperm.xlu0 %3183, %v2873
    %v3185 = vpop.permute.xlu0 %3184
    %3186 = vset.pattern.permute.xlu0 0
    %3187 = vperm.xlu0 %3186, %v2890
    %v3188 = vpop.permute.xlu0 %3187
    %3189 = vset.pattern.permute.xlu0 0
    %3190 = vperm.xlu0 %3189, %v2907
    %v3191 = vpop.permute.xlu0 %3190
    %3192 = vset.pattern.permute.xlu0 0
    %3193 = vperm.xlu0 %3192, %v2924
    %v3194 = vpop.permute.xlu0 %3193
    %3195 = vset.pattern.permute.xlu0 0
    %3196 = vperm.xlu0 %3195, %v2941
    %v3197 = vpop.permute.xlu0 %3196
    %3198 = vset.pattern.permute.xlu0 0
    %3199 = vperm.xlu0 %3198, %v2958
    %v3200 = vpop.permute.xlu0 %3199
    %3201 = vset.pattern.permute.xlu0 0
    %3202 = vperm.xlu0 %3201, %v2975
    %v3203 = vpop.permute.xlu0 %3202
    %3204 = vset.pattern.permute.xlu0 0
    %3205 = vperm.xlu0 %3204, %v2992
    %v3206 = vpop.permute.xlu0 %3205
    %3207 = vset.pattern.permute.xlu0 0
    %3208 = vperm.xlu0 %3207, %v3009
    %v3209 = vpop.permute.xlu0 %3208
    %3210 = vset.pattern.permute.xlu0 0
    %3211 = vperm.xlu0 %3210, %v3026
    %v3212 = vpop.permute.xlu0 %3211
    %3213 = vset.pattern.permute.xlu0 0
    %3214 = vperm.xlu0 %3213, %v3043
    %v3215 = vpop.permute.xlu0 %3214
    %3216 = vset.pattern.permute.xlu0 0
    %3217 = vperm.xlu0 %3216, %v3060
    %v3218 = vpop.permute.xlu0 %3217
    %3219 = vset.pattern.permute.xlu0 0
    %3220 = vperm.xlu0 %3219, %v3077
    %v3221 = vpop.permute.xlu0 %3220
    %v3222 = vlaneseq
    %v3223 = vand.u32 %v3222, 127
    %v3224 = vlaneseq
    %v3225 = vshrl.u32 %v3224, 7
    %v3226 = vsub.s32 %v3223, %v3225
    %v3227 = vrot.slane %v3080, %v3226
    %v3228 = vadd.s32 %v3223, 4294967288
    %v3229 = vlaneseq
    %v3230 = vshrl.u32 %v3229, 7
    %v3231 = vsub.s32 %v3228, %v3230
    %v3232 = vrot.slane %v3083, %v3231
    %vm3233 = vcmask 130112
    %v3234 = vsel %vm3233, %v3232, %v3227
    %v3235 = vadd.s32 %v3223, 4294967280
    %v3236 = vlaneseq
    %v3237 = vshrl.u32 %v3236, 7
    %v3238 = vsub.s32 %v3235, %v3237
    %v3239 = vrot.slane %v3086, %v3238
    %vm3240 = vcmask 195712
    %v3241 = vsel %vm3240, %v3239, %v3234
    %v3242 = vadd.s32 %v3223, 4294967272
    %v3243 = vlaneseq
    %v3244 = vshrl.u32 %v3243, 7
    %v3245 = vsub.s32 %v3242, %v3244
    %v3246 = vrot.slane %v3089, %v3245
    %vm3247 = vcmask 261312
    %v3248 = vsel %vm3247, %v3246, %v3241
    %v3249 = vadd.s32 %v3223, 4294967264
    %v3250 = vlaneseq
    %v3251 = vshrl.u32 %v3250, 7
    %v3252 = vsub.s32 %v3249, %v3251
    %v3253 = vrot.slane %v3092, %v3252
    %vm3254 = vcmask 326912
    %v3255 = vsel %vm3254, %v3253, %v3248
    %v3256 = vadd.s32 %v3223, 4294967256
    %v3257 = vlaneseq
    %v3258 = vshrl.u32 %v3257, 7
    %v3259 = vsub.s32 %v3256, %v3258
    %v3260 = vrot.slane %v3095, %v3259
    %vm3261 = vcmask 392512
    %v3262 = vsel %vm3261, %v3260, %v3255
    %v3263 = vadd.s32 %v3223, 4294967248
    %v3264 = vlaneseq
    %v3265 = vshrl.u32 %v3264, 7
    %v3266 = vsub.s32 %v3263, %v3265
    %v3267 = vrot.slane %v3098, %v3266
    %vm3268 = vcmask 458112
    %v3269 = vsel %vm3268, %v3267, %v3262
    %v3270 = vadd.s32 %v3223, 4294967240
    %v3271 = vlaneseq
    %v3272 = vshrl.u32 %v3271, 7
    %v3273 = vsub.s32 %v3270, %v3272
    %v3274 = vrot.slane %v3101, %v3273
    %vm3275 = vcmask 523712
    %v3276 = vsel %vm3275, %v3274, %v3269
    %v3277 = vadd.s32 %v3223, 4294967232
    %v3278 = vlaneseq
    %v3279 = vshrl.u32 %v3278, 7
    %v3280 = vsub.s32 %v3277, %v3279
    %v3281 = vrot.slane %v3104, %v3280
    %vm3282 = vcmask 589312
    %v3283 = vsel %vm3282, %v3281, %v3276
    %v3284 = vadd.s32 %v3223, 4294967224
    %v3285 = vlaneseq
    %v3286 = vshrl.u32 %v3285, 7
    %v3287 = vsub.s32 %v3284, %v3286
    %v3288 = vrot.slane %v3107, %v3287
    %vm3289 = vcmask 654912
    %v3290 = vsel %vm3289, %v3288, %v3283
    %v3291 = vadd.s32 %v3223, 4294967216
    %v3292 = vlaneseq
    %v3293 = vshrl.u32 %v3292, 7
    %v3294 = vsub.s32 %v3291, %v3293
    %v3295 = vrot.slane %v3110, %v3294
    %vm3296 = vcmask 720512
    %v3297 = vsel %vm3296, %v3295, %v3290
    %v3298 = vadd.s32 %v3223, 4294967208
    %v3299 = vlaneseq
    %v3300 = vshrl.u32 %v3299, 7
    %v3301 = vsub.s32 %v3298, %v3300
    %v3302 = vrot.slane %v3113, %v3301
    %vm3303 = vcmask 786112
    %v3304 = vsel %vm3303, %v3302, %v3297
    %v3305 = vadd.s32 %v3223, 4294967200
    %v3306 = vlaneseq
    %v3307 = vshrl.u32 %v3306, 7
    %v3308 = vsub.s32 %v3305, %v3307
    %v3309 = vrot.slane %v3116, %v3308
    %vm3310 = vcmask 851712
    %v3311 = vsel %vm3310, %v3309, %v3304
    %v3312 = vadd.s32 %v3223, 4294967192
    %v3313 = vlaneseq
    %v3314 = vshrl.u32 %v3313, 7
    %v3315 = vsub.s32 %v3312, %v3314
    %v3316 = vrot.slane %v3119, %v3315
    %vm3317 = vcmask 917312
    %v3318 = vsel %vm3317, %v3316, %v3311
    %v3319 = vadd.s32 %v3223, 4294967184
    %v3320 = vlaneseq
    %v3321 = vshrl.u32 %v3320, 7
    %v3322 = vsub.s32 %v3319, %v3321
    %v3323 = vrot.slane %v3122, %v3322
    %vm3324 = vcmask 982912
    %v3325 = vsel %vm3324, %v3323, %v3318
    %v3326 = vadd.s32 %v3223, 4294967176
    %v3327 = vlaneseq
    %v3328 = vshrl.u32 %v3327, 7
    %v3329 = vsub.s32 %v3326, %v3328
    %v3330 = vrot.slane %v3125, %v3329
    %vm3331 = vcmask 1048512
    %v3332 = vsel %vm3331, %v3330, %v3325
    %v3333 = vlaneseq
    %v3334 = vshrl.u32 %v3333, 7
    %v3335 = vsub.s32 %v3223, %v3334
    %v3336 = vrot.slane %v3128, %v3335
    %v3337 = vlaneseq
    %v3338 = vshrl.u32 %v3337, 7
    %v3339 = vsub.s32 %v3228, %v3338
    %v3340 = vrot.slane %v3131, %v3339
    %v3341 = vsel %vm3233, %v3340, %v3336
    %v3342 = vlaneseq
    %v3343 = vshrl.u32 %v3342, 7
    %v3344 = vsub.s32 %v3235, %v3343
    %v3345 = vrot.slane %v3134, %v3344
    %v3346 = vsel %vm3240, %v3345, %v3341
    %v3347 = vlaneseq
    %v3348 = vshrl.u32 %v3347, 7
    %v3349 = vsub.s32 %v3242, %v3348
    %v3350 = vrot.slane %v3137, %v3349
    %v3351 = vsel %vm3247, %v3350, %v3346
    %v3352 = vlaneseq
    %v3353 = vshrl.u32 %v3352, 7
    %v3354 = vsub.s32 %v3249, %v3353
    %v3355 = vrot.slane %v3140, %v3354
    %v3356 = vsel %vm3254, %v3355, %v3351
    %v3357 = vlaneseq
    %v3358 = vshrl.u32 %v3357, 7
    %v3359 = vsub.s32 %v3256, %v3358
    %v3360 = vrot.slane %v3143, %v3359
    %v3361 = vsel %vm3261, %v3360, %v3356
    %v3362 = vlaneseq
    %v3363 = vshrl.u32 %v3362, 7
    %v3364 = vsub.s32 %v3263, %v3363
    %v3365 = vrot.slane %v3146, %v3364
    %v3366 = vsel %vm3268, %v3365, %v3361
    %v3367 = vlaneseq
    %v3368 = vshrl.u32 %v3367, 7
    %v3369 = vsub.s32 %v3270, %v3368
    %v3370 = vrot.slane %v3149, %v3369
    %v3371 = vsel %vm3275, %v3370, %v3366
    %v3372 = vlaneseq
    %v3373 = vshrl.u32 %v3372, 7
    %v3374 = vsub.s32 %v3223, %v3373
    %v3375 = vrot.slane %v3152, %v3374
    %v3376 = vlaneseq
    %v3377 = vshrl.u32 %v3376, 7
    %v3378 = vsub.s32 %v3228, %v3377
    %v3379 = vrot.slane %v3155, %v3378
    %v3380 = vsel %vm3233, %v3379, %v3375
    %v3381 = vlaneseq
    %v3382 = vshrl.u32 %v3381, 7
    %v3383 = vsub.s32 %v3235, %v3382
    %v3384 = vrot.slane %v3158, %v3383
    %v3385 = vsel %vm3240, %v3384, %v3380
    %v3386 = vlaneseq
    %v3387 = vshrl.u32 %v3386, 7
    %v3388 = vsub.s32 %v3242, %v3387
    %v3389 = vrot.slane %v3161, %v3388
    %v3390 = vsel %vm3247, %v3389, %v3385
    %v3391 = vlaneseq
    %v3392 = vshrl.u32 %v3391, 7
    %v3393 = vsub.s32 %v3249, %v3392
    %v3394 = vrot.slane %v3164, %v3393
    %v3395 = vsel %vm3254, %v3394, %v3390
    %v3396 = vlaneseq
    %v3397 = vshrl.u32 %v3396, 7
    %v3398 = vsub.s32 %v3256, %v3397
    %v3399 = vrot.slane %v3167, %v3398
    %v3400 = vsel %vm3261, %v3399, %v3395
    %v3401 = vlaneseq
    %v3402 = vshrl.u32 %v3401, 7
    %v3403 = vsub.s32 %v3263, %v3402
    %v3404 = vrot.slane %v3170, %v3403
    %v3405 = vsel %vm3268, %v3404, %v3400
    %v3406 = vlaneseq
    %v3407 = vshrl.u32 %v3406, 7
    %v3408 = vsub.s32 %v3270, %v3407
    %v3409 = vrot.slane %v3173, %v3408
    %v3410 = vsel %vm3275, %v3409, %v3405
    %v3411 = vlaneseq
    %v3412 = vshrl.u32 %v3411, 7
    %v3413 = vsub.s32 %v3277, %v3412
    %v3414 = vrot.slane %v3176, %v3413
    %v3415 = vsel %vm3282, %v3414, %v3410
    %v3416 = vlaneseq
    %v3417 = vshrl.u32 %v3416, 7
    %v3418 = vsub.s32 %v3284, %v3417
    %v3419 = vrot.slane %v3179, %v3418
    %v3420 = vsel %vm3289, %v3419, %v3415
    %v3421 = vlaneseq
    %v3422 = vshrl.u32 %v3421, 7
    %v3423 = vsub.s32 %v3291, %v3422
    %v3424 = vrot.slane %v3182, %v3423
    %v3425 = vsel %vm3296, %v3424, %v3420
    %v3426 = vlaneseq
    %v3427 = vshrl.u32 %v3426, 7
    %v3428 = vsub.s32 %v3298, %v3427
    %v3429 = vrot.slane %v3185, %v3428
    %v3430 = vsel %vm3303, %v3429, %v3425
    %v3431 = vlaneseq
    %v3432 = vshrl.u32 %v3431, 7
    %v3433 = vsub.s32 %v3305, %v3432
    %v3434 = vrot.slane %v3188, %v3433
    %v3435 = vsel %vm3310, %v3434, %v3430
    %v3436 = vlaneseq
    %v3437 = vshrl.u32 %v3436, 7
    %v3438 = vsub.s32 %v3312, %v3437
    %v3439 = vrot.slane %v3191, %v3438
    %v3440 = vsel %vm3317, %v3439, %v3435
    %v3441 = vlaneseq
    %v3442 = vshrl.u32 %v3441, 7
    %v3443 = vsub.s32 %v3319, %v3442
    %v3444 = vrot.slane %v3194, %v3443
    %v3445 = vsel %vm3324, %v3444, %v3440
    %v3446 = vlaneseq
    %v3447 = vshrl.u32 %v3446, 7
    %v3448 = vsub.s32 %v3326, %v3447
    %v3449 = vrot.slane %v3197, %v3448
    %v3450 = vsel %vm3331, %v3449, %v3445
    %v3451 = vlaneseq
    %v3452 = vshrl.u32 %v3451, 7
    %v3453 = vsub.s32 %v3223, %v3452
    %v3454 = vrot.slane %v3200, %v3453
    %v3455 = vlaneseq
    %v3456 = vshrl.u32 %v3455, 7
    %v3457 = vsub.s32 %v3228, %v3456
    %v3458 = vrot.slane %v3203, %v3457
    %v3459 = vsel %vm3233, %v3458, %v3454
    %v3460 = vlaneseq
    %v3461 = vshrl.u32 %v3460, 7
    %v3462 = vsub.s32 %v3235, %v3461
    %v3463 = vrot.slane %v3206, %v3462
    %v3464 = vsel %vm3240, %v3463, %v3459
    %v3465 = vlaneseq
    %v3466 = vshrl.u32 %v3465, 7
    %v3467 = vsub.s32 %v3242, %v3466
    %v3468 = vrot.slane %v3209, %v3467
    %v3469 = vsel %vm3247, %v3468, %v3464
    %v3470 = vlaneseq
    %v3471 = vshrl.u32 %v3470, 7
    %v3472 = vsub.s32 %v3249, %v3471
    %v3473 = vrot.slane %v3212, %v3472
    %v3474 = vsel %vm3254, %v3473, %v3469
    %v3475 = vlaneseq
    %v3476 = vshrl.u32 %v3475, 7
    %v3477 = vsub.s32 %v3256, %v3476
    %v3478 = vrot.slane %v3215, %v3477
    %v3479 = vsel %vm3261, %v3478, %v3474
    %v3480 = vlaneseq
    %v3481 = vshrl.u32 %v3480, 7
    %v3482 = vsub.s32 %v3263, %v3481
    %v3483 = vrot.slane %v3218, %v3482
    %v3484 = vsel %vm3268, %v3483, %v3479
    %v3485 = vlaneseq
    %v3486 = vshrl.u32 %v3485, 7
    %v3487 = vsub.s32 %v3270, %v3486
    %v3488 = vrot.slane %v3221, %v3487
    %v3489 = vsel %vm3275, %v3488, %v3484
    %vm3490 = vcmask 1041409
    %v3491 = vsel %vm3490, %v3450, %v3332
    %v3492 = vsel %vm3490, %v3489, %v3371
    %v3493 = vcombine.low %v3491, %v3492
    %v3495 = vunpack.c.l.s4 1983009808
    %v3496 = vunpack.c.0.s8 %v3495
    %v3497 = vlaneseq
    %v3498 = vshrl.u32 %v3497, 7
    %v3499 = vsub.s32 %v3496, %v3498
    %v3500 = vrot.slane %v3493, %v3499
    %v3502 = vmax.f32 %v89, %v3500
    %v3503 = vsub.f32 %v89, %v3502
    %v3504 = vmul.f32 %v3503, 1.442695
    %v3505 = vpow.pop %v3504
    %v3508 = vunpack.c.l.s4 1983009808
    %v3509 = vunpack.c.0.s8 %v3508
    %v3510 = vlaneseq
    %v3511 = vshrl.u32 %v3510, 7
    %v3512 = vsub.s32 %v3509, %v3511
    %v3513 = vrot.slane %v3502, %v3512
    %v3514 = vcombine.high %v3513, %v3513
    %v3517 = vlaneseq
    %v3518 = vshrl.u32 %v3517, 7
    %v3519 = vsub.s32 0, %v3518
    %v3520 = vrot.slane %v3513, %v3519
    %3522 = vbcast.lane.b32.xlu0 %v3520, 256
    %v3523 = vpop.permute.xlu0 %3522
    %s3525 = sor.u32 256, 8
    %3526 = vbcast.lane.b32.xlu0 %v3520, %s3525
    %v3527 = vpop.permute.xlu0 %3526
    %s3529 = sor.u32 256, 16
    %3530 = vbcast.lane.b32.xlu0 %v3520, %s3529
    %v3531 = vpop.permute.xlu0 %3530
    %s3533 = sor.u32 256, 24
    %3534 = vbcast.lane.b32.xlu0 %v3520, %s3533
    %v3535 = vpop.permute.xlu0 %3534
    %s3537 = sor.u32 256, 32
    %3538 = vbcast.lane.b32.xlu0 %v3520, %s3537
    %v3539 = vpop.permute.xlu0 %3538
    %s3541 = sor.u32 256, 40
    %3542 = vbcast.lane.b32.xlu0 %v3520, %s3541
    %v3543 = vpop.permute.xlu0 %3542
    %s3545 = sor.u32 256, 48
    %3546 = vbcast.lane.b32.xlu0 %v3520, %s3545
    %v3547 = vpop.permute.xlu0 %3546
    %s3549 = sor.u32 256, 56
    %3550 = vbcast.lane.b32.xlu0 %v3520, %s3549
    %v3551 = vpop.permute.xlu0 %3550
    %s3553 = sor.u32 256, 64
    %3554 = vbcast.lane.b32.xlu0 %v3520, %s3553
    %v3555 = vpop.permute.xlu0 %3554
    %s3557 = sor.u32 256, 72
    %3558 = vbcast.lane.b32.xlu0 %v3520, %s3557
    %v3559 = vpop.permute.xlu0 %3558
    %s3561 = sor.u32 256, 80
    %3562 = vbcast.lane.b32.xlu0 %v3520, %s3561
    %v3563 = vpop.permute.xlu0 %3562
    %s3565 = sor.u32 256, 88
    %3566 = vbcast.lane.b32.xlu0 %v3520, %s3565
    %v3567 = vpop.permute.xlu0 %3566
    %s3569 = sor.u32 256, 96
    %3570 = vbcast.lane.b32.xlu0 %v3520, %s3569
    %v3571 = vpop.permute.xlu0 %3570
    %s3573 = sor.u32 256, 104
    %3574 = vbcast.lane.b32.xlu0 %v3520, %s3573
    %v3575 = vpop.permute.xlu0 %3574
    %s3577 = sor.u32 256, 112
    %3578 = vbcast.lane.b32.xlu0 %v3520, %s3577
    %v3579 = vpop.permute.xlu0 %3578
    %s3581 = sor.u32 256, 120
    %3582 = vbcast.lane.b32.xlu0 %v3520, %s3581
    %v3583 = vpop.permute.xlu0 %3582
    %v3584 = vlaneseq
    %v3585 = vshrl.u32 %v3584, 7
    %v3586 = vsub.s32 0, %v3585
    %v3587 = vrot.slane %v3514, %v3586
    %3589 = vbcast.lane.b32.xlu0 %v3587, 256
    %v3590 = vpop.permute.xlu0 %3589
    %s3592 = sor.u32 256, 8
    %3593 = vbcast.lane.b32.xlu0 %v3587, %s3592
    %v3594 = vpop.permute.xlu0 %3593
    %s3596 = sor.u32 256, 16
    %3597 = vbcast.lane.b32.xlu0 %v3587, %s3596
    %v3598 = vpop.permute.xlu0 %3597
    %s3600 = sor.u32 256, 24
    %3601 = vbcast.lane.b32.xlu0 %v3587, %s3600
    %v3602 = vpop.permute.xlu0 %3601
    %s3604 = sor.u32 256, 32
    %3605 = vbcast.lane.b32.xlu0 %v3587, %s3604
    %v3606 = vpop.permute.xlu0 %3605
    %s3608 = sor.u32 256, 40
    %3609 = vbcast.lane.b32.xlu0 %v3587, %s3608
    %v3610 = vpop.permute.xlu0 %3609
    %s3612 = sor.u32 256, 48
    %3613 = vbcast.lane.b32.xlu0 %v3587, %s3612
    %v3614 = vpop.permute.xlu0 %3613
    %s3616 = sor.u32 256, 56
    %3617 = vbcast.lane.b32.xlu0 %v3587, %s3616
    %v3618 = vpop.permute.xlu0 %3617
    %v3619 = vlaneseq
    %v3620 = vshrl.u32 %v3619, 7
    %v3621 = vsub.s32 1, %v3620
    %v3622 = vrot.slane %v3513, %v3621
    %3624 = vbcast.lane.b32.xlu0 %v3622, 256
    %v3625 = vpop.permute.xlu0 %3624
    %s3627 = sor.u32 256, 8
    %3628 = vbcast.lane.b32.xlu0 %v3622, %s3627
    %v3629 = vpop.permute.xlu0 %3628
    %s3631 = sor.u32 256, 16
    %3632 = vbcast.lane.b32.xlu0 %v3622, %s3631
    %v3633 = vpop.permute.xlu0 %3632
    %s3635 = sor.u32 256, 24
    %3636 = vbcast.lane.b32.xlu0 %v3622, %s3635
    %v3637 = vpop.permute.xlu0 %3636
    %s3639 = sor.u32 256, 32
    %3640 = vbcast.lane.b32.xlu0 %v3622, %s3639
    %v3641 = vpop.permute.xlu0 %3640
    %s3643 = sor.u32 256, 40
    %3644 = vbcast.lane.b32.xlu0 %v3622, %s3643
    %v3645 = vpop.permute.xlu0 %3644
    %s3647 = sor.u32 256, 48
    %3648 = vbcast.lane.b32.xlu0 %v3622, %s3647
    %v3649 = vpop.permute.xlu0 %3648
    %s3651 = sor.u32 256, 56
    %3652 = vbcast.lane.b32.xlu0 %v3622, %s3651
    %v3653 = vpop.permute.xlu0 %3652
    %s3655 = sor.u32 256, 64
    %3656 = vbcast.lane.b32.xlu0 %v3622, %s3655
    %v3657 = vpop.permute.xlu0 %3656
    %s3659 = sor.u32 256, 72
    %3660 = vbcast.lane.b32.xlu0 %v3622, %s3659
    %v3661 = vpop.permute.xlu0 %3660
    %s3663 = sor.u32 256, 80
    %3664 = vbcast.lane.b32.xlu0 %v3622, %s3663
    %v3665 = vpop.permute.xlu0 %3664
    %s3667 = sor.u32 256, 88
    %3668 = vbcast.lane.b32.xlu0 %v3622, %s3667
    %v3669 = vpop.permute.xlu0 %3668
    %s3671 = sor.u32 256, 96
    %3672 = vbcast.lane.b32.xlu0 %v3622, %s3671
    %v3673 = vpop.permute.xlu0 %3672
    %s3675 = sor.u32 256, 104
    %3676 = vbcast.lane.b32.xlu0 %v3622, %s3675
    %v3677 = vpop.permute.xlu0 %3676
    %s3679 = sor.u32 256, 112
    %3680 = vbcast.lane.b32.xlu0 %v3622, %s3679
    %v3681 = vpop.permute.xlu0 %3680
    %s3683 = sor.u32 256, 120
    %3684 = vbcast.lane.b32.xlu0 %v3622, %s3683
    %v3685 = vpop.permute.xlu0 %3684
    %v3686 = vlaneseq
    %v3687 = vshrl.u32 %v3686, 7
    %v3688 = vsub.s32 1, %v3687
    %v3689 = vrot.slane %v3514, %v3688
    %3691 = vbcast.lane.b32.xlu0 %v3689, 256
    %v3692 = vpop.permute.xlu0 %3691
    %s3694 = sor.u32 256, 8
    %3695 = vbcast.lane.b32.xlu0 %v3689, %s3694
    %v3696 = vpop.permute.xlu0 %3695
    %s3698 = sor.u32 256, 16
    %3699 = vbcast.lane.b32.xlu0 %v3689, %s3698
    %v3700 = vpop.permute.xlu0 %3699
    %s3702 = sor.u32 256, 24
    %3703 = vbcast.lane.b32.xlu0 %v3689, %s3702
    %v3704 = vpop.permute.xlu0 %3703
    %s3706 = sor.u32 256, 32
    %3707 = vbcast.lane.b32.xlu0 %v3689, %s3706
    %v3708 = vpop.permute.xlu0 %3707
    %s3710 = sor.u32 256, 40
    %3711 = vbcast.lane.b32.xlu0 %v3689, %s3710
    %v3712 = vpop.permute.xlu0 %3711
    %s3714 = sor.u32 256, 48
    %3715 = vbcast.lane.b32.xlu0 %v3689, %s3714
    %v3716 = vpop.permute.xlu0 %3715
    %s3718 = sor.u32 256, 56
    %3719 = vbcast.lane.b32.xlu0 %v3689, %s3718
    %v3720 = vpop.permute.xlu0 %3719
    %v3721 = vsub.f32 %v290, %v3523
    %v3722 = vsub.f32 %v292, %v3523
    %v3723 = vsub.f32 %v294, %v3527
    %v3724 = vsub.f32 %v296, %v3527
    %v3725 = vsub.f32 %v300, %v3531
    %v3726 = vsub.f32 %v302, %v3531
    %v3727 = vsub.f32 %v304, %v3535
    %v3728 = vsub.f32 %v306, %v3535
    %v3729 = vsub.f32 %v310, %v3539
    %v3730 = vsub.f32 %v312, %v3539
    %v3731 = vsub.f32 %v314, %v3543
    %v3732 = vsub.f32 %v316, %v3543
    %v3733 = vsub.f32 %v320, %v3547
    %v3734 = vsub.f32 %v322, %v3547
    %v3735 = vsub.f32 %v324, %v3551
    %v3736 = vsub.f32 %v326, %v3551
    %v3737 = vsub.f32 %v330, %v3555
    %v3738 = vsub.f32 %v332, %v3555
    %v3739 = vsub.f32 %v334, %v3559
    %v3740 = vsub.f32 %v336, %v3559
    %v3741 = vsub.f32 %v340, %v3563
    %v3742 = vsub.f32 %v342, %v3563
    %v3743 = vsub.f32 %v344, %v3567
    %v3744 = vsub.f32 %v346, %v3567
    %v3745 = vsub.f32 %v350, %v3571
    %v3746 = vsub.f32 %v352, %v3571
    %v3747 = vsub.f32 %v354, %v3575
    %v3748 = vsub.f32 %v356, %v3575
    %v3749 = vsub.f32 %v360, %v3579
    %v3750 = vsub.f32 %v362, %v3579
    %v3751 = vsub.f32 %v364, %v3583
    %v3752 = vsub.f32 %v366, %v3583
    %v3753 = vsub.f32 %v370, %v3590
    %v3754 = vsub.f32 %v372, %v3590
    %v3755 = vsub.f32 %v374, %v3594
    %v3756 = vsub.f32 %v376, %v3594
    %v3757 = vsub.f32 %v380, %v3598
    %v3758 = vsub.f32 %v382, %v3598
    %v3759 = vsub.f32 %v384, %v3602
    %v3760 = vsub.f32 %v386, %v3602
    %v3761 = vsub.f32 %v390, %v3606
    %v3762 = vsub.f32 %v392, %v3606
    %v3763 = vsub.f32 %v394, %v3610
    %v3764 = vsub.f32 %v396, %v3610
    %v3765 = vsub.f32 %v400, %v3614
    %v3766 = vsub.f32 %v402, %v3614
    %v3767 = vsub.f32 %v404, %v3618
    %v3768 = vsub.f32 %v406, %v3618
    %v3769 = vsub.f32 %v559, %v3625
    %v3770 = vsub.f32 %v561, %v3625
    %v3771 = vsub.f32 %v563, %v3629
    %v3772 = vsub.f32 %v565, %v3629
    %v3773 = vsub.f32 %v569, %v3633
    %v3774 = vsub.f32 %v571, %v3633
    %v3775 = vsub.f32 %v573, %v3637
    %v3776 = vsub.f32 %v575, %v3637
    %v3777 = vsub.f32 %v579, %v3641
    %v3778 = vsub.f32 %v581, %v3641
    %v3779 = vsub.f32 %v583, %v3645
    %v3780 = vsub.f32 %v585, %v3645
    %v3781 = vsub.f32 %v589, %v3649
    %v3782 = vsub.f32 %v591, %v3649
    %v3783 = vsub.f32 %v593, %v3653
    %v3784 = vsub.f32 %v595, %v3653
    %v3785 = vsub.f32 %v599, %v3657
    %v3786 = vsub.f32 %v601, %v3657
    %v3787 = vsub.f32 %v603, %v3661
    %v3788 = vsub.f32 %v605, %v3661
    %v3789 = vsub.f32 %v609, %v3665
    %v3790 = vsub.f32 %v611, %v3665
    %v3791 = vsub.f32 %v613, %v3669
    %v3792 = vsub.f32 %v615, %v3669
    %v3793 = vsub.f32 %v619, %v3673
    %v3794 = vsub.f32 %v621, %v3673
    %v3795 = vsub.f32 %v623, %v3677
    %v3796 = vsub.f32 %v625, %v3677
    %v3797 = vsub.f32 %v629, %v3681
    %v3798 = vsub.f32 %v631, %v3681
    %v3799 = vsub.f32 %v633, %v3685
    %v3800 = vsub.f32 %v635, %v3685
    %v3801 = vsub.f32 %v639, %v3692
    %v3802 = vsub.f32 %v641, %v3692
    %v3803 = vsub.f32 %v643, %v3696
    %v3804 = vsub.f32 %v645, %v3696
    %v3805 = vsub.f32 %v649, %v3700
    %v3806 = vsub.f32 %v651, %v3700
    %v3807 = vsub.f32 %v653, %v3704
    %v3808 = vsub.f32 %v655, %v3704
    %v3809 = vsub.f32 %v659, %v3708
    %v3810 = vsub.f32 %v661, %v3708
    %v3811 = vsub.f32 %v663, %v3712
    %v3812 = vsub.f32 %v665, %v3712
    %v3813 = vsub.f32 %v669, %v3716
    %v3814 = vsub.f32 %v671, %v3716
    %v3815 = vsub.f32 %v673, %v3720
    %v3816 = vsub.f32 %v675, %v3720
    %v3817 = vmul.f32 %v3721, 1.442695
    %v3818 = vpow.pop %v3817
    %v3819 = vmul.f32 %v3722, 1.442695
    %v3820 = vpow.pop %v3819
    %v3821 = vmul.f32 %v3723, 1.442695
    %v3822 = vpow.pop %v3821
    %v3823 = vmul.f32 %v3724, 1.442695
    %v3824 = vpow.pop %v3823
    %v3825 = vmul.f32 %v3725, 1.442695
    %v3826 = vpow.pop %v3825
    %v3827 = vmul.f32 %v3726, 1.442695
    %v3828 = vpow.pop %v3827
    %v3829 = vmul.f32 %v3727, 1.442695
    %v3830 = vpow.pop %v3829
    %v3831 = vmul.f32 %v3728, 1.442695
    %v3832 = vpow.pop %v3831
    %v3833 = vmul.f32 %v3729, 1.442695
    %v3834 = vpow.pop %v3833
    %v3835 = vmul.f32 %v3730, 1.442695
    %v3836 = vpow.pop %v3835
    %v3837 = vmul.f32 %v3731, 1.442695
    %v3838 = vpow.pop %v3837
    %v3839 = vmul.f32 %v3732, 1.442695
    %v3840 = vpow.pop %v3839
    %v3841 = vmul.f32 %v3733, 1.442695
    %v3842 = vpow.pop %v3841
    %v3843 = vmul.f32 %v3734, 1.442695
    %v3844 = vpow.pop %v3843
    %v3845 = vmul.f32 %v3735, 1.442695
    %v3846 = vpow.pop %v3845
    %v3847 = vmul.f32 %v3736, 1.442695
    %v3848 = vpow.pop %v3847
    %v3849 = vmul.f32 %v3737, 1.442695
    %v3850 = vpow.pop %v3849
    %v3851 = vmul.f32 %v3738, 1.442695
    %v3852 = vpow.pop %v3851
    %v3853 = vmul.f32 %v3739, 1.442695
    %v3854 = vpow.pop %v3853
    %v3855 = vmul.f32 %v3740, 1.442695
    %v3856 = vpow.pop %v3855
    %v3857 = vmul.f32 %v3741, 1.442695
    %v3858 = vpow.pop %v3857
    %v3859 = vmul.f32 %v3742, 1.442695
    %v3860 = vpow.pop %v3859
    %v3861 = vmul.f32 %v3743, 1.442695
    %v3862 = vpow.pop %v3861
    %v3863 = vmul.f32 %v3744, 1.442695
    %v3864 = vpow.pop %v3863
    %v3865 = vmul.f32 %v3745, 1.442695
    %v3866 = vpow.pop %v3865
    %v3867 = vmul.f32 %v3746, 1.442695
    %v3868 = vpow.pop %v3867
    %v3869 = vmul.f32 %v3747, 1.442695
    %v3870 = vpow.pop %v3869
    %v3871 = vmul.f32 %v3748, 1.442695
    %v3872 = vpow.pop %v3871
    %v3873 = vmul.f32 %v3749, 1.442695
    %v3874 = vpow.pop %v3873
    %v3875 = vmul.f32 %v3750, 1.442695
    %v3876 = vpow.pop %v3875
    %v3877 = vmul.f32 %v3751, 1.442695
    %v3878 = vpow.pop %v3877
    %v3879 = vmul.f32 %v3752, 1.442695
    %v3880 = vpow.pop %v3879
    %v3881 = vmul.f32 %v3753, 1.442695
    %v3882 = vpow.pop %v3881
    %v3883 = vmul.f32 %v3754, 1.442695
    %v3884 = vpow.pop %v3883
    %v3885 = vmul.f32 %v3755, 1.442695
    %v3886 = vpow.pop %v3885
    %v3887 = vmul.f32 %v3756, 1.442695
    %v3888 = vpow.pop %v3887
    %v3889 = vmul.f32 %v3757, 1.442695
    %v3890 = vpow.pop %v3889
    %v3891 = vmul.f32 %v3758, 1.442695
    %v3892 = vpow.pop %v3891
    %v3893 = vmul.f32 %v3759, 1.442695
    %v3894 = vpow.pop %v3893
    %v3895 = vmul.f32 %v3760, 1.442695
    %v3896 = vpow.pop %v3895
    %v3897 = vmul.f32 %v3761, 1.442695
    %v3898 = vpow.pop %v3897
    %v3899 = vmul.f32 %v3762, 1.442695
    %v3900 = vpow.pop %v3899
    %v3901 = vmul.f32 %v3763, 1.442695
    %v3902 = vpow.pop %v3901
    %v3903 = vmul.f32 %v3764, 1.442695
    %v3904 = vpow.pop %v3903
    %v3905 = vmul.f32 %v3765, 1.442695
    %v3906 = vpow.pop %v3905
    %v3907 = vmul.f32 %v3766, 1.442695
    %v3908 = vpow.pop %v3907
    %v3909 = vmul.f32 %v3767, 1.442695
    %v3910 = vpow.pop %v3909
    %v3911 = vmul.f32 %v3768, 1.442695
    %v3912 = vpow.pop %v3911
    %v3913 = vmul.f32 %v3769, 1.442695
    %v3914 = vpow.pop %v3913
    %v3915 = vmul.f32 %v3770, 1.442695
    %v3916 = vpow.pop %v3915
    %v3917 = vmul.f32 %v3771, 1.442695
    %v3918 = vpow.pop %v3917
    %v3919 = vmul.f32 %v3772, 1.442695
    %v3920 = vpow.pop %v3919
    %v3921 = vmul.f32 %v3773, 1.442695
    %v3922 = vpow.pop %v3921
    %v3923 = vmul.f32 %v3774, 1.442695
    %v3924 = vpow.pop %v3923
    %v3925 = vmul.f32 %v3775, 1.442695
    %v3926 = vpow.pop %v3925
    %v3927 = vmul.f32 %v3776, 1.442695
    %v3928 = vpow.pop %v3927
    %v3929 = vmul.f32 %v3777, 1.442695
    %v3930 = vpow.pop %v3929
    %v3931 = vmul.f32 %v3778, 1.442695
    %v3932 = vpow.pop %v3931
    %v3933 = vmul.f32 %v3779, 1.442695
    %v3934 = vpow.pop %v3933
    %v3935 = vmul.f32 %v3780, 1.442695
    %v3936 = vpow.pop %v3935
    %v3937 = vmul.f32 %v3781, 1.442695
    %v3938 = vpow.pop %v3937
    %v3939 = vmul.f32 %v3782, 1.442695
    %v3940 = vpow.pop %v3939
    %v3941 = vmul.f32 %v3783, 1.442695
    %v3942 = vpow.pop %v3941
    %v3943 = vmul.f32 %v3784, 1.442695
    %v3944 = vpow.pop %v3943
    %v3945 = vmul.f32 %v3785, 1.442695
    %v3946 = vpow.pop %v3945
    %v3947 = vmul.f32 %v3786, 1.442695
    %v3948 = vpow.pop %v3947
    %v3949 = vmul.f32 %v3787, 1.442695
    %v3950 = vpow.pop %v3949
    %v3951 = vmul.f32 %v3788, 1.442695
    %v3952 = vpow.pop %v3951
    %v3953 = vmul.f32 %v3789, 1.442695
    %v3954 = vpow.pop %v3953
    %v3955 = vmul.f32 %v3790, 1.442695
    %v3956 = vpow.pop %v3955
    %v3957 = vmul.f32 %v3791, 1.442695
    %v3958 = vpow.pop %v3957
    %v3959 = vmul.f32 %v3792, 1.442695
    %v3960 = vpow.pop %v3959
    %v3961 = vmul.f32 %v3793, 1.442695
    %v3962 = vpow.pop %v3961
    %v3963 = vmul.f32 %v3794, 1.442695
    %v3964 = vpow.pop %v3963
    %v3965 = vmul.f32 %v3795, 1.442695
    %v3966 = vpow.pop %v3965
    %v3967 = vmul.f32 %v3796, 1.442695
    %v3968 = vpow.pop %v3967
    %v3969 = vmul.f32 %v3797, 1.442695
    %v3970 = vpow.pop %v3969
    %v3971 = vmul.f32 %v3798, 1.442695
    %v3972 = vpow.pop %v3971
    %v3973 = vmul.f32 %v3799, 1.442695
    %v3974 = vpow.pop %v3973
    %v3975 = vmul.f32 %v3800, 1.442695
    %v3976 = vpow.pop %v3975
    %v3977 = vmul.f32 %v3801, 1.442695
    %v3978 = vpow.pop %v3977
    %v3979 = vmul.f32 %v3802, 1.442695
    %v3980 = vpow.pop %v3979
    %v3981 = vmul.f32 %v3803, 1.442695
    %v3982 = vpow.pop %v3981
    %v3983 = vmul.f32 %v3804, 1.442695
    %v3984 = vpow.pop %v3983
    %v3985 = vmul.f32 %v3805, 1.442695
    %v3986 = vpow.pop %v3985
    %v3987 = vmul.f32 %v3806, 1.442695
    %v3988 = vpow.pop %v3987
    %v3989 = vmul.f32 %v3807, 1.442695
    %v3990 = vpow.pop %v3989
    %v3991 = vmul.f32 %v3808, 1.442695
    %v3992 = vpow.pop %v3991
    %v3993 = vmul.f32 %v3809, 1.442695
    %v3994 = vpow.pop %v3993
    %v3995 = vmul.f32 %v3810, 1.442695
    %v3996 = vpow.pop %v3995
    %v3997 = vmul.f32 %v3811, 1.442695
    %v3998 = vpow.pop %v3997
    %v3999 = vmul.f32 %v3812, 1.442695
    %v4000 = vpow.pop %v3999
    %v4001 = vmul.f32 %v3813, 1.442695
    %v4002 = vpow.pop %v4001
    %v4003 = vmul.f32 %v3814, 1.442695
    %v4004 = vpow.pop %v4003
    %v4005 = vmul.f32 %v3815, 1.442695
    %v4006 = vpow.pop %v4005
    %v4007 = vmul.f32 %v3816, 1.442695
    %v4008 = vpow.pop %v4007
    %v4009 = vmul.f32 %v3818, %v90
    %v4010 = vmul.f32 %v3820, %v91
    %v4011 = vmul.f32 %v3822, %v92
    %v4012 = vmul.f32 %v3824, %v93
    %v4013 = vmul.f32 %v3826, %v94
    %v4014 = vmul.f32 %v3828, %v95
    %v4015 = vmul.f32 %v3830, %v96
    %v4016 = vmul.f32 %v3832, %v97
    %v4017 = vmul.f32 %v3834, %v98
    %v4018 = vmul.f32 %v3836, %v99
    %v4019 = vmul.f32 %v3838, %v100
    %v4020 = vmul.f32 %v3840, %v101
    %v4021 = vmul.f32 %v3842, %v102
    %v4022 = vmul.f32 %v3844, %v103
    %v4023 = vmul.f32 %v3846, %v104
    %v4024 = vmul.f32 %v3848, %v105
    %v4025 = vmul.f32 %v3850, %v106
    %v4026 = vmul.f32 %v3852, %v107
    %v4027 = vmul.f32 %v3854, %v108
    %v4028 = vmul.f32 %v3856, %v109
    %v4029 = vmul.f32 %v3858, %v110
    %v4030 = vmul.f32 %v3860, %v111
    %v4031 = vmul.f32 %v3862, %v112
    %v4032 = vmul.f32 %v3864, %v113
    %v4033 = vmul.f32 %v3866, %v114
    %v4034 = vmul.f32 %v3868, %v115
    %v4035 = vmul.f32 %v3870, %v116
    %v4036 = vmul.f32 %v3872, %v117
    %v4037 = vmul.f32 %v3874, %v118
    %v4038 = vmul.f32 %v3876, %v119
    %v4039 = vmul.f32 %v3878, %v120
    %v4040 = vmul.f32 %v3880, %v121
    %v4041 = vmul.f32 %v3882, %v122
    %v4042 = vmul.f32 %v3884, %v123
    %v4043 = vmul.f32 %v3886, %v124
    %v4044 = vmul.f32 %v3888, %v125
    %v4045 = vmul.f32 %v3890, %v126
    %v4046 = vmul.f32 %v3892, %v127
    %v4047 = vmul.f32 %v3894, %v128
    %v4048 = vmul.f32 %v3896, %v129
    %v4049 = vmul.f32 %v3898, %v130
    %v4050 = vmul.f32 %v3900, %v131
    %v4051 = vmul.f32 %v3902, %v132
    %v4052 = vmul.f32 %v3904, %v133
    %v4053 = vmul.f32 %v3906, %v134
    %v4054 = vmul.f32 %v3908, %v135
    %v4055 = vmul.f32 %v3910, %v136
    %v4056 = vmul.f32 %v3912, %v137
    %v4057 = vmul.f32 %v3914, %v90
    %v4058 = vmul.f32 %v3916, %v91
    %v4059 = vmul.f32 %v3918, %v92
    %v4060 = vmul.f32 %v3920, %v93
    %v4061 = vmul.f32 %v3922, %v94
    %v4062 = vmul.f32 %v3924, %v95
    %v4063 = vmul.f32 %v3926, %v96
    %v4064 = vmul.f32 %v3928, %v97
    %v4065 = vmul.f32 %v3930, %v98
    %v4066 = vmul.f32 %v3932, %v99
    %v4067 = vmul.f32 %v3934, %v100
    %v4068 = vmul.f32 %v3936, %v101
    %v4069 = vmul.f32 %v3938, %v102
    %v4070 = vmul.f32 %v3940, %v103
    %v4071 = vmul.f32 %v3942, %v104
    %v4072 = vmul.f32 %v3944, %v105
    %v4073 = vmul.f32 %v3946, %v106
    %v4074 = vmul.f32 %v3948, %v107
    %v4075 = vmul.f32 %v3950, %v108
    %v4076 = vmul.f32 %v3952, %v109
    %v4077 = vmul.f32 %v3954, %v110
    %v4078 = vmul.f32 %v3956, %v111
    %v4079 = vmul.f32 %v3958, %v112
    %v4080 = vmul.f32 %v3960, %v113
    %v4081 = vmul.f32 %v3962, %v114
    %v4082 = vmul.f32 %v3964, %v115
    %v4083 = vmul.f32 %v3966, %v116
    %v4084 = vmul.f32 %v3968, %v117
    %v4085 = vmul.f32 %v3970, %v118
    %v4086 = vmul.f32 %v3972, %v119
    %v4087 = vmul.f32 %v3974, %v120
    %v4088 = vmul.f32 %v3976, %v121
    %v4089 = vmul.f32 %v3978, %v122
    %v4090 = vmul.f32 %v3980, %v123
    %v4091 = vmul.f32 %v3982, %v124
    %v4092 = vmul.f32 %v3984, %v125
    %v4093 = vmul.f32 %v3986, %v126
    %v4094 = vmul.f32 %v3988, %v127
    %v4095 = vmul.f32 %v3990, %v128
    %v4096 = vmul.f32 %v3992, %v129
    %v4097 = vmul.f32 %v3994, %v130
    %v4098 = vmul.f32 %v3996, %v131
    %v4099 = vmul.f32 %v3998, %v132
    %v4100 = vmul.f32 %v4000, %v133
    %v4101 = vmul.f32 %v4002, %v134
    %v4102 = vmul.f32 %v4004, %v135
    %v4103 = vmul.f32 %v4006, %v136
    %v4104 = vmul.f32 %v4008, %v137
    %v4105 = vsel %vm677, %v4010, 0.0
    %v4106 = vadd.f32 %v4009, %v4105
    %4107 = vadd.xlane.f32.xlu0 %v4106
    %v4108 = vpop.xlane.xlu0 %4107
    %v4109 = vsel %vm677, %v4012, 0.0
    %v4110 = vadd.f32 %v4011, %v4109
    %4111 = vadd.xlane.f32.xlu0 %v4110
    %v4112 = vpop.xlane.xlu0 %4111
    %v4113 = vsel %vm677, %v4014, 0.0
    %v4114 = vadd.f32 %v4013, %v4113
    %4115 = vadd.xlane.f32.xlu0 %v4114
    %v4116 = vpop.xlane.xlu0 %4115
    %v4117 = vsel %vm677, %v4016, 0.0
    %v4118 = vadd.f32 %v4015, %v4117
    %4119 = vadd.xlane.f32.xlu0 %v4118
    %v4120 = vpop.xlane.xlu0 %4119
    %v4121 = vsel %vm677, %v4018, 0.0
    %v4122 = vadd.f32 %v4017, %v4121
    %4123 = vadd.xlane.f32.xlu0 %v4122
    %v4124 = vpop.xlane.xlu0 %4123
    %v4125 = vsel %vm677, %v4020, 0.0
    %v4126 = vadd.f32 %v4019, %v4125
    %4127 = vadd.xlane.f32.xlu0 %v4126
    %v4128 = vpop.xlane.xlu0 %4127
    %v4129 = vsel %vm677, %v4022, 0.0
    %v4130 = vadd.f32 %v4021, %v4129
    %4131 = vadd.xlane.f32.xlu0 %v4130
    %v4132 = vpop.xlane.xlu0 %4131
    %v4133 = vsel %vm677, %v4024, 0.0
    %v4134 = vadd.f32 %v4023, %v4133
    %4135 = vadd.xlane.f32.xlu0 %v4134
    %v4136 = vpop.xlane.xlu0 %4135
    %v4137 = vsel %vm677, %v4026, 0.0
    %v4138 = vadd.f32 %v4025, %v4137
    %4139 = vadd.xlane.f32.xlu0 %v4138
    %v4140 = vpop.xlane.xlu0 %4139
    %v4141 = vsel %vm677, %v4028, 0.0
    %v4142 = vadd.f32 %v4027, %v4141
    %4143 = vadd.xlane.f32.xlu0 %v4142
    %v4144 = vpop.xlane.xlu0 %4143
    %v4145 = vsel %vm677, %v4030, 0.0
    %v4146 = vadd.f32 %v4029, %v4145
    %4147 = vadd.xlane.f32.xlu0 %v4146
    %v4148 = vpop.xlane.xlu0 %4147
    %v4149 = vsel %vm677, %v4032, 0.0
    %v4150 = vadd.f32 %v4031, %v4149
    %4151 = vadd.xlane.f32.xlu0 %v4150
    %v4152 = vpop.xlane.xlu0 %4151
    %v4153 = vsel %vm677, %v4034, 0.0
    %v4154 = vadd.f32 %v4033, %v4153
    %4155 = vadd.xlane.f32.xlu0 %v4154
    %v4156 = vpop.xlane.xlu0 %4155
    %v4157 = vsel %vm677, %v4036, 0.0
    %v4158 = vadd.f32 %v4035, %v4157
    %4159 = vadd.xlane.f32.xlu0 %v4158
    %v4160 = vpop.xlane.xlu0 %4159
    %v4161 = vsel %vm677, %v4038, 0.0
    %v4162 = vadd.f32 %v4037, %v4161
    %4163 = vadd.xlane.f32.xlu0 %v4162
    %v4164 = vpop.xlane.xlu0 %4163
    %v4165 = vsel %vm677, %v4040, 0.0
    %v4166 = vadd.f32 %v4039, %v4165
    %4167 = vadd.xlane.f32.xlu0 %v4166
    %v4168 = vpop.xlane.xlu0 %4167
    %v4169 = vsel %vm677, %v4042, 0.0
    %v4170 = vadd.f32 %v4041, %v4169
    %4171 = vadd.xlane.f32.xlu0 %v4170
    %v4172 = vpop.xlane.xlu0 %4171
    %v4173 = vsel %vm677, %v4044, 0.0
    %v4174 = vadd.f32 %v4043, %v4173
    %4175 = vadd.xlane.f32.xlu0 %v4174
    %v4176 = vpop.xlane.xlu0 %4175
    %v4177 = vsel %vm677, %v4046, 0.0
    %v4178 = vadd.f32 %v4045, %v4177
    %4179 = vadd.xlane.f32.xlu0 %v4178
    %v4180 = vpop.xlane.xlu0 %4179
    %v4181 = vsel %vm677, %v4048, 0.0
    %v4182 = vadd.f32 %v4047, %v4181
    %4183 = vadd.xlane.f32.xlu0 %v4182
    %v4184 = vpop.xlane.xlu0 %4183
    %v4185 = vsel %vm677, %v4050, 0.0
    %v4186 = vadd.f32 %v4049, %v4185
    %4187 = vadd.xlane.f32.xlu0 %v4186
    %v4188 = vpop.xlane.xlu0 %4187
    %v4189 = vsel %vm677, %v4052, 0.0
    %v4190 = vadd.f32 %v4051, %v4189
    %4191 = vadd.xlane.f32.xlu0 %v4190
    %v4192 = vpop.xlane.xlu0 %4191
    %v4193 = vsel %vm677, %v4054, 0.0
    %v4194 = vadd.f32 %v4053, %v4193
    %4195 = vadd.xlane.f32.xlu0 %v4194
    %v4196 = vpop.xlane.xlu0 %4195
    %v4197 = vsel %vm677, %v4056, 0.0
    %v4198 = vadd.f32 %v4055, %v4197
    %4199 = vadd.xlane.f32.xlu0 %v4198
    %v4200 = vpop.xlane.xlu0 %4199
    %v4201 = vsel %vm677, %v4058, 0.0
    %v4202 = vadd.f32 %v4057, %v4201
    %4203 = vadd.xlane.f32.xlu0 %v4202
    %v4204 = vpop.xlane.xlu0 %4203
    %v4205 = vsel %vm677, %v4060, 0.0
    %v4206 = vadd.f32 %v4059, %v4205
    %4207 = vadd.xlane.f32.xlu0 %v4206
    %v4208 = vpop.xlane.xlu0 %4207
    %v4209 = vsel %vm677, %v4062, 0.0
    %v4210 = vadd.f32 %v4061, %v4209
    %4211 = vadd.xlane.f32.xlu0 %v4210
    %v4212 = vpop.xlane.xlu0 %4211
    %v4213 = vsel %vm677, %v4064, 0.0
    %v4214 = vadd.f32 %v4063, %v4213
    %4215 = vadd.xlane.f32.xlu0 %v4214
    %v4216 = vpop.xlane.xlu0 %4215
    %v4217 = vsel %vm677, %v4066, 0.0
    %v4218 = vadd.f32 %v4065, %v4217
    %4219 = vadd.xlane.f32.xlu0 %v4218
    %v4220 = vpop.xlane.xlu0 %4219
    %v4221 = vsel %vm677, %v4068, 0.0
    %v4222 = vadd.f32 %v4067, %v4221
    %4223 = vadd.xlane.f32.xlu0 %v4222
    %v4224 = vpop.xlane.xlu0 %4223
    %v4225 = vsel %vm677, %v4070, 0.0
    %v4226 = vadd.f32 %v4069, %v4225
    %4227 = vadd.xlane.f32.xlu0 %v4226
    %v4228 = vpop.xlane.xlu0 %4227
    %v4229 = vsel %vm677, %v4072, 0.0
    %v4230 = vadd.f32 %v4071, %v4229
    %4231 = vadd.xlane.f32.xlu0 %v4230
    %v4232 = vpop.xlane.xlu0 %4231
    %v4233 = vsel %vm677, %v4074, 0.0
    %v4234 = vadd.f32 %v4073, %v4233
    %4235 = vadd.xlane.f32.xlu0 %v4234
    %v4236 = vpop.xlane.xlu0 %4235
    %v4237 = vsel %vm677, %v4076, 0.0
    %v4238 = vadd.f32 %v4075, %v4237
    %4239 = vadd.xlane.f32.xlu0 %v4238
    %v4240 = vpop.xlane.xlu0 %4239
    %v4241 = vsel %vm677, %v4078, 0.0
    %v4242 = vadd.f32 %v4077, %v4241
    %4243 = vadd.xlane.f32.xlu0 %v4242
    %v4244 = vpop.xlane.xlu0 %4243
    %v4245 = vsel %vm677, %v4080, 0.0
    %v4246 = vadd.f32 %v4079, %v4245
    %4247 = vadd.xlane.f32.xlu0 %v4246
    %v4248 = vpop.xlane.xlu0 %4247
    %v4249 = vsel %vm677, %v4082, 0.0
    %v4250 = vadd.f32 %v4081, %v4249
    %4251 = vadd.xlane.f32.xlu0 %v4250
    %v4252 = vpop.xlane.xlu0 %4251
    %v4253 = vsel %vm677, %v4084, 0.0
    %v4254 = vadd.f32 %v4083, %v4253
    %4255 = vadd.xlane.f32.xlu0 %v4254
    %v4256 = vpop.xlane.xlu0 %4255
    %v4257 = vsel %vm677, %v4086, 0.0
    %v4258 = vadd.f32 %v4085, %v4257
    %4259 = vadd.xlane.f32.xlu0 %v4258
    %v4260 = vpop.xlane.xlu0 %4259
    %v4261 = vsel %vm677, %v4088, 0.0
    %v4262 = vadd.f32 %v4087, %v4261
    %4263 = vadd.xlane.f32.xlu0 %v4262
    %v4264 = vpop.xlane.xlu0 %4263
    %v4265 = vsel %vm677, %v4090, 0.0
    %v4266 = vadd.f32 %v4089, %v4265
    %4267 = vadd.xlane.f32.xlu0 %v4266
    %v4268 = vpop.xlane.xlu0 %4267
    %v4269 = vsel %vm677, %v4092, 0.0
    %v4270 = vadd.f32 %v4091, %v4269
    %4271 = vadd.xlane.f32.xlu0 %v4270
    %v4272 = vpop.xlane.xlu0 %4271
    %v4273 = vsel %vm677, %v4094, 0.0
    %v4274 = vadd.f32 %v4093, %v4273
    %4275 = vadd.xlane.f32.xlu0 %v4274
    %v4276 = vpop.xlane.xlu0 %4275
    %v4277 = vsel %vm677, %v4096, 0.0
    %v4278 = vadd.f32 %v4095, %v4277
    %4279 = vadd.xlane.f32.xlu0 %v4278
    %v4280 = vpop.xlane.xlu0 %4279
    %v4281 = vsel %vm677, %v4098, 0.0
    %v4282 = vadd.f32 %v4097, %v4281
    %4283 = vadd.xlane.f32.xlu0 %v4282
    %v4284 = vpop.xlane.xlu0 %4283
    %v4285 = vsel %vm677, %v4100, 0.0
    %v4286 = vadd.f32 %v4099, %v4285
    %4287 = vadd.xlane.f32.xlu0 %v4286
    %v4288 = vpop.xlane.xlu0 %4287
    %v4289 = vsel %vm677, %v4102, 0.0
    %v4290 = vadd.f32 %v4101, %v4289
    %4291 = vadd.xlane.f32.xlu0 %v4290
    %v4292 = vpop.xlane.xlu0 %4291
    %v4293 = vsel %vm677, %v4104, 0.0
    %v4294 = vadd.f32 %v4103, %v4293
    %4295 = vadd.xlane.f32.xlu0 %v4294
    %v4296 = vpop.xlane.xlu0 %4295
    %v4346 = vunpack.c.l.s4 269488144
    %v4347 = vunpack.c.0.s8 %v4346
    %v4348 = vlaneseq
    %v4349 = vshrl.u32 %v4348, 7
    %v4350 = vsub.s32 %v4347, %v4349
    %v4351 = vrot.slane %v4108, %v4350
    %v4353 = vunpack.c.l.s4 842150450
    %v4354 = vunpack.c.0.s8 %v4353
    %v4355 = vlaneseq
    %v4356 = vshrl.u32 %v4355, 7
    %v4357 = vsub.s32 %v4354, %v4356
    %v4358 = vrot.slane %v4108, %v4357
    %v4360 = vunpack.c.l.s4 1414812756
    %v4361 = vunpack.c.0.s8 %v4360
    %v4362 = vlaneseq
    %v4363 = vshrl.u32 %v4362, 7
    %v4364 = vsub.s32 %v4361, %v4363
    %v4365 = vrot.slane %v4108, %v4364
    %v4367 = vunpack.c.l.s4 1987475062
    %v4368 = vunpack.c.0.s8 %v4367
    %v4369 = vlaneseq
    %v4370 = vshrl.u32 %v4369, 7
    %v4371 = vsub.s32 %v4368, %v4370
    %v4372 = vrot.slane %v4108, %v4371
    %v4374 = vunpack.c.l.s4 269488144
    %v4375 = vunpack.c.0.s8 %v4374
    %v4376 = vlaneseq
    %v4377 = vshrl.u32 %v4376, 7
    %v4378 = vsub.s32 %v4375, %v4377
    %v4379 = vrot.slane %v4112, %v4378
    %v4381 = vunpack.c.l.s4 842150450
    %v4382 = vunpack.c.0.s8 %v4381
    %v4383 = vlaneseq
    %v4384 = vshrl.u32 %v4383, 7
    %v4385 = vsub.s32 %v4382, %v4384
    %v4386 = vrot.slane %v4112, %v4385
    %v4388 = vunpack.c.l.s4 1414812756
    %v4389 = vunpack.c.0.s8 %v4388
    %v4390 = vlaneseq
    %v4391 = vshrl.u32 %v4390, 7
    %v4392 = vsub.s32 %v4389, %v4391
    %v4393 = vrot.slane %v4112, %v4392
    %v4395 = vunpack.c.l.s4 1987475062
    %v4396 = vunpack.c.0.s8 %v4395
    %v4397 = vlaneseq
    %v4398 = vshrl.u32 %v4397, 7
    %v4399 = vsub.s32 %v4396, %v4398
    %v4400 = vrot.slane %v4112, %v4399
    %v4402 = vunpack.c.l.s4 269488144
    %v4403 = vunpack.c.0.s8 %v4402
    %v4404 = vlaneseq
    %v4405 = vshrl.u32 %v4404, 7
    %v4406 = vsub.s32 %v4403, %v4405
    %v4407 = vrot.slane %v4116, %v4406
    %v4409 = vunpack.c.l.s4 842150450
    %v4410 = vunpack.c.0.s8 %v4409
    %v4411 = vlaneseq
    %v4412 = vshrl.u32 %v4411, 7
    %v4413 = vsub.s32 %v4410, %v4412
    %v4414 = vrot.slane %v4116, %v4413
    %v4416 = vunpack.c.l.s4 1414812756
    %v4417 = vunpack.c.0.s8 %v4416
    %v4418 = vlaneseq
    %v4419 = vshrl.u32 %v4418, 7
    %v4420 = vsub.s32 %v4417, %v4419
    %v4421 = vrot.slane %v4116, %v4420
    %v4423 = vunpack.c.l.s4 1987475062
    %v4424 = vunpack.c.0.s8 %v4423
    %v4425 = vlaneseq
    %v4426 = vshrl.u32 %v4425, 7
    %v4427 = vsub.s32 %v4424, %v4426
    %v4428 = vrot.slane %v4116, %v4427
    %v4430 = vunpack.c.l.s4 269488144
    %v4431 = vunpack.c.0.s8 %v4430
    %v4432 = vlaneseq
    %v4433 = vshrl.u32 %v4432, 7
    %v4434 = vsub.s32 %v4431, %v4433
    %v4435 = vrot.slane %v4120, %v4434
    %v4437 = vunpack.c.l.s4 842150450
    %v4438 = vunpack.c.0.s8 %v4437
    %v4439 = vlaneseq
    %v4440 = vshrl.u32 %v4439, 7
    %v4441 = vsub.s32 %v4438, %v4440
    %v4442 = vrot.slane %v4120, %v4441
    %v4444 = vunpack.c.l.s4 1414812756
    %v4445 = vunpack.c.0.s8 %v4444
    %v4446 = vlaneseq
    %v4447 = vshrl.u32 %v4446, 7
    %v4448 = vsub.s32 %v4445, %v4447
    %v4449 = vrot.slane %v4120, %v4448
    %v4451 = vunpack.c.l.s4 1987475062
    %v4452 = vunpack.c.0.s8 %v4451
    %v4453 = vlaneseq
    %v4454 = vshrl.u32 %v4453, 7
    %v4455 = vsub.s32 %v4452, %v4454
    %v4456 = vrot.slane %v4120, %v4455
    %v4458 = vunpack.c.l.s4 269488144
    %v4459 = vunpack.c.0.s8 %v4458
    %v4460 = vlaneseq
    %v4461 = vshrl.u32 %v4460, 7
    %v4462 = vsub.s32 %v4459, %v4461
    %v4463 = vrot.slane %v4124, %v4462
    %v4465 = vunpack.c.l.s4 842150450
    %v4466 = vunpack.c.0.s8 %v4465
    %v4467 = vlaneseq
    %v4468 = vshrl.u32 %v4467, 7
    %v4469 = vsub.s32 %v4466, %v4468
    %v4470 = vrot.slane %v4124, %v4469
    %v4472 = vunpack.c.l.s4 1414812756
    %v4473 = vunpack.c.0.s8 %v4472
    %v4474 = vlaneseq
    %v4475 = vshrl.u32 %v4474, 7
    %v4476 = vsub.s32 %v4473, %v4475
    %v4477 = vrot.slane %v4124, %v4476
    %v4479 = vunpack.c.l.s4 1987475062
    %v4480 = vunpack.c.0.s8 %v4479
    %v4481 = vlaneseq
    %v4482 = vshrl.u32 %v4481, 7
    %v4483 = vsub.s32 %v4480, %v4482
    %v4484 = vrot.slane %v4124, %v4483
    %v4486 = vunpack.c.l.s4 269488144
    %v4487 = vunpack.c.0.s8 %v4486
    %v4488 = vlaneseq
    %v4489 = vshrl.u32 %v4488, 7
    %v4490 = vsub.s32 %v4487, %v4489
    %v4491 = vrot.slane %v4128, %v4490
    %v4493 = vunpack.c.l.s4 842150450
    %v4494 = vunpack.c.0.s8 %v4493
    %v4495 = vlaneseq
    %v4496 = vshrl.u32 %v4495, 7
    %v4497 = vsub.s32 %v4494, %v4496
    %v4498 = vrot.slane %v4128, %v4497
    %v4500 = vunpack.c.l.s4 1414812756
    %v4501 = vunpack.c.0.s8 %v4500
    %v4502 = vlaneseq
    %v4503 = vshrl.u32 %v4502, 7
    %v4504 = vsub.s32 %v4501, %v4503
    %v4505 = vrot.slane %v4128, %v4504
    %v4507 = vunpack.c.l.s4 1987475062
    %v4508 = vunpack.c.0.s8 %v4507
    %v4509 = vlaneseq
    %v4510 = vshrl.u32 %v4509, 7
    %v4511 = vsub.s32 %v4508, %v4510
    %v4512 = vrot.slane %v4128, %v4511
    %v4514 = vunpack.c.l.s4 269488144
    %v4515 = vunpack.c.0.s8 %v4514
    %v4516 = vlaneseq
    %v4517 = vshrl.u32 %v4516, 7
    %v4518 = vsub.s32 %v4515, %v4517
    %v4519 = vrot.slane %v4132, %v4518
    %v4521 = vunpack.c.l.s4 842150450
    %v4522 = vunpack.c.0.s8 %v4521
    %v4523 = vlaneseq
    %v4524 = vshrl.u32 %v4523, 7
    %v4525 = vsub.s32 %v4522, %v4524
    %v4526 = vrot.slane %v4132, %v4525
    %v4528 = vunpack.c.l.s4 1414812756
    %v4529 = vunpack.c.0.s8 %v4528
    %v4530 = vlaneseq
    %v4531 = vshrl.u32 %v4530, 7
    %v4532 = vsub.s32 %v4529, %v4531
    %v4533 = vrot.slane %v4132, %v4532
    %v4535 = vunpack.c.l.s4 1987475062
    %v4536 = vunpack.c.0.s8 %v4535
    %v4537 = vlaneseq
    %v4538 = vshrl.u32 %v4537, 7
    %v4539 = vsub.s32 %v4536, %v4538
    %v4540 = vrot.slane %v4132, %v4539
    %v4542 = vunpack.c.l.s4 269488144
    %v4543 = vunpack.c.0.s8 %v4542
    %v4544 = vlaneseq
    %v4545 = vshrl.u32 %v4544, 7
    %v4546 = vsub.s32 %v4543, %v4545
    %v4547 = vrot.slane %v4136, %v4546
    %v4549 = vunpack.c.l.s4 842150450
    %v4550 = vunpack.c.0.s8 %v4549
    %v4551 = vlaneseq
    %v4552 = vshrl.u32 %v4551, 7
    %v4553 = vsub.s32 %v4550, %v4552
    %v4554 = vrot.slane %v4136, %v4553
    %v4556 = vunpack.c.l.s4 1414812756
    %v4557 = vunpack.c.0.s8 %v4556
    %v4558 = vlaneseq
    %v4559 = vshrl.u32 %v4558, 7
    %v4560 = vsub.s32 %v4557, %v4559
    %v4561 = vrot.slane %v4136, %v4560
    %v4563 = vunpack.c.l.s4 1987475062
    %v4564 = vunpack.c.0.s8 %v4563
    %v4565 = vlaneseq
    %v4566 = vshrl.u32 %v4565, 7
    %v4567 = vsub.s32 %v4564, %v4566
    %v4568 = vrot.slane %v4136, %v4567
    %v4570 = vunpack.c.l.s4 269488144
    %v4571 = vunpack.c.0.s8 %v4570
    %v4572 = vlaneseq
    %v4573 = vshrl.u32 %v4572, 7
    %v4574 = vsub.s32 %v4571, %v4573
    %v4575 = vrot.slane %v4140, %v4574
    %v4577 = vunpack.c.l.s4 842150450
    %v4578 = vunpack.c.0.s8 %v4577
    %v4579 = vlaneseq
    %v4580 = vshrl.u32 %v4579, 7
    %v4581 = vsub.s32 %v4578, %v4580
    %v4582 = vrot.slane %v4140, %v4581
    %v4584 = vunpack.c.l.s4 1414812756
    %v4585 = vunpack.c.0.s8 %v4584
    %v4586 = vlaneseq
    %v4587 = vshrl.u32 %v4586, 7
    %v4588 = vsub.s32 %v4585, %v4587
    %v4589 = vrot.slane %v4140, %v4588
    %v4591 = vunpack.c.l.s4 1987475062
    %v4592 = vunpack.c.0.s8 %v4591
    %v4593 = vlaneseq
    %v4594 = vshrl.u32 %v4593, 7
    %v4595 = vsub.s32 %v4592, %v4594
    %v4596 = vrot.slane %v4140, %v4595
    %v4598 = vunpack.c.l.s4 269488144
    %v4599 = vunpack.c.0.s8 %v4598
    %v4600 = vlaneseq
    %v4601 = vshrl.u32 %v4600, 7
    %v4602 = vsub.s32 %v4599, %v4601
    %v4603 = vrot.slane %v4144, %v4602
    %v4605 = vunpack.c.l.s4 842150450
    %v4606 = vunpack.c.0.s8 %v4605
    %v4607 = vlaneseq
    %v4608 = vshrl.u32 %v4607, 7
    %v4609 = vsub.s32 %v4606, %v4608
    %v4610 = vrot.slane %v4144, %v4609
    %v4612 = vunpack.c.l.s4 1414812756
    %v4613 = vunpack.c.0.s8 %v4612
    %v4614 = vlaneseq
    %v4615 = vshrl.u32 %v4614, 7
    %v4616 = vsub.s32 %v4613, %v4615
    %v4617 = vrot.slane %v4144, %v4616
    %v4619 = vunpack.c.l.s4 1987475062
    %v4620 = vunpack.c.0.s8 %v4619
    %v4621 = vlaneseq
    %v4622 = vshrl.u32 %v4621, 7
    %v4623 = vsub.s32 %v4620, %v4622
    %v4624 = vrot.slane %v4144, %v4623
    %v4626 = vunpack.c.l.s4 269488144
    %v4627 = vunpack.c.0.s8 %v4626
    %v4628 = vlaneseq
    %v4629 = vshrl.u32 %v4628, 7
    %v4630 = vsub.s32 %v4627, %v4629
    %v4631 = vrot.slane %v4148, %v4630
    %v4633 = vunpack.c.l.s4 842150450
    %v4634 = vunpack.c.0.s8 %v4633
    %v4635 = vlaneseq
    %v4636 = vshrl.u32 %v4635, 7
    %v4637 = vsub.s32 %v4634, %v4636
    %v4638 = vrot.slane %v4148, %v4637
    %v4640 = vunpack.c.l.s4 1414812756
    %v4641 = vunpack.c.0.s8 %v4640
    %v4642 = vlaneseq
    %v4643 = vshrl.u32 %v4642, 7
    %v4644 = vsub.s32 %v4641, %v4643
    %v4645 = vrot.slane %v4148, %v4644
    %v4647 = vunpack.c.l.s4 1987475062
    %v4648 = vunpack.c.0.s8 %v4647
    %v4649 = vlaneseq
    %v4650 = vshrl.u32 %v4649, 7
    %v4651 = vsub.s32 %v4648, %v4650
    %v4652 = vrot.slane %v4148, %v4651
    %v4654 = vunpack.c.l.s4 269488144
    %v4655 = vunpack.c.0.s8 %v4654
    %v4656 = vlaneseq
    %v4657 = vshrl.u32 %v4656, 7
    %v4658 = vsub.s32 %v4655, %v4657
    %v4659 = vrot.slane %v4152, %v4658
    %v4661 = vunpack.c.l.s4 842150450
    %v4662 = vunpack.c.0.s8 %v4661
    %v4663 = vlaneseq
    %v4664 = vshrl.u32 %v4663, 7
    %v4665 = vsub.s32 %v4662, %v4664
    %v4666 = vrot.slane %v4152, %v4665
    %v4668 = vunpack.c.l.s4 1414812756
    %v4669 = vunpack.c.0.s8 %v4668
    %v4670 = vlaneseq
    %v4671 = vshrl.u32 %v4670, 7
    %v4672 = vsub.s32 %v4669, %v4671
    %v4673 = vrot.slane %v4152, %v4672
    %v4675 = vunpack.c.l.s4 1987475062
    %v4676 = vunpack.c.0.s8 %v4675
    %v4677 = vlaneseq
    %v4678 = vshrl.u32 %v4677, 7
    %v4679 = vsub.s32 %v4676, %v4678
    %v4680 = vrot.slane %v4152, %v4679
    %v4682 = vunpack.c.l.s4 269488144
    %v4683 = vunpack.c.0.s8 %v4682
    %v4684 = vlaneseq
    %v4685 = vshrl.u32 %v4684, 7
    %v4686 = vsub.s32 %v4683, %v4685
    %v4687 = vrot.slane %v4156, %v4686
    %v4689 = vunpack.c.l.s4 842150450
    %v4690 = vunpack.c.0.s8 %v4689
    %v4691 = vlaneseq
    %v4692 = vshrl.u32 %v4691, 7
    %v4693 = vsub.s32 %v4690, %v4692
    %v4694 = vrot.slane %v4156, %v4693
    %v4696 = vunpack.c.l.s4 1414812756
    %v4697 = vunpack.c.0.s8 %v4696
    %v4698 = vlaneseq
    %v4699 = vshrl.u32 %v4698, 7
    %v4700 = vsub.s32 %v4697, %v4699
    %v4701 = vrot.slane %v4156, %v4700
    %v4703 = vunpack.c.l.s4 1987475062
    %v4704 = vunpack.c.0.s8 %v4703
    %v4705 = vlaneseq
    %v4706 = vshrl.u32 %v4705, 7
    %v4707 = vsub.s32 %v4704, %v4706
    %v4708 = vrot.slane %v4156, %v4707
    %v4710 = vunpack.c.l.s4 269488144
    %v4711 = vunpack.c.0.s8 %v4710
    %v4712 = vlaneseq
    %v4713 = vshrl.u32 %v4712, 7
    %v4714 = vsub.s32 %v4711, %v4713
    %v4715 = vrot.slane %v4160, %v4714
    %v4717 = vunpack.c.l.s4 842150450
    %v4718 = vunpack.c.0.s8 %v4717
    %v4719 = vlaneseq
    %v4720 = vshrl.u32 %v4719, 7
    %v4721 = vsub.s32 %v4718, %v4720
    %v4722 = vrot.slane %v4160, %v4721
    %v4724 = vunpack.c.l.s4 1414812756
    %v4725 = vunpack.c.0.s8 %v4724
    %v4726 = vlaneseq
    %v4727 = vshrl.u32 %v4726, 7
    %v4728 = vsub.s32 %v4725, %v4727
    %v4729 = vrot.slane %v4160, %v4728
    %v4731 = vunpack.c.l.s4 1987475062
    %v4732 = vunpack.c.0.s8 %v4731
    %v4733 = vlaneseq
    %v4734 = vshrl.u32 %v4733, 7
    %v4735 = vsub.s32 %v4732, %v4734
    %v4736 = vrot.slane %v4160, %v4735
    %v4738 = vunpack.c.l.s4 269488144
    %v4739 = vunpack.c.0.s8 %v4738
    %v4740 = vlaneseq
    %v4741 = vshrl.u32 %v4740, 7
    %v4742 = vsub.s32 %v4739, %v4741
    %v4743 = vrot.slane %v4164, %v4742
    %v4745 = vunpack.c.l.s4 842150450
    %v4746 = vunpack.c.0.s8 %v4745
    %v4747 = vlaneseq
    %v4748 = vshrl.u32 %v4747, 7
    %v4749 = vsub.s32 %v4746, %v4748
    %v4750 = vrot.slane %v4164, %v4749
    %v4752 = vunpack.c.l.s4 1414812756
    %v4753 = vunpack.c.0.s8 %v4752
    %v4754 = vlaneseq
    %v4755 = vshrl.u32 %v4754, 7
    %v4756 = vsub.s32 %v4753, %v4755
    %v4757 = vrot.slane %v4164, %v4756
    %v4759 = vunpack.c.l.s4 1987475062
    %v4760 = vunpack.c.0.s8 %v4759
    %v4761 = vlaneseq
    %v4762 = vshrl.u32 %v4761, 7
    %v4763 = vsub.s32 %v4760, %v4762
    %v4764 = vrot.slane %v4164, %v4763
    %v4766 = vunpack.c.l.s4 269488144
    %v4767 = vunpack.c.0.s8 %v4766
    %v4768 = vlaneseq
    %v4769 = vshrl.u32 %v4768, 7
    %v4770 = vsub.s32 %v4767, %v4769
    %v4771 = vrot.slane %v4168, %v4770
    %v4773 = vunpack.c.l.s4 842150450
    %v4774 = vunpack.c.0.s8 %v4773
    %v4775 = vlaneseq
    %v4776 = vshrl.u32 %v4775, 7
    %v4777 = vsub.s32 %v4774, %v4776
    %v4778 = vrot.slane %v4168, %v4777
    %v4780 = vunpack.c.l.s4 1414812756
    %v4781 = vunpack.c.0.s8 %v4780
    %v4782 = vlaneseq
    %v4783 = vshrl.u32 %v4782, 7
    %v4784 = vsub.s32 %v4781, %v4783
    %v4785 = vrot.slane %v4168, %v4784
    %v4787 = vunpack.c.l.s4 1987475062
    %v4788 = vunpack.c.0.s8 %v4787
    %v4789 = vlaneseq
    %v4790 = vshrl.u32 %v4789, 7
    %v4791 = vsub.s32 %v4788, %v4790
    %v4792 = vrot.slane %v4168, %v4791
    %v4794 = vunpack.c.l.s4 269488144
    %v4795 = vunpack.c.0.s8 %v4794
    %v4796 = vlaneseq
    %v4797 = vshrl.u32 %v4796, 7
    %v4798 = vsub.s32 %v4795, %v4797
    %v4799 = vrot.slane %v4172, %v4798
    %v4801 = vunpack.c.l.s4 842150450
    %v4802 = vunpack.c.0.s8 %v4801
    %v4803 = vlaneseq
    %v4804 = vshrl.u32 %v4803, 7
    %v4805 = vsub.s32 %v4802, %v4804
    %v4806 = vrot.slane %v4172, %v4805
    %v4808 = vunpack.c.l.s4 1414812756
    %v4809 = vunpack.c.0.s8 %v4808
    %v4810 = vlaneseq
    %v4811 = vshrl.u32 %v4810, 7
    %v4812 = vsub.s32 %v4809, %v4811
    %v4813 = vrot.slane %v4172, %v4812
    %v4815 = vunpack.c.l.s4 1987475062
    %v4816 = vunpack.c.0.s8 %v4815
    %v4817 = vlaneseq
    %v4818 = vshrl.u32 %v4817, 7
    %v4819 = vsub.s32 %v4816, %v4818
    %v4820 = vrot.slane %v4172, %v4819
    %v4822 = vunpack.c.l.s4 269488144
    %v4823 = vunpack.c.0.s8 %v4822
    %v4824 = vlaneseq
    %v4825 = vshrl.u32 %v4824, 7
    %v4826 = vsub.s32 %v4823, %v4825
    %v4827 = vrot.slane %v4176, %v4826
    %v4829 = vunpack.c.l.s4 842150450
    %v4830 = vunpack.c.0.s8 %v4829
    %v4831 = vlaneseq
    %v4832 = vshrl.u32 %v4831, 7
    %v4833 = vsub.s32 %v4830, %v4832
    %v4834 = vrot.slane %v4176, %v4833
    %v4836 = vunpack.c.l.s4 1414812756
    %v4837 = vunpack.c.0.s8 %v4836
    %v4838 = vlaneseq
    %v4839 = vshrl.u32 %v4838, 7
    %v4840 = vsub.s32 %v4837, %v4839
    %v4841 = vrot.slane %v4176, %v4840
    %v4843 = vunpack.c.l.s4 1987475062
    %v4844 = vunpack.c.0.s8 %v4843
    %v4845 = vlaneseq
    %v4846 = vshrl.u32 %v4845, 7
    %v4847 = vsub.s32 %v4844, %v4846
    %v4848 = vrot.slane %v4176, %v4847
    %v4850 = vunpack.c.l.s4 269488144
    %v4851 = vunpack.c.0.s8 %v4850
    %v4852 = vlaneseq
    %v4853 = vshrl.u32 %v4852, 7
    %v4854 = vsub.s32 %v4851, %v4853
    %v4855 = vrot.slane %v4180, %v4854
    %v4857 = vunpack.c.l.s4 842150450
    %v4858 = vunpack.c.0.s8 %v4857
    %v4859 = vlaneseq
    %v4860 = vshrl.u32 %v4859, 7
    %v4861 = vsub.s32 %v4858, %v4860
    %v4862 = vrot.slane %v4180, %v4861
    %v4864 = vunpack.c.l.s4 1414812756
    %v4865 = vunpack.c.0.s8 %v4864
    %v4866 = vlaneseq
    %v4867 = vshrl.u32 %v4866, 7
    %v4868 = vsub.s32 %v4865, %v4867
    %v4869 = vrot.slane %v4180, %v4868
    %v4871 = vunpack.c.l.s4 1987475062
    %v4872 = vunpack.c.0.s8 %v4871
    %v4873 = vlaneseq
    %v4874 = vshrl.u32 %v4873, 7
    %v4875 = vsub.s32 %v4872, %v4874
    %v4876 = vrot.slane %v4180, %v4875
    %v4878 = vunpack.c.l.s4 269488144
    %v4879 = vunpack.c.0.s8 %v4878
    %v4880 = vlaneseq
    %v4881 = vshrl.u32 %v4880, 7
    %v4882 = vsub.s32 %v4879, %v4881
    %v4883 = vrot.slane %v4184, %v4882
    %v4885 = vunpack.c.l.s4 842150450
    %v4886 = vunpack.c.0.s8 %v4885
    %v4887 = vlaneseq
    %v4888 = vshrl.u32 %v4887, 7
    %v4889 = vsub.s32 %v4886, %v4888
    %v4890 = vrot.slane %v4184, %v4889
    %v4892 = vunpack.c.l.s4 1414812756
    %v4893 = vunpack.c.0.s8 %v4892
    %v4894 = vlaneseq
    %v4895 = vshrl.u32 %v4894, 7
    %v4896 = vsub.s32 %v4893, %v4895
    %v4897 = vrot.slane %v4184, %v4896
    %v4899 = vunpack.c.l.s4 1987475062
    %v4900 = vunpack.c.0.s8 %v4899
    %v4901 = vlaneseq
    %v4902 = vshrl.u32 %v4901, 7
    %v4903 = vsub.s32 %v4900, %v4902
    %v4904 = vrot.slane %v4184, %v4903
    %v4906 = vunpack.c.l.s4 269488144
    %v4907 = vunpack.c.0.s8 %v4906
    %v4908 = vlaneseq
    %v4909 = vshrl.u32 %v4908, 7
    %v4910 = vsub.s32 %v4907, %v4909
    %v4911 = vrot.slane %v4188, %v4910
    %v4913 = vunpack.c.l.s4 842150450
    %v4914 = vunpack.c.0.s8 %v4913
    %v4915 = vlaneseq
    %v4916 = vshrl.u32 %v4915, 7
    %v4917 = vsub.s32 %v4914, %v4916
    %v4918 = vrot.slane %v4188, %v4917
    %v4920 = vunpack.c.l.s4 1414812756
    %v4921 = vunpack.c.0.s8 %v4920
    %v4922 = vlaneseq
    %v4923 = vshrl.u32 %v4922, 7
    %v4924 = vsub.s32 %v4921, %v4923
    %v4925 = vrot.slane %v4188, %v4924
    %v4927 = vunpack.c.l.s4 1987475062
    %v4928 = vunpack.c.0.s8 %v4927
    %v4929 = vlaneseq
    %v4930 = vshrl.u32 %v4929, 7
    %v4931 = vsub.s32 %v4928, %v4930
    %v4932 = vrot.slane %v4188, %v4931
    %v4934 = vunpack.c.l.s4 269488144
    %v4935 = vunpack.c.0.s8 %v4934
    %v4936 = vlaneseq
    %v4937 = vshrl.u32 %v4936, 7
    %v4938 = vsub.s32 %v4935, %v4937
    %v4939 = vrot.slane %v4192, %v4938
    %v4941 = vunpack.c.l.s4 842150450
    %v4942 = vunpack.c.0.s8 %v4941
    %v4943 = vlaneseq
    %v4944 = vshrl.u32 %v4943, 7
    %v4945 = vsub.s32 %v4942, %v4944
    %v4946 = vrot.slane %v4192, %v4945
    %v4948 = vunpack.c.l.s4 1414812756
    %v4949 = vunpack.c.0.s8 %v4948
    %v4950 = vlaneseq
    %v4951 = vshrl.u32 %v4950, 7
    %v4952 = vsub.s32 %v4949, %v4951
    %v4953 = vrot.slane %v4192, %v4952
    %v4955 = vunpack.c.l.s4 1987475062
    %v4956 = vunpack.c.0.s8 %v4955
    %v4957 = vlaneseq
    %v4958 = vshrl.u32 %v4957, 7
    %v4959 = vsub.s32 %v4956, %v4958
    %v4960 = vrot.slane %v4192, %v4959
    %v4962 = vunpack.c.l.s4 269488144
    %v4963 = vunpack.c.0.s8 %v4962
    %v4964 = vlaneseq
    %v4965 = vshrl.u32 %v4964, 7
    %v4966 = vsub.s32 %v4963, %v4965
    %v4967 = vrot.slane %v4196, %v4966
    %v4969 = vunpack.c.l.s4 842150450
    %v4970 = vunpack.c.0.s8 %v4969
    %v4971 = vlaneseq
    %v4972 = vshrl.u32 %v4971, 7
    %v4973 = vsub.s32 %v4970, %v4972
    %v4974 = vrot.slane %v4196, %v4973
    %v4976 = vunpack.c.l.s4 1414812756
    %v4977 = vunpack.c.0.s8 %v4976
    %v4978 = vlaneseq
    %v4979 = vshrl.u32 %v4978, 7
    %v4980 = vsub.s32 %v4977, %v4979
    %v4981 = vrot.slane %v4196, %v4980
    %v4983 = vunpack.c.l.s4 1987475062
    %v4984 = vunpack.c.0.s8 %v4983
    %v4985 = vlaneseq
    %v4986 = vshrl.u32 %v4985, 7
    %v4987 = vsub.s32 %v4984, %v4986
    %v4988 = vrot.slane %v4196, %v4987
    %v4990 = vunpack.c.l.s4 269488144
    %v4991 = vunpack.c.0.s8 %v4990
    %v4992 = vlaneseq
    %v4993 = vshrl.u32 %v4992, 7
    %v4994 = vsub.s32 %v4991, %v4993
    %v4995 = vrot.slane %v4200, %v4994
    %v4997 = vunpack.c.l.s4 842150450
    %v4998 = vunpack.c.0.s8 %v4997
    %v4999 = vlaneseq
    %v5000 = vshrl.u32 %v4999, 7
    %v5001 = vsub.s32 %v4998, %v5000
    %v5002 = vrot.slane %v4200, %v5001
    %v5004 = vunpack.c.l.s4 1414812756
    %v5005 = vunpack.c.0.s8 %v5004
    %v5006 = vlaneseq
    %v5007 = vshrl.u32 %v5006, 7
    %v5008 = vsub.s32 %v5005, %v5007
    %v5009 = vrot.slane %v4200, %v5008
    %v5011 = vunpack.c.l.s4 1987475062
    %v5012 = vunpack.c.0.s8 %v5011
    %v5013 = vlaneseq
    %v5014 = vshrl.u32 %v5013, 7
    %v5015 = vsub.s32 %v5012, %v5014
    %v5016 = vrot.slane %v4200, %v5015
    %v5018 = vunpack.c.l.s4 269488144
    %v5019 = vunpack.c.0.s8 %v5018
    %v5020 = vlaneseq
    %v5021 = vshrl.u32 %v5020, 7
    %v5022 = vsub.s32 %v5019, %v5021
    %v5023 = vrot.slane %v4204, %v5022
    %v5025 = vunpack.c.l.s4 842150450
    %v5026 = vunpack.c.0.s8 %v5025
    %v5027 = vlaneseq
    %v5028 = vshrl.u32 %v5027, 7
    %v5029 = vsub.s32 %v5026, %v5028
    %v5030 = vrot.slane %v4204, %v5029
    %v5032 = vunpack.c.l.s4 1414812756
    %v5033 = vunpack.c.0.s8 %v5032
    %v5034 = vlaneseq
    %v5035 = vshrl.u32 %v5034, 7
    %v5036 = vsub.s32 %v5033, %v5035
    %v5037 = vrot.slane %v4204, %v5036
    %v5039 = vunpack.c.l.s4 1987475062
    %v5040 = vunpack.c.0.s8 %v5039
    %v5041 = vlaneseq
    %v5042 = vshrl.u32 %v5041, 7
    %v5043 = vsub.s32 %v5040, %v5042
    %v5044 = vrot.slane %v4204, %v5043
    %v5046 = vunpack.c.l.s4 269488144
    %v5047 = vunpack.c.0.s8 %v5046
    %v5048 = vlaneseq
    %v5049 = vshrl.u32 %v5048, 7
    %v5050 = vsub.s32 %v5047, %v5049
    %v5051 = vrot.slane %v4208, %v5050
    %v5053 = vunpack.c.l.s4 842150450
    %v5054 = vunpack.c.0.s8 %v5053
    %v5055 = vlaneseq
    %v5056 = vshrl.u32 %v5055, 7
    %v5057 = vsub.s32 %v5054, %v5056
    %v5058 = vrot.slane %v4208, %v5057
    %v5060 = vunpack.c.l.s4 1414812756
    %v5061 = vunpack.c.0.s8 %v5060
    %v5062 = vlaneseq
    %v5063 = vshrl.u32 %v5062, 7
    %v5064 = vsub.s32 %v5061, %v5063
    %v5065 = vrot.slane %v4208, %v5064
    %v5067 = vunpack.c.l.s4 1987475062
    %v5068 = vunpack.c.0.s8 %v5067
    %v5069 = vlaneseq
    %v5070 = vshrl.u32 %v5069, 7
    %v5071 = vsub.s32 %v5068, %v5070
    %v5072 = vrot.slane %v4208, %v5071
    %v5074 = vunpack.c.l.s4 269488144
    %v5075 = vunpack.c.0.s8 %v5074
    %v5076 = vlaneseq
    %v5077 = vshrl.u32 %v5076, 7
    %v5078 = vsub.s32 %v5075, %v5077
    %v5079 = vrot.slane %v4212, %v5078
    %v5081 = vunpack.c.l.s4 842150450
    %v5082 = vunpack.c.0.s8 %v5081
    %v5083 = vlaneseq
    %v5084 = vshrl.u32 %v5083, 7
    %v5085 = vsub.s32 %v5082, %v5084
    %v5086 = vrot.slane %v4212, %v5085
    %v5088 = vunpack.c.l.s4 1414812756
    %v5089 = vunpack.c.0.s8 %v5088
    %v5090 = vlaneseq
    %v5091 = vshrl.u32 %v5090, 7
    %v5092 = vsub.s32 %v5089, %v5091
    %v5093 = vrot.slane %v4212, %v5092
    %v5095 = vunpack.c.l.s4 1987475062
    %v5096 = vunpack.c.0.s8 %v5095
    %v5097 = vlaneseq
    %v5098 = vshrl.u32 %v5097, 7
    %v5099 = vsub.s32 %v5096, %v5098
    %v5100 = vrot.slane %v4212, %v5099
    %v5102 = vunpack.c.l.s4 269488144
    %v5103 = vunpack.c.0.s8 %v5102
    %v5104 = vlaneseq
    %v5105 = vshrl.u32 %v5104, 7
    %v5106 = vsub.s32 %v5103, %v5105
    %v5107 = vrot.slane %v4216, %v5106
    %v5109 = vunpack.c.l.s4 842150450
    %v5110 = vunpack.c.0.s8 %v5109
    %v5111 = vlaneseq
    %v5112 = vshrl.u32 %v5111, 7
    %v5113 = vsub.s32 %v5110, %v5112
    %v5114 = vrot.slane %v4216, %v5113
    %v5116 = vunpack.c.l.s4 1414812756
    %v5117 = vunpack.c.0.s8 %v5116
    %v5118 = vlaneseq
    %v5119 = vshrl.u32 %v5118, 7
    %v5120 = vsub.s32 %v5117, %v5119
    %v5121 = vrot.slane %v4216, %v5120
    %v5123 = vunpack.c.l.s4 1987475062
    %v5124 = vunpack.c.0.s8 %v5123
    %v5125 = vlaneseq
    %v5126 = vshrl.u32 %v5125, 7
    %v5127 = vsub.s32 %v5124, %v5126
    %v5128 = vrot.slane %v4216, %v5127
    %v5130 = vunpack.c.l.s4 269488144
    %v5131 = vunpack.c.0.s8 %v5130
    %v5132 = vlaneseq
    %v5133 = vshrl.u32 %v5132, 7
    %v5134 = vsub.s32 %v5131, %v5133
    %v5135 = vrot.slane %v4220, %v5134
    %v5137 = vunpack.c.l.s4 842150450
    %v5138 = vunpack.c.0.s8 %v5137
    %v5139 = vlaneseq
    %v5140 = vshrl.u32 %v5139, 7
    %v5141 = vsub.s32 %v5138, %v5140
    %v5142 = vrot.slane %v4220, %v5141
    %v5144 = vunpack.c.l.s4 1414812756
    %v5145 = vunpack.c.0.s8 %v5144
    %v5146 = vlaneseq
    %v5147 = vshrl.u32 %v5146, 7
    %v5148 = vsub.s32 %v5145, %v5147
    %v5149 = vrot.slane %v4220, %v5148
    %v5151 = vunpack.c.l.s4 1987475062
    %v5152 = vunpack.c.0.s8 %v5151
    %v5153 = vlaneseq
    %v5154 = vshrl.u32 %v5153, 7
    %v5155 = vsub.s32 %v5152, %v5154
    %v5156 = vrot.slane %v4220, %v5155
    %v5158 = vunpack.c.l.s4 269488144
    %v5159 = vunpack.c.0.s8 %v5158
    %v5160 = vlaneseq
    %v5161 = vshrl.u32 %v5160, 7
    %v5162 = vsub.s32 %v5159, %v5161
    %v5163 = vrot.slane %v4224, %v5162
    %v5165 = vunpack.c.l.s4 842150450
    %v5166 = vunpack.c.0.s8 %v5165
    %v5167 = vlaneseq
    %v5168 = vshrl.u32 %v5167, 7
    %v5169 = vsub.s32 %v5166, %v5168
    %v5170 = vrot.slane %v4224, %v5169
    %v5172 = vunpack.c.l.s4 1414812756
    %v5173 = vunpack.c.0.s8 %v5172
    %v5174 = vlaneseq
    %v5175 = vshrl.u32 %v5174, 7
    %v5176 = vsub.s32 %v5173, %v5175
    %v5177 = vrot.slane %v4224, %v5176
    %v5179 = vunpack.c.l.s4 1987475062
    %v5180 = vunpack.c.0.s8 %v5179
    %v5181 = vlaneseq
    %v5182 = vshrl.u32 %v5181, 7
    %v5183 = vsub.s32 %v5180, %v5182
    %v5184 = vrot.slane %v4224, %v5183
    %v5186 = vunpack.c.l.s4 269488144
    %v5187 = vunpack.c.0.s8 %v5186
    %v5188 = vlaneseq
    %v5189 = vshrl.u32 %v5188, 7
    %v5190 = vsub.s32 %v5187, %v5189
    %v5191 = vrot.slane %v4228, %v5190
    %v5193 = vunpack.c.l.s4 842150450
    %v5194 = vunpack.c.0.s8 %v5193
    %v5195 = vlaneseq
    %v5196 = vshrl.u32 %v5195, 7
    %v5197 = vsub.s32 %v5194, %v5196
    %v5198 = vrot.slane %v4228, %v5197
    %v5200 = vunpack.c.l.s4 1414812756
    %v5201 = vunpack.c.0.s8 %v5200
    %v5202 = vlaneseq
    %v5203 = vshrl.u32 %v5202, 7
    %v5204 = vsub.s32 %v5201, %v5203
    %v5205 = vrot.slane %v4228, %v5204
    %v5207 = vunpack.c.l.s4 1987475062
    %v5208 = vunpack.c.0.s8 %v5207
    %v5209 = vlaneseq
    %v5210 = vshrl.u32 %v5209, 7
    %v5211 = vsub.s32 %v5208, %v5210
    %v5212 = vrot.slane %v4228, %v5211
    %v5214 = vunpack.c.l.s4 269488144
    %v5215 = vunpack.c.0.s8 %v5214
    %v5216 = vlaneseq
    %v5217 = vshrl.u32 %v5216, 7
    %v5218 = vsub.s32 %v5215, %v5217
    %v5219 = vrot.slane %v4232, %v5218
    %v5221 = vunpack.c.l.s4 842150450
    %v5222 = vunpack.c.0.s8 %v5221
    %v5223 = vlaneseq
    %v5224 = vshrl.u32 %v5223, 7
    %v5225 = vsub.s32 %v5222, %v5224
    %v5226 = vrot.slane %v4232, %v5225
    %v5228 = vunpack.c.l.s4 1414812756
    %v5229 = vunpack.c.0.s8 %v5228
    %v5230 = vlaneseq
    %v5231 = vshrl.u32 %v5230, 7
    %v5232 = vsub.s32 %v5229, %v5231
    %v5233 = vrot.slane %v4232, %v5232
    %v5235 = vunpack.c.l.s4 1987475062
    %v5236 = vunpack.c.0.s8 %v5235
    %v5237 = vlaneseq
    %v5238 = vshrl.u32 %v5237, 7
    %v5239 = vsub.s32 %v5236, %v5238
    %v5240 = vrot.slane %v4232, %v5239
    %v5242 = vunpack.c.l.s4 269488144
    %v5243 = vunpack.c.0.s8 %v5242
    %v5244 = vlaneseq
    %v5245 = vshrl.u32 %v5244, 7
    %v5246 = vsub.s32 %v5243, %v5245
    %v5247 = vrot.slane %v4236, %v5246
    %v5249 = vunpack.c.l.s4 842150450
    %v5250 = vunpack.c.0.s8 %v5249
    %v5251 = vlaneseq
    %v5252 = vshrl.u32 %v5251, 7
    %v5253 = vsub.s32 %v5250, %v5252
    %v5254 = vrot.slane %v4236, %v5253
    %v5256 = vunpack.c.l.s4 1414812756
    %v5257 = vunpack.c.0.s8 %v5256
    %v5258 = vlaneseq
    %v5259 = vshrl.u32 %v5258, 7
    %v5260 = vsub.s32 %v5257, %v5259
    %v5261 = vrot.slane %v4236, %v5260
    %v5263 = vunpack.c.l.s4 1987475062
    %v5264 = vunpack.c.0.s8 %v5263
    %v5265 = vlaneseq
    %v5266 = vshrl.u32 %v5265, 7
    %v5267 = vsub.s32 %v5264, %v5266
    %v5268 = vrot.slane %v4236, %v5267
    %v5270 = vunpack.c.l.s4 269488144
    %v5271 = vunpack.c.0.s8 %v5270
    %v5272 = vlaneseq
    %v5273 = vshrl.u32 %v5272, 7
    %v5274 = vsub.s32 %v5271, %v5273
    %v5275 = vrot.slane %v4240, %v5274
    %v5277 = vunpack.c.l.s4 842150450
    %v5278 = vunpack.c.0.s8 %v5277
    %v5279 = vlaneseq
    %v5280 = vshrl.u32 %v5279, 7
    %v5281 = vsub.s32 %v5278, %v5280
    %v5282 = vrot.slane %v4240, %v5281
    %v5284 = vunpack.c.l.s4 1414812756
    %v5285 = vunpack.c.0.s8 %v5284
    %v5286 = vlaneseq
    %v5287 = vshrl.u32 %v5286, 7
    %v5288 = vsub.s32 %v5285, %v5287
    %v5289 = vrot.slane %v4240, %v5288
    %v5291 = vunpack.c.l.s4 1987475062
    %v5292 = vunpack.c.0.s8 %v5291
    %v5293 = vlaneseq
    %v5294 = vshrl.u32 %v5293, 7
    %v5295 = vsub.s32 %v5292, %v5294
    %v5296 = vrot.slane %v4240, %v5295
    %v5298 = vunpack.c.l.s4 269488144
    %v5299 = vunpack.c.0.s8 %v5298
    %v5300 = vlaneseq
    %v5301 = vshrl.u32 %v5300, 7
    %v5302 = vsub.s32 %v5299, %v5301
    %v5303 = vrot.slane %v4244, %v5302
    %v5305 = vunpack.c.l.s4 842150450
    %v5306 = vunpack.c.0.s8 %v5305
    %v5307 = vlaneseq
    %v5308 = vshrl.u32 %v5307, 7
    %v5309 = vsub.s32 %v5306, %v5308
    %v5310 = vrot.slane %v4244, %v5309
    %v5312 = vunpack.c.l.s4 1414812756
    %v5313 = vunpack.c.0.s8 %v5312
    %v5314 = vlaneseq
    %v5315 = vshrl.u32 %v5314, 7
    %v5316 = vsub.s32 %v5313, %v5315
    %v5317 = vrot.slane %v4244, %v5316
    %v5319 = vunpack.c.l.s4 1987475062
    %v5320 = vunpack.c.0.s8 %v5319
    %v5321 = vlaneseq
    %v5322 = vshrl.u32 %v5321, 7
    %v5323 = vsub.s32 %v5320, %v5322
    %v5324 = vrot.slane %v4244, %v5323
    %v5326 = vunpack.c.l.s4 269488144
    %v5327 = vunpack.c.0.s8 %v5326
    %v5328 = vlaneseq
    %v5329 = vshrl.u32 %v5328, 7
    %v5330 = vsub.s32 %v5327, %v5329
    %v5331 = vrot.slane %v4248, %v5330
    %v5333 = vunpack.c.l.s4 842150450
    %v5334 = vunpack.c.0.s8 %v5333
    %v5335 = vlaneseq
    %v5336 = vshrl.u32 %v5335, 7
    %v5337 = vsub.s32 %v5334, %v5336
    %v5338 = vrot.slane %v4248, %v5337
    %v5340 = vunpack.c.l.s4 1414812756
    %v5341 = vunpack.c.0.s8 %v5340
    %v5342 = vlaneseq
    %v5343 = vshrl.u32 %v5342, 7
    %v5344 = vsub.s32 %v5341, %v5343
    %v5345 = vrot.slane %v4248, %v5344
    %v5347 = vunpack.c.l.s4 1987475062
    %v5348 = vunpack.c.0.s8 %v5347
    %v5349 = vlaneseq
    %v5350 = vshrl.u32 %v5349, 7
    %v5351 = vsub.s32 %v5348, %v5350
    %v5352 = vrot.slane %v4248, %v5351
    %v5354 = vunpack.c.l.s4 269488144
    %v5355 = vunpack.c.0.s8 %v5354
    %v5356 = vlaneseq
    %v5357 = vshrl.u32 %v5356, 7
    %v5358 = vsub.s32 %v5355, %v5357
    %v5359 = vrot.slane %v4252, %v5358
    %v5361 = vunpack.c.l.s4 842150450
    %v5362 = vunpack.c.0.s8 %v5361
    %v5363 = vlaneseq
    %v5364 = vshrl.u32 %v5363, 7
    %v5365 = vsub.s32 %v5362, %v5364
    %v5366 = vrot.slane %v4252, %v5365
    %v5368 = vunpack.c.l.s4 1414812756
    %v5369 = vunpack.c.0.s8 %v5368
    %v5370 = vlaneseq
    %v5371 = vshrl.u32 %v5370, 7
    %v5372 = vsub.s32 %v5369, %v5371
    %v5373 = vrot.slane %v4252, %v5372
    %v5375 = vunpack.c.l.s4 1987475062
    %v5376 = vunpack.c.0.s8 %v5375
    %v5377 = vlaneseq
    %v5378 = vshrl.u32 %v5377, 7
    %v5379 = vsub.s32 %v5376, %v5378
    %v5380 = vrot.slane %v4252, %v5379
    %v5382 = vunpack.c.l.s4 269488144
    %v5383 = vunpack.c.0.s8 %v5382
    %v5384 = vlaneseq
    %v5385 = vshrl.u32 %v5384, 7
    %v5386 = vsub.s32 %v5383, %v5385
    %v5387 = vrot.slane %v4256, %v5386
    %v5389 = vunpack.c.l.s4 842150450
    %v5390 = vunpack.c.0.s8 %v5389
    %v5391 = vlaneseq
    %v5392 = vshrl.u32 %v5391, 7
    %v5393 = vsub.s32 %v5390, %v5392
    %v5394 = vrot.slane %v4256, %v5393
    %v5396 = vunpack.c.l.s4 1414812756
    %v5397 = vunpack.c.0.s8 %v5396
    %v5398 = vlaneseq
    %v5399 = vshrl.u32 %v5398, 7
    %v5400 = vsub.s32 %v5397, %v5399
    %v5401 = vrot.slane %v4256, %v5400
    %v5403 = vunpack.c.l.s4 1987475062
    %v5404 = vunpack.c.0.s8 %v5403
    %v5405 = vlaneseq
    %v5406 = vshrl.u32 %v5405, 7
    %v5407 = vsub.s32 %v5404, %v5406
    %v5408 = vrot.slane %v4256, %v5407
    %v5410 = vunpack.c.l.s4 269488144
    %v5411 = vunpack.c.0.s8 %v5410
    %v5412 = vlaneseq
    %v5413 = vshrl.u32 %v5412, 7
    %v5414 = vsub.s32 %v5411, %v5413
    %v5415 = vrot.slane %v4260, %v5414
    %v5417 = vunpack.c.l.s4 842150450
    %v5418 = vunpack.c.0.s8 %v5417
    %v5419 = vlaneseq
    %v5420 = vshrl.u32 %v5419, 7
    %v5421 = vsub.s32 %v5418, %v5420
    %v5422 = vrot.slane %v4260, %v5421
    %v5424 = vunpack.c.l.s4 1414812756
    %v5425 = vunpack.c.0.s8 %v5424
    %v5426 = vlaneseq
    %v5427 = vshrl.u32 %v5426, 7
    %v5428 = vsub.s32 %v5425, %v5427
    %v5429 = vrot.slane %v4260, %v5428
    %v5431 = vunpack.c.l.s4 1987475062
    %v5432 = vunpack.c.0.s8 %v5431
    %v5433 = vlaneseq
    %v5434 = vshrl.u32 %v5433, 7
    %v5435 = vsub.s32 %v5432, %v5434
    %v5436 = vrot.slane %v4260, %v5435
    %v5438 = vunpack.c.l.s4 269488144
    %v5439 = vunpack.c.0.s8 %v5438
    %v5440 = vlaneseq
    %v5441 = vshrl.u32 %v5440, 7
    %v5442 = vsub.s32 %v5439, %v5441
    %v5443 = vrot.slane %v4264, %v5442
    %v5445 = vunpack.c.l.s4 842150450
    %v5446 = vunpack.c.0.s8 %v5445
    %v5447 = vlaneseq
    %v5448 = vshrl.u32 %v5447, 7
    %v5449 = vsub.s32 %v5446, %v5448
    %v5450 = vrot.slane %v4264, %v5449
    %v5452 = vunpack.c.l.s4 1414812756
    %v5453 = vunpack.c.0.s8 %v5452
    %v5454 = vlaneseq
    %v5455 = vshrl.u32 %v5454, 7
    %v5456 = vsub.s32 %v5453, %v5455
    %v5457 = vrot.slane %v4264, %v5456
    %v5459 = vunpack.c.l.s4 1987475062
    %v5460 = vunpack.c.0.s8 %v5459
    %v5461 = vlaneseq
    %v5462 = vshrl.u32 %v5461, 7
    %v5463 = vsub.s32 %v5460, %v5462
    %v5464 = vrot.slane %v4264, %v5463
    %v5466 = vunpack.c.l.s4 269488144
    %v5467 = vunpack.c.0.s8 %v5466
    %v5468 = vlaneseq
    %v5469 = vshrl.u32 %v5468, 7
    %v5470 = vsub.s32 %v5467, %v5469
    %v5471 = vrot.slane %v4268, %v5470
    %v5473 = vunpack.c.l.s4 842150450
    %v5474 = vunpack.c.0.s8 %v5473
    %v5475 = vlaneseq
    %v5476 = vshrl.u32 %v5475, 7
    %v5477 = vsub.s32 %v5474, %v5476
    %v5478 = vrot.slane %v4268, %v5477
    %v5480 = vunpack.c.l.s4 1414812756
    %v5481 = vunpack.c.0.s8 %v5480
    %v5482 = vlaneseq
    %v5483 = vshrl.u32 %v5482, 7
    %v5484 = vsub.s32 %v5481, %v5483
    %v5485 = vrot.slane %v4268, %v5484
    %v5487 = vunpack.c.l.s4 1987475062
    %v5488 = vunpack.c.0.s8 %v5487
    %v5489 = vlaneseq
    %v5490 = vshrl.u32 %v5489, 7
    %v5491 = vsub.s32 %v5488, %v5490
    %v5492 = vrot.slane %v4268, %v5491
    %v5494 = vunpack.c.l.s4 269488144
    %v5495 = vunpack.c.0.s8 %v5494
    %v5496 = vlaneseq
    %v5497 = vshrl.u32 %v5496, 7
    %v5498 = vsub.s32 %v5495, %v5497
    %v5499 = vrot.slane %v4272, %v5498
    %v5501 = vunpack.c.l.s4 842150450
    %v5502 = vunpack.c.0.s8 %v5501
    %v5503 = vlaneseq
    %v5504 = vshrl.u32 %v5503, 7
    %v5505 = vsub.s32 %v5502, %v5504
    %v5506 = vrot.slane %v4272, %v5505
    %v5508 = vunpack.c.l.s4 1414812756
    %v5509 = vunpack.c.0.s8 %v5508
    %v5510 = vlaneseq
    %v5511 = vshrl.u32 %v5510, 7
    %v5512 = vsub.s32 %v5509, %v5511
    %v5513 = vrot.slane %v4272, %v5512
    %v5515 = vunpack.c.l.s4 1987475062
    %v5516 = vunpack.c.0.s8 %v5515
    %v5517 = vlaneseq
    %v5518 = vshrl.u32 %v5517, 7
    %v5519 = vsub.s32 %v5516, %v5518
    %v5520 = vrot.slane %v4272, %v5519
    %v5522 = vunpack.c.l.s4 269488144
    %v5523 = vunpack.c.0.s8 %v5522
    %v5524 = vlaneseq
    %v5525 = vshrl.u32 %v5524, 7
    %v5526 = vsub.s32 %v5523, %v5525
    %v5527 = vrot.slane %v4276, %v5526
    %v5529 = vunpack.c.l.s4 842150450
    %v5530 = vunpack.c.0.s8 %v5529
    %v5531 = vlaneseq
    %v5532 = vshrl.u32 %v5531, 7
    %v5533 = vsub.s32 %v5530, %v5532
    %v5534 = vrot.slane %v4276, %v5533
    %v5536 = vunpack.c.l.s4 1414812756
    %v5537 = vunpack.c.0.s8 %v5536
    %v5538 = vlaneseq
    %v5539 = vshrl.u32 %v5538, 7
    %v5540 = vsub.s32 %v5537, %v5539
    %v5541 = vrot.slane %v4276, %v5540
    %v5543 = vunpack.c.l.s4 1987475062
    %v5544 = vunpack.c.0.s8 %v5543
    %v5545 = vlaneseq
    %v5546 = vshrl.u32 %v5545, 7
    %v5547 = vsub.s32 %v5544, %v5546
    %v5548 = vrot.slane %v4276, %v5547
    %v5550 = vunpack.c.l.s4 269488144
    %v5551 = vunpack.c.0.s8 %v5550
    %v5552 = vlaneseq
    %v5553 = vshrl.u32 %v5552, 7
    %v5554 = vsub.s32 %v5551, %v5553
    %v5555 = vrot.slane %v4280, %v5554
    %v5557 = vunpack.c.l.s4 842150450
    %v5558 = vunpack.c.0.s8 %v5557
    %v5559 = vlaneseq
    %v5560 = vshrl.u32 %v5559, 7
    %v5561 = vsub.s32 %v5558, %v5560
    %v5562 = vrot.slane %v4280, %v5561
    %v5564 = vunpack.c.l.s4 1414812756
    %v5565 = vunpack.c.0.s8 %v5564
    %v5566 = vlaneseq
    %v5567 = vshrl.u32 %v5566, 7
    %v5568 = vsub.s32 %v5565, %v5567
    %v5569 = vrot.slane %v4280, %v5568
    %v5571 = vunpack.c.l.s4 1987475062
    %v5572 = vunpack.c.0.s8 %v5571
    %v5573 = vlaneseq
    %v5574 = vshrl.u32 %v5573, 7
    %v5575 = vsub.s32 %v5572, %v5574
    %v5576 = vrot.slane %v4280, %v5575
    %v5578 = vunpack.c.l.s4 269488144
    %v5579 = vunpack.c.0.s8 %v5578
    %v5580 = vlaneseq
    %v5581 = vshrl.u32 %v5580, 7
    %v5582 = vsub.s32 %v5579, %v5581
    %v5583 = vrot.slane %v4284, %v5582
    %v5585 = vunpack.c.l.s4 842150450
    %v5586 = vunpack.c.0.s8 %v5585
    %v5587 = vlaneseq
    %v5588 = vshrl.u32 %v5587, 7
    %v5589 = vsub.s32 %v5586, %v5588
    %v5590 = vrot.slane %v4284, %v5589
    %v5592 = vunpack.c.l.s4 1414812756
    %v5593 = vunpack.c.0.s8 %v5592
    %v5594 = vlaneseq
    %v5595 = vshrl.u32 %v5594, 7
    %v5596 = vsub.s32 %v5593, %v5595
    %v5597 = vrot.slane %v4284, %v5596
    %v5599 = vunpack.c.l.s4 1987475062
    %v5600 = vunpack.c.0.s8 %v5599
    %v5601 = vlaneseq
    %v5602 = vshrl.u32 %v5601, 7
    %v5603 = vsub.s32 %v5600, %v5602
    %v5604 = vrot.slane %v4284, %v5603
    %v5606 = vunpack.c.l.s4 269488144
    %v5607 = vunpack.c.0.s8 %v5606
    %v5608 = vlaneseq
    %v5609 = vshrl.u32 %v5608, 7
    %v5610 = vsub.s32 %v5607, %v5609
    %v5611 = vrot.slane %v4288, %v5610
    %v5613 = vunpack.c.l.s4 842150450
    %v5614 = vunpack.c.0.s8 %v5613
    %v5615 = vlaneseq
    %v5616 = vshrl.u32 %v5615, 7
    %v5617 = vsub.s32 %v5614, %v5616
    %v5618 = vrot.slane %v4288, %v5617
    %v5620 = vunpack.c.l.s4 1414812756
    %v5621 = vunpack.c.0.s8 %v5620
    %v5622 = vlaneseq
    %v5623 = vshrl.u32 %v5622, 7
    %v5624 = vsub.s32 %v5621, %v5623
    %v5625 = vrot.slane %v4288, %v5624
    %v5627 = vunpack.c.l.s4 1987475062
    %v5628 = vunpack.c.0.s8 %v5627
    %v5629 = vlaneseq
    %v5630 = vshrl.u32 %v5629, 7
    %v5631 = vsub.s32 %v5628, %v5630
    %v5632 = vrot.slane %v4288, %v5631
    %v5634 = vunpack.c.l.s4 269488144
    %v5635 = vunpack.c.0.s8 %v5634
    %v5636 = vlaneseq
    %v5637 = vshrl.u32 %v5636, 7
    %v5638 = vsub.s32 %v5635, %v5637
    %v5639 = vrot.slane %v4292, %v5638
    %v5641 = vunpack.c.l.s4 842150450
    %v5642 = vunpack.c.0.s8 %v5641
    %v5643 = vlaneseq
    %v5644 = vshrl.u32 %v5643, 7
    %v5645 = vsub.s32 %v5642, %v5644
    %v5646 = vrot.slane %v4292, %v5645
    %v5648 = vunpack.c.l.s4 1414812756
    %v5649 = vunpack.c.0.s8 %v5648
    %v5650 = vlaneseq
    %v5651 = vshrl.u32 %v5650, 7
    %v5652 = vsub.s32 %v5649, %v5651
    %v5653 = vrot.slane %v4292, %v5652
    %v5655 = vunpack.c.l.s4 1987475062
    %v5656 = vunpack.c.0.s8 %v5655
    %v5657 = vlaneseq
    %v5658 = vshrl.u32 %v5657, 7
    %v5659 = vsub.s32 %v5656, %v5658
    %v5660 = vrot.slane %v4292, %v5659
    %v5662 = vunpack.c.l.s4 269488144
    %v5663 = vunpack.c.0.s8 %v5662
    %v5664 = vlaneseq
    %v5665 = vshrl.u32 %v5664, 7
    %v5666 = vsub.s32 %v5663, %v5665
    %v5667 = vrot.slane %v4296, %v5666
    %v5669 = vunpack.c.l.s4 842150450
    %v5670 = vunpack.c.0.s8 %v5669
    %v5671 = vlaneseq
    %v5672 = vshrl.u32 %v5671, 7
    %v5673 = vsub.s32 %v5670, %v5672
    %v5674 = vrot.slane %v4296, %v5673
    %v5676 = vunpack.c.l.s4 1414812756
    %v5677 = vunpack.c.0.s8 %v5676
    %v5678 = vlaneseq
    %v5679 = vshrl.u32 %v5678, 7
    %v5680 = vsub.s32 %v5677, %v5679
    %v5681 = vrot.slane %v4296, %v5680
    %v5683 = vunpack.c.l.s4 1987475062
    %v5684 = vunpack.c.0.s8 %v5683
    %v5685 = vlaneseq
    %v5686 = vshrl.u32 %v5685, 7
    %v5687 = vsub.s32 %v5684, %v5686
    %v5688 = vrot.slane %v4296, %v5687
    %v5689 = vcombine.low %v4351, %v4358
    %v5690 = vcombine.low %v4365, %v4372
    %v5692 = vunpack.c.l.s4 1983009808
    %v5693 = vunpack.c.0.s8 %v5692
    %v5694 = vlaneseq
    %v5695 = vshrl.u32 %v5694, 7
    %v5696 = vsub.s32 %v5693, %v5695
    %v5697 = vrot.slane %v5689, %v5696
    %v5699 = vunpack.c.l.s4 1983009808
    %v5700 = vunpack.c.0.s8 %v5699
    %v5701 = vlaneseq
    %v5702 = vshrl.u32 %v5701, 7
    %v5703 = vsub.s32 %v5700, %v5702
    %v5704 = vrot.slane %v5690, %v5703
    %v5705 = vcombine.low %v5697, %v5704
    %v5706 = vcombine.low %v4379, %v4386
    %v5707 = vcombine.low %v4393, %v4400
    %v5709 = vunpack.c.l.s4 1983009808
    %v5710 = vunpack.c.0.s8 %v5709
    %v5711 = vlaneseq
    %v5712 = vshrl.u32 %v5711, 7
    %v5713 = vsub.s32 %v5710, %v5712
    %v5714 = vrot.slane %v5706, %v5713
    %v5716 = vunpack.c.l.s4 1983009808
    %v5717 = vunpack.c.0.s8 %v5716
    %v5718 = vlaneseq
    %v5719 = vshrl.u32 %v5718, 7
    %v5720 = vsub.s32 %v5717, %v5719
    %v5721 = vrot.slane %v5707, %v5720
    %v5722 = vcombine.low %v5714, %v5721
    %v5723 = vcombine.low %v4407, %v4414
    %v5724 = vcombine.low %v4421, %v4428
    %v5726 = vunpack.c.l.s4 1983009808
    %v5727 = vunpack.c.0.s8 %v5726
    %v5728 = vlaneseq
    %v5729 = vshrl.u32 %v5728, 7
    %v5730 = vsub.s32 %v5727, %v5729
    %v5731 = vrot.slane %v5723, %v5730
    %v5733 = vunpack.c.l.s4 1983009808
    %v5734 = vunpack.c.0.s8 %v5733
    %v5735 = vlaneseq
    %v5736 = vshrl.u32 %v5735, 7
    %v5737 = vsub.s32 %v5734, %v5736
    %v5738 = vrot.slane %v5724, %v5737
    %v5739 = vcombine.low %v5731, %v5738
    %v5740 = vcombine.low %v4435, %v4442
    %v5741 = vcombine.low %v4449, %v4456
    %v5743 = vunpack.c.l.s4 1983009808
    %v5744 = vunpack.c.0.s8 %v5743
    %v5745 = vlaneseq
    %v5746 = vshrl.u32 %v5745, 7
    %v5747 = vsub.s32 %v5744, %v5746
    %v5748 = vrot.slane %v5740, %v5747
    %v5750 = vunpack.c.l.s4 1983009808
    %v5751 = vunpack.c.0.s8 %v5750
    %v5752 = vlaneseq
    %v5753 = vshrl.u32 %v5752, 7
    %v5754 = vsub.s32 %v5751, %v5753
    %v5755 = vrot.slane %v5741, %v5754
    %v5756 = vcombine.low %v5748, %v5755
    %v5757 = vcombine.low %v4463, %v4470
    %v5758 = vcombine.low %v4477, %v4484
    %v5760 = vunpack.c.l.s4 1983009808
    %v5761 = vunpack.c.0.s8 %v5760
    %v5762 = vlaneseq
    %v5763 = vshrl.u32 %v5762, 7
    %v5764 = vsub.s32 %v5761, %v5763
    %v5765 = vrot.slane %v5757, %v5764
    %v5767 = vunpack.c.l.s4 1983009808
    %v5768 = vunpack.c.0.s8 %v5767
    %v5769 = vlaneseq
    %v5770 = vshrl.u32 %v5769, 7
    %v5771 = vsub.s32 %v5768, %v5770
    %v5772 = vrot.slane %v5758, %v5771
    %v5773 = vcombine.low %v5765, %v5772
    %v5774 = vcombine.low %v4491, %v4498
    %v5775 = vcombine.low %v4505, %v4512
    %v5777 = vunpack.c.l.s4 1983009808
    %v5778 = vunpack.c.0.s8 %v5777
    %v5779 = vlaneseq
    %v5780 = vshrl.u32 %v5779, 7
    %v5781 = vsub.s32 %v5778, %v5780
    %v5782 = vrot.slane %v5774, %v5781
    %v5784 = vunpack.c.l.s4 1983009808
    %v5785 = vunpack.c.0.s8 %v5784
    %v5786 = vlaneseq
    %v5787 = vshrl.u32 %v5786, 7
    %v5788 = vsub.s32 %v5785, %v5787
    %v5789 = vrot.slane %v5775, %v5788
    %v5790 = vcombine.low %v5782, %v5789
    %v5791 = vcombine.low %v4519, %v4526
    %v5792 = vcombine.low %v4533, %v4540
    %v5794 = vunpack.c.l.s4 1983009808
    %v5795 = vunpack.c.0.s8 %v5794
    %v5796 = vlaneseq
    %v5797 = vshrl.u32 %v5796, 7
    %v5798 = vsub.s32 %v5795, %v5797
    %v5799 = vrot.slane %v5791, %v5798
    %v5801 = vunpack.c.l.s4 1983009808
    %v5802 = vunpack.c.0.s8 %v5801
    %v5803 = vlaneseq
    %v5804 = vshrl.u32 %v5803, 7
    %v5805 = vsub.s32 %v5802, %v5804
    %v5806 = vrot.slane %v5792, %v5805
    %v5807 = vcombine.low %v5799, %v5806
    %v5808 = vcombine.low %v4547, %v4554
    %v5809 = vcombine.low %v4561, %v4568
    %v5811 = vunpack.c.l.s4 1983009808
    %v5812 = vunpack.c.0.s8 %v5811
    %v5813 = vlaneseq
    %v5814 = vshrl.u32 %v5813, 7
    %v5815 = vsub.s32 %v5812, %v5814
    %v5816 = vrot.slane %v5808, %v5815
    %v5818 = vunpack.c.l.s4 1983009808
    %v5819 = vunpack.c.0.s8 %v5818
    %v5820 = vlaneseq
    %v5821 = vshrl.u32 %v5820, 7
    %v5822 = vsub.s32 %v5819, %v5821
    %v5823 = vrot.slane %v5809, %v5822
    %v5824 = vcombine.low %v5816, %v5823
    %v5825 = vcombine.low %v4575, %v4582
    %v5826 = vcombine.low %v4589, %v4596
    %v5828 = vunpack.c.l.s4 1983009808
    %v5829 = vunpack.c.0.s8 %v5828
    %v5830 = vlaneseq
    %v5831 = vshrl.u32 %v5830, 7
    %v5832 = vsub.s32 %v5829, %v5831
    %v5833 = vrot.slane %v5825, %v5832
    %v5835 = vunpack.c.l.s4 1983009808
    %v5836 = vunpack.c.0.s8 %v5835
    %v5837 = vlaneseq
    %v5838 = vshrl.u32 %v5837, 7
    %v5839 = vsub.s32 %v5836, %v5838
    %v5840 = vrot.slane %v5826, %v5839
    %v5841 = vcombine.low %v5833, %v5840
    %v5842 = vcombine.low %v4603, %v4610
    %v5843 = vcombine.low %v4617, %v4624
    %v5845 = vunpack.c.l.s4 1983009808
    %v5846 = vunpack.c.0.s8 %v5845
    %v5847 = vlaneseq
    %v5848 = vshrl.u32 %v5847, 7
    %v5849 = vsub.s32 %v5846, %v5848
    %v5850 = vrot.slane %v5842, %v5849
    %v5852 = vunpack.c.l.s4 1983009808
    %v5853 = vunpack.c.0.s8 %v5852
    %v5854 = vlaneseq
    %v5855 = vshrl.u32 %v5854, 7
    %v5856 = vsub.s32 %v5853, %v5855
    %v5857 = vrot.slane %v5843, %v5856
    %v5858 = vcombine.low %v5850, %v5857
    %v5859 = vcombine.low %v4631, %v4638
    %v5860 = vcombine.low %v4645, %v4652
    %v5862 = vunpack.c.l.s4 1983009808
    %v5863 = vunpack.c.0.s8 %v5862
    %v5864 = vlaneseq
    %v5865 = vshrl.u32 %v5864, 7
    %v5866 = vsub.s32 %v5863, %v5865
    %v5867 = vrot.slane %v5859, %v5866
    %v5869 = vunpack.c.l.s4 1983009808
    %v5870 = vunpack.c.0.s8 %v5869
    %v5871 = vlaneseq
    %v5872 = vshrl.u32 %v5871, 7
    %v5873 = vsub.s32 %v5870, %v5872
    %v5874 = vrot.slane %v5860, %v5873
    %v5875 = vcombine.low %v5867, %v5874
    %v5876 = vcombine.low %v4659, %v4666
    %v5877 = vcombine.low %v4673, %v4680
    %v5879 = vunpack.c.l.s4 1983009808
    %v5880 = vunpack.c.0.s8 %v5879
    %v5881 = vlaneseq
    %v5882 = vshrl.u32 %v5881, 7
    %v5883 = vsub.s32 %v5880, %v5882
    %v5884 = vrot.slane %v5876, %v5883
    %v5886 = vunpack.c.l.s4 1983009808
    %v5887 = vunpack.c.0.s8 %v5886
    %v5888 = vlaneseq
    %v5889 = vshrl.u32 %v5888, 7
    %v5890 = vsub.s32 %v5887, %v5889
    %v5891 = vrot.slane %v5877, %v5890
    %v5892 = vcombine.low %v5884, %v5891
    %v5893 = vcombine.low %v4687, %v4694
    %v5894 = vcombine.low %v4701, %v4708
    %v5896 = vunpack.c.l.s4 1983009808
    %v5897 = vunpack.c.0.s8 %v5896
    %v5898 = vlaneseq
    %v5899 = vshrl.u32 %v5898, 7
    %v5900 = vsub.s32 %v5897, %v5899
    %v5901 = vrot.slane %v5893, %v5900
    %v5903 = vunpack.c.l.s4 1983009808
    %v5904 = vunpack.c.0.s8 %v5903
    %v5905 = vlaneseq
    %v5906 = vshrl.u32 %v5905, 7
    %v5907 = vsub.s32 %v5904, %v5906
    %v5908 = vrot.slane %v5894, %v5907
    %v5909 = vcombine.low %v5901, %v5908
    %v5910 = vcombine.low %v4715, %v4722
    %v5911 = vcombine.low %v4729, %v4736
    %v5913 = vunpack.c.l.s4 1983009808
    %v5914 = vunpack.c.0.s8 %v5913
    %v5915 = vlaneseq
    %v5916 = vshrl.u32 %v5915, 7
    %v5917 = vsub.s32 %v5914, %v5916
    %v5918 = vrot.slane %v5910, %v5917
    %v5920 = vunpack.c.l.s4 1983009808
    %v5921 = vunpack.c.0.s8 %v5920
    %v5922 = vlaneseq
    %v5923 = vshrl.u32 %v5922, 7
    %v5924 = vsub.s32 %v5921, %v5923
    %v5925 = vrot.slane %v5911, %v5924
    %v5926 = vcombine.low %v5918, %v5925
    %v5927 = vcombine.low %v4743, %v4750
    %v5928 = vcombine.low %v4757, %v4764
    %v5930 = vunpack.c.l.s4 1983009808
    %v5931 = vunpack.c.0.s8 %v5930
    %v5932 = vlaneseq
    %v5933 = vshrl.u32 %v5932, 7
    %v5934 = vsub.s32 %v5931, %v5933
    %v5935 = vrot.slane %v5927, %v5934
    %v5937 = vunpack.c.l.s4 1983009808
    %v5938 = vunpack.c.0.s8 %v5937
    %v5939 = vlaneseq
    %v5940 = vshrl.u32 %v5939, 7
    %v5941 = vsub.s32 %v5938, %v5940
    %v5942 = vrot.slane %v5928, %v5941
    %v5943 = vcombine.low %v5935, %v5942
    %v5944 = vcombine.low %v4771, %v4778
    %v5945 = vcombine.low %v4785, %v4792
    %v5947 = vunpack.c.l.s4 1983009808
    %v5948 = vunpack.c.0.s8 %v5947
    %v5949 = vlaneseq
    %v5950 = vshrl.u32 %v5949, 7
    %v5951 = vsub.s32 %v5948, %v5950
    %v5952 = vrot.slane %v5944, %v5951
    %v5954 = vunpack.c.l.s4 1983009808
    %v5955 = vunpack.c.0.s8 %v5954
    %v5956 = vlaneseq
    %v5957 = vshrl.u32 %v5956, 7
    %v5958 = vsub.s32 %v5955, %v5957
    %v5959 = vrot.slane %v5945, %v5958
    %v5960 = vcombine.low %v5952, %v5959
    %v5961 = vcombine.low %v4799, %v4806
    %v5962 = vcombine.low %v4813, %v4820
    %v5964 = vunpack.c.l.s4 1983009808
    %v5965 = vunpack.c.0.s8 %v5964
    %v5966 = vlaneseq
    %v5967 = vshrl.u32 %v5966, 7
    %v5968 = vsub.s32 %v5965, %v5967
    %v5969 = vrot.slane %v5961, %v5968
    %v5971 = vunpack.c.l.s4 1983009808
    %v5972 = vunpack.c.0.s8 %v5971
    %v5973 = vlaneseq
    %v5974 = vshrl.u32 %v5973, 7
    %v5975 = vsub.s32 %v5972, %v5974
    %v5976 = vrot.slane %v5962, %v5975
    %v5977 = vcombine.low %v5969, %v5976
    %v5978 = vcombine.low %v4827, %v4834
    %v5979 = vcombine.low %v4841, %v4848
    %v5981 = vunpack.c.l.s4 1983009808
    %v5982 = vunpack.c.0.s8 %v5981
    %v5983 = vlaneseq
    %v5984 = vshrl.u32 %v5983, 7
    %v5985 = vsub.s32 %v5982, %v5984
    %v5986 = vrot.slane %v5978, %v5985
    %v5988 = vunpack.c.l.s4 1983009808
    %v5989 = vunpack.c.0.s8 %v5988
    %v5990 = vlaneseq
    %v5991 = vshrl.u32 %v5990, 7
    %v5992 = vsub.s32 %v5989, %v5991
    %v5993 = vrot.slane %v5979, %v5992
    %v5994 = vcombine.low %v5986, %v5993
    %v5995 = vcombine.low %v4855, %v4862
    %v5996 = vcombine.low %v4869, %v4876
    %v5998 = vunpack.c.l.s4 1983009808
    %v5999 = vunpack.c.0.s8 %v5998
    %v6000 = vlaneseq
    %v6001 = vshrl.u32 %v6000, 7
    %v6002 = vsub.s32 %v5999, %v6001
    %v6003 = vrot.slane %v5995, %v6002
    %v6005 = vunpack.c.l.s4 1983009808
    %v6006 = vunpack.c.0.s8 %v6005
    %v6007 = vlaneseq
    %v6008 = vshrl.u32 %v6007, 7
    %v6009 = vsub.s32 %v6006, %v6008
    %v6010 = vrot.slane %v5996, %v6009
    %v6011 = vcombine.low %v6003, %v6010
    %v6012 = vcombine.low %v4883, %v4890
    %v6013 = vcombine.low %v4897, %v4904
    %v6015 = vunpack.c.l.s4 1983009808
    %v6016 = vunpack.c.0.s8 %v6015
    %v6017 = vlaneseq
    %v6018 = vshrl.u32 %v6017, 7
    %v6019 = vsub.s32 %v6016, %v6018
    %v6020 = vrot.slane %v6012, %v6019
    %v6022 = vunpack.c.l.s4 1983009808
    %v6023 = vunpack.c.0.s8 %v6022
    %v6024 = vlaneseq
    %v6025 = vshrl.u32 %v6024, 7
    %v6026 = vsub.s32 %v6023, %v6025
    %v6027 = vrot.slane %v6013, %v6026
    %v6028 = vcombine.low %v6020, %v6027
    %v6029 = vcombine.low %v4911, %v4918
    %v6030 = vcombine.low %v4925, %v4932
    %v6032 = vunpack.c.l.s4 1983009808
    %v6033 = vunpack.c.0.s8 %v6032
    %v6034 = vlaneseq
    %v6035 = vshrl.u32 %v6034, 7
    %v6036 = vsub.s32 %v6033, %v6035
    %v6037 = vrot.slane %v6029, %v6036
    %v6039 = vunpack.c.l.s4 1983009808
    %v6040 = vunpack.c.0.s8 %v6039
    %v6041 = vlaneseq
    %v6042 = vshrl.u32 %v6041, 7
    %v6043 = vsub.s32 %v6040, %v6042
    %v6044 = vrot.slane %v6030, %v6043
    %v6045 = vcombine.low %v6037, %v6044
    %v6046 = vcombine.low %v4939, %v4946
    %v6047 = vcombine.low %v4953, %v4960
    %v6049 = vunpack.c.l.s4 1983009808
    %v6050 = vunpack.c.0.s8 %v6049
    %v6051 = vlaneseq
    %v6052 = vshrl.u32 %v6051, 7
    %v6053 = vsub.s32 %v6050, %v6052
    %v6054 = vrot.slane %v6046, %v6053
    %v6056 = vunpack.c.l.s4 1983009808
    %v6057 = vunpack.c.0.s8 %v6056
    %v6058 = vlaneseq
    %v6059 = vshrl.u32 %v6058, 7
    %v6060 = vsub.s32 %v6057, %v6059
    %v6061 = vrot.slane %v6047, %v6060
    %v6062 = vcombine.low %v6054, %v6061
    %v6063 = vcombine.low %v4967, %v4974
    %v6064 = vcombine.low %v4981, %v4988
    %v6066 = vunpack.c.l.s4 1983009808
    %v6067 = vunpack.c.0.s8 %v6066
    %v6068 = vlaneseq
    %v6069 = vshrl.u32 %v6068, 7
    %v6070 = vsub.s32 %v6067, %v6069
    %v6071 = vrot.slane %v6063, %v6070
    %v6073 = vunpack.c.l.s4 1983009808
    %v6074 = vunpack.c.0.s8 %v6073
    %v6075 = vlaneseq
    %v6076 = vshrl.u32 %v6075, 7
    %v6077 = vsub.s32 %v6074, %v6076
    %v6078 = vrot.slane %v6064, %v6077
    %v6079 = vcombine.low %v6071, %v6078
    %v6080 = vcombine.low %v4995, %v5002
    %v6081 = vcombine.low %v5009, %v5016
    %v6083 = vunpack.c.l.s4 1983009808
    %v6084 = vunpack.c.0.s8 %v6083
    %v6085 = vlaneseq
    %v6086 = vshrl.u32 %v6085, 7
    %v6087 = vsub.s32 %v6084, %v6086
    %v6088 = vrot.slane %v6080, %v6087
    %v6090 = vunpack.c.l.s4 1983009808
    %v6091 = vunpack.c.0.s8 %v6090
    %v6092 = vlaneseq
    %v6093 = vshrl.u32 %v6092, 7
    %v6094 = vsub.s32 %v6091, %v6093
    %v6095 = vrot.slane %v6081, %v6094
    %v6096 = vcombine.low %v6088, %v6095
    %v6097 = vcombine.low %v5023, %v5030
    %v6098 = vcombine.low %v5037, %v5044
    %v6100 = vunpack.c.l.s4 1983009808
    %v6101 = vunpack.c.0.s8 %v6100
    %v6102 = vlaneseq
    %v6103 = vshrl.u32 %v6102, 7
    %v6104 = vsub.s32 %v6101, %v6103
    %v6105 = vrot.slane %v6097, %v6104
    %v6107 = vunpack.c.l.s4 1983009808
    %v6108 = vunpack.c.0.s8 %v6107
    %v6109 = vlaneseq
    %v6110 = vshrl.u32 %v6109, 7
    %v6111 = vsub.s32 %v6108, %v6110
    %v6112 = vrot.slane %v6098, %v6111
    %v6113 = vcombine.low %v6105, %v6112
    %v6114 = vcombine.low %v5051, %v5058
    %v6115 = vcombine.low %v5065, %v5072
    %v6117 = vunpack.c.l.s4 1983009808
    %v6118 = vunpack.c.0.s8 %v6117
    %v6119 = vlaneseq
    %v6120 = vshrl.u32 %v6119, 7
    %v6121 = vsub.s32 %v6118, %v6120
    %v6122 = vrot.slane %v6114, %v6121
    %v6124 = vunpack.c.l.s4 1983009808
    %v6125 = vunpack.c.0.s8 %v6124
    %v6126 = vlaneseq
    %v6127 = vshrl.u32 %v6126, 7
    %v6128 = vsub.s32 %v6125, %v6127
    %v6129 = vrot.slane %v6115, %v6128
    %v6130 = vcombine.low %v6122, %v6129
    %v6131 = vcombine.low %v5079, %v5086
    %v6132 = vcombine.low %v5093, %v5100
    %v6134 = vunpack.c.l.s4 1983009808
    %v6135 = vunpack.c.0.s8 %v6134
    %v6136 = vlaneseq
    %v6137 = vshrl.u32 %v6136, 7
    %v6138 = vsub.s32 %v6135, %v6137
    %v6139 = vrot.slane %v6131, %v6138
    %v6141 = vunpack.c.l.s4 1983009808
    %v6142 = vunpack.c.0.s8 %v6141
    %v6143 = vlaneseq
    %v6144 = vshrl.u32 %v6143, 7
    %v6145 = vsub.s32 %v6142, %v6144
    %v6146 = vrot.slane %v6132, %v6145
    %v6147 = vcombine.low %v6139, %v6146
    %v6148 = vcombine.low %v5107, %v5114
    %v6149 = vcombine.low %v5121, %v5128
    %v6151 = vunpack.c.l.s4 1983009808
    %v6152 = vunpack.c.0.s8 %v6151
    %v6153 = vlaneseq
    %v6154 = vshrl.u32 %v6153, 7
    %v6155 = vsub.s32 %v6152, %v6154
    %v6156 = vrot.slane %v6148, %v6155
    %v6158 = vunpack.c.l.s4 1983009808
    %v6159 = vunpack.c.0.s8 %v6158
    %v6160 = vlaneseq
    %v6161 = vshrl.u32 %v6160, 7
    %v6162 = vsub.s32 %v6159, %v6161
    %v6163 = vrot.slane %v6149, %v6162
    %v6164 = vcombine.low %v6156, %v6163
    %v6165 = vcombine.low %v5135, %v5142
    %v6166 = vcombine.low %v5149, %v5156
    %v6168 = vunpack.c.l.s4 1983009808
    %v6169 = vunpack.c.0.s8 %v6168
    %v6170 = vlaneseq
    %v6171 = vshrl.u32 %v6170, 7
    %v6172 = vsub.s32 %v6169, %v6171
    %v6173 = vrot.slane %v6165, %v6172
    %v6175 = vunpack.c.l.s4 1983009808
    %v6176 = vunpack.c.0.s8 %v6175
    %v6177 = vlaneseq
    %v6178 = vshrl.u32 %v6177, 7
    %v6179 = vsub.s32 %v6176, %v6178
    %v6180 = vrot.slane %v6166, %v6179
    %v6181 = vcombine.low %v6173, %v6180
    %v6182 = vcombine.low %v5163, %v5170
    %v6183 = vcombine.low %v5177, %v5184
    %v6185 = vunpack.c.l.s4 1983009808
    %v6186 = vunpack.c.0.s8 %v6185
    %v6187 = vlaneseq
    %v6188 = vshrl.u32 %v6187, 7
    %v6189 = vsub.s32 %v6186, %v6188
    %v6190 = vrot.slane %v6182, %v6189
    %v6192 = vunpack.c.l.s4 1983009808
    %v6193 = vunpack.c.0.s8 %v6192
    %v6194 = vlaneseq
    %v6195 = vshrl.u32 %v6194, 7
    %v6196 = vsub.s32 %v6193, %v6195
    %v6197 = vrot.slane %v6183, %v6196
    %v6198 = vcombine.low %v6190, %v6197
    %v6199 = vcombine.low %v5191, %v5198
    %v6200 = vcombine.low %v5205, %v5212
    %v6202 = vunpack.c.l.s4 1983009808
    %v6203 = vunpack.c.0.s8 %v6202
    %v6204 = vlaneseq
    %v6205 = vshrl.u32 %v6204, 7
    %v6206 = vsub.s32 %v6203, %v6205
    %v6207 = vrot.slane %v6199, %v6206
    %v6209 = vunpack.c.l.s4 1983009808
    %v6210 = vunpack.c.0.s8 %v6209
    %v6211 = vlaneseq
    %v6212 = vshrl.u32 %v6211, 7
    %v6213 = vsub.s32 %v6210, %v6212
    %v6214 = vrot.slane %v6200, %v6213
    %v6215 = vcombine.low %v6207, %v6214
    %v6216 = vcombine.low %v5219, %v5226
    %v6217 = vcombine.low %v5233, %v5240
    %v6219 = vunpack.c.l.s4 1983009808
    %v6220 = vunpack.c.0.s8 %v6219
    %v6221 = vlaneseq
    %v6222 = vshrl.u32 %v6221, 7
    %v6223 = vsub.s32 %v6220, %v6222
    %v6224 = vrot.slane %v6216, %v6223
    %v6226 = vunpack.c.l.s4 1983009808
    %v6227 = vunpack.c.0.s8 %v6226
    %v6228 = vlaneseq
    %v6229 = vshrl.u32 %v6228, 7
    %v6230 = vsub.s32 %v6227, %v6229
    %v6231 = vrot.slane %v6217, %v6230
    %v6232 = vcombine.low %v6224, %v6231
    %v6233 = vcombine.low %v5247, %v5254
    %v6234 = vcombine.low %v5261, %v5268
    %v6236 = vunpack.c.l.s4 1983009808
    %v6237 = vunpack.c.0.s8 %v6236
    %v6238 = vlaneseq
    %v6239 = vshrl.u32 %v6238, 7
    %v6240 = vsub.s32 %v6237, %v6239
    %v6241 = vrot.slane %v6233, %v6240
    %v6243 = vunpack.c.l.s4 1983009808
    %v6244 = vunpack.c.0.s8 %v6243
    %v6245 = vlaneseq
    %v6246 = vshrl.u32 %v6245, 7
    %v6247 = vsub.s32 %v6244, %v6246
    %v6248 = vrot.slane %v6234, %v6247
    %v6249 = vcombine.low %v6241, %v6248
    %v6250 = vcombine.low %v5275, %v5282
    %v6251 = vcombine.low %v5289, %v5296
    %v6253 = vunpack.c.l.s4 1983009808
    %v6254 = vunpack.c.0.s8 %v6253
    %v6255 = vlaneseq
    %v6256 = vshrl.u32 %v6255, 7
    %v6257 = vsub.s32 %v6254, %v6256
    %v6258 = vrot.slane %v6250, %v6257
    %v6260 = vunpack.c.l.s4 1983009808
    %v6261 = vunpack.c.0.s8 %v6260
    %v6262 = vlaneseq
    %v6263 = vshrl.u32 %v6262, 7
    %v6264 = vsub.s32 %v6261, %v6263
    %v6265 = vrot.slane %v6251, %v6264
    %v6266 = vcombine.low %v6258, %v6265
    %v6267 = vcombine.low %v5303, %v5310
    %v6268 = vcombine.low %v5317, %v5324
    %v6270 = vunpack.c.l.s4 1983009808
    %v6271 = vunpack.c.0.s8 %v6270
    %v6272 = vlaneseq
    %v6273 = vshrl.u32 %v6272, 7
    %v6274 = vsub.s32 %v6271, %v6273
    %v6275 = vrot.slane %v6267, %v6274
    %v6277 = vunpack.c.l.s4 1983009808
    %v6278 = vunpack.c.0.s8 %v6277
    %v6279 = vlaneseq
    %v6280 = vshrl.u32 %v6279, 7
    %v6281 = vsub.s32 %v6278, %v6280
    %v6282 = vrot.slane %v6268, %v6281
    %v6283 = vcombine.low %v6275, %v6282
    %v6284 = vcombine.low %v5331, %v5338
    %v6285 = vcombine.low %v5345, %v5352
    %v6287 = vunpack.c.l.s4 1983009808
    %v6288 = vunpack.c.0.s8 %v6287
    %v6289 = vlaneseq
    %v6290 = vshrl.u32 %v6289, 7
    %v6291 = vsub.s32 %v6288, %v6290
    %v6292 = vrot.slane %v6284, %v6291
    %v6294 = vunpack.c.l.s4 1983009808
    %v6295 = vunpack.c.0.s8 %v6294
    %v6296 = vlaneseq
    %v6297 = vshrl.u32 %v6296, 7
    %v6298 = vsub.s32 %v6295, %v6297
    %v6299 = vrot.slane %v6285, %v6298
    %v6300 = vcombine.low %v6292, %v6299
    %v6301 = vcombine.low %v5359, %v5366
    %v6302 = vcombine.low %v5373, %v5380
    %v6304 = vunpack.c.l.s4 1983009808
    %v6305 = vunpack.c.0.s8 %v6304
    %v6306 = vlaneseq
    %v6307 = vshrl.u32 %v6306, 7
    %v6308 = vsub.s32 %v6305, %v6307
    %v6309 = vrot.slane %v6301, %v6308
    %v6311 = vunpack.c.l.s4 1983009808
    %v6312 = vunpack.c.0.s8 %v6311
    %v6313 = vlaneseq
    %v6314 = vshrl.u32 %v6313, 7
    %v6315 = vsub.s32 %v6312, %v6314
    %v6316 = vrot.slane %v6302, %v6315
    %v6317 = vcombine.low %v6309, %v6316
    %v6318 = vcombine.low %v5387, %v5394
    %v6319 = vcombine.low %v5401, %v5408
    %v6321 = vunpack.c.l.s4 1983009808
    %v6322 = vunpack.c.0.s8 %v6321
    %v6323 = vlaneseq
    %v6324 = vshrl.u32 %v6323, 7
    %v6325 = vsub.s32 %v6322, %v6324
    %v6326 = vrot.slane %v6318, %v6325
    %v6328 = vunpack.c.l.s4 1983009808
    %v6329 = vunpack.c.0.s8 %v6328
    %v6330 = vlaneseq
    %v6331 = vshrl.u32 %v6330, 7
    %v6332 = vsub.s32 %v6329, %v6331
    %v6333 = vrot.slane %v6319, %v6332
    %v6334 = vcombine.low %v6326, %v6333
    %v6335 = vcombine.low %v5415, %v5422
    %v6336 = vcombine.low %v5429, %v5436
    %v6338 = vunpack.c.l.s4 1983009808
    %v6339 = vunpack.c.0.s8 %v6338
    %v6340 = vlaneseq
    %v6341 = vshrl.u32 %v6340, 7
    %v6342 = vsub.s32 %v6339, %v6341
    %v6343 = vrot.slane %v6335, %v6342
    %v6345 = vunpack.c.l.s4 1983009808
    %v6346 = vunpack.c.0.s8 %v6345
    %v6347 = vlaneseq
    %v6348 = vshrl.u32 %v6347, 7
    %v6349 = vsub.s32 %v6346, %v6348
    %v6350 = vrot.slane %v6336, %v6349
    %v6351 = vcombine.low %v6343, %v6350
    %v6352 = vcombine.low %v5443, %v5450
    %v6353 = vcombine.low %v5457, %v5464
    %v6355 = vunpack.c.l.s4 1983009808
    %v6356 = vunpack.c.0.s8 %v6355
    %v6357 = vlaneseq
    %v6358 = vshrl.u32 %v6357, 7
    %v6359 = vsub.s32 %v6356, %v6358
    %v6360 = vrot.slane %v6352, %v6359
    %v6362 = vunpack.c.l.s4 1983009808
    %v6363 = vunpack.c.0.s8 %v6362
    %v6364 = vlaneseq
    %v6365 = vshrl.u32 %v6364, 7
    %v6366 = vsub.s32 %v6363, %v6365
    %v6367 = vrot.slane %v6353, %v6366
    %v6368 = vcombine.low %v6360, %v6367
    %v6369 = vcombine.low %v5471, %v5478
    %v6370 = vcombine.low %v5485, %v5492
    %v6372 = vunpack.c.l.s4 1983009808
    %v6373 = vunpack.c.0.s8 %v6372
    %v6374 = vlaneseq
    %v6375 = vshrl.u32 %v6374, 7
    %v6376 = vsub.s32 %v6373, %v6375
    %v6377 = vrot.slane %v6369, %v6376
    %v6379 = vunpack.c.l.s4 1983009808
    %v6380 = vunpack.c.0.s8 %v6379
    %v6381 = vlaneseq
    %v6382 = vshrl.u32 %v6381, 7
    %v6383 = vsub.s32 %v6380, %v6382
    %v6384 = vrot.slane %v6370, %v6383
    %v6385 = vcombine.low %v6377, %v6384
    %v6386 = vcombine.low %v5499, %v5506
    %v6387 = vcombine.low %v5513, %v5520
    %v6389 = vunpack.c.l.s4 1983009808
    %v6390 = vunpack.c.0.s8 %v6389
    %v6391 = vlaneseq
    %v6392 = vshrl.u32 %v6391, 7
    %v6393 = vsub.s32 %v6390, %v6392
    %v6394 = vrot.slane %v6386, %v6393
    %v6396 = vunpack.c.l.s4 1983009808
    %v6397 = vunpack.c.0.s8 %v6396
    %v6398 = vlaneseq
    %v6399 = vshrl.u32 %v6398, 7
    %v6400 = vsub.s32 %v6397, %v6399
    %v6401 = vrot.slane %v6387, %v6400
    %v6402 = vcombine.low %v6394, %v6401
    %v6403 = vcombine.low %v5527, %v5534
    %v6404 = vcombine.low %v5541, %v5548
    %v6406 = vunpack.c.l.s4 1983009808
    %v6407 = vunpack.c.0.s8 %v6406
    %v6408 = vlaneseq
    %v6409 = vshrl.u32 %v6408, 7
    %v6410 = vsub.s32 %v6407, %v6409
    %v6411 = vrot.slane %v6403, %v6410
    %v6413 = vunpack.c.l.s4 1983009808
    %v6414 = vunpack.c.0.s8 %v6413
    %v6415 = vlaneseq
    %v6416 = vshrl.u32 %v6415, 7
    %v6417 = vsub.s32 %v6414, %v6416
    %v6418 = vrot.slane %v6404, %v6417
    %v6419 = vcombine.low %v6411, %v6418
    %v6420 = vcombine.low %v5555, %v5562
    %v6421 = vcombine.low %v5569, %v5576
    %v6423 = vunpack.c.l.s4 1983009808
    %v6424 = vunpack.c.0.s8 %v6423
    %v6425 = vlaneseq
    %v6426 = vshrl.u32 %v6425, 7
    %v6427 = vsub.s32 %v6424, %v6426
    %v6428 = vrot.slane %v6420, %v6427
    %v6430 = vunpack.c.l.s4 1983009808
    %v6431 = vunpack.c.0.s8 %v6430
    %v6432 = vlaneseq
    %v6433 = vshrl.u32 %v6432, 7
    %v6434 = vsub.s32 %v6431, %v6433
    %v6435 = vrot.slane %v6421, %v6434
    %v6436 = vcombine.low %v6428, %v6435
    %v6437 = vcombine.low %v5583, %v5590
    %v6438 = vcombine.low %v5597, %v5604
    %v6440 = vunpack.c.l.s4 1983009808
    %v6441 = vunpack.c.0.s8 %v6440
    %v6442 = vlaneseq
    %v6443 = vshrl.u32 %v6442, 7
    %v6444 = vsub.s32 %v6441, %v6443
    %v6445 = vrot.slane %v6437, %v6444
    %v6447 = vunpack.c.l.s4 1983009808
    %v6448 = vunpack.c.0.s8 %v6447
    %v6449 = vlaneseq
    %v6450 = vshrl.u32 %v6449, 7
    %v6451 = vsub.s32 %v6448, %v6450
    %v6452 = vrot.slane %v6438, %v6451
    %v6453 = vcombine.low %v6445, %v6452
    %v6454 = vcombine.low %v5611, %v5618
    %v6455 = vcombine.low %v5625, %v5632
    %v6457 = vunpack.c.l.s4 1983009808
    %v6458 = vunpack.c.0.s8 %v6457
    %v6459 = vlaneseq
    %v6460 = vshrl.u32 %v6459, 7
    %v6461 = vsub.s32 %v6458, %v6460
    %v6462 = vrot.slane %v6454, %v6461
    %v6464 = vunpack.c.l.s4 1983009808
    %v6465 = vunpack.c.0.s8 %v6464
    %v6466 = vlaneseq
    %v6467 = vshrl.u32 %v6466, 7
    %v6468 = vsub.s32 %v6465, %v6467
    %v6469 = vrot.slane %v6455, %v6468
    %v6470 = vcombine.low %v6462, %v6469
    %v6471 = vcombine.low %v5639, %v5646
    %v6472 = vcombine.low %v5653, %v5660
    %v6474 = vunpack.c.l.s4 1983009808
    %v6475 = vunpack.c.0.s8 %v6474
    %v6476 = vlaneseq
    %v6477 = vshrl.u32 %v6476, 7
    %v6478 = vsub.s32 %v6475, %v6477
    %v6479 = vrot.slane %v6471, %v6478
    %v6481 = vunpack.c.l.s4 1983009808
    %v6482 = vunpack.c.0.s8 %v6481
    %v6483 = vlaneseq
    %v6484 = vshrl.u32 %v6483, 7
    %v6485 = vsub.s32 %v6482, %v6484
    %v6486 = vrot.slane %v6472, %v6485
    %v6487 = vcombine.low %v6479, %v6486
    %v6488 = vcombine.low %v5667, %v5674
    %v6489 = vcombine.low %v5681, %v5688
    %v6491 = vunpack.c.l.s4 1983009808
    %v6492 = vunpack.c.0.s8 %v6491
    %v6493 = vlaneseq
    %v6494 = vshrl.u32 %v6493, 7
    %v6495 = vsub.s32 %v6492, %v6494
    %v6496 = vrot.slane %v6488, %v6495
    %v6498 = vunpack.c.l.s4 1983009808
    %v6499 = vunpack.c.0.s8 %v6498
    %v6500 = vlaneseq
    %v6501 = vshrl.u32 %v6500, 7
    %v6502 = vsub.s32 %v6499, %v6501
    %v6503 = vrot.slane %v6489, %v6502
    %v6504 = vcombine.low %v6496, %v6503
    %6505 = vset.pattern.permute.xlu0 0
    %6506 = vperm.xlu0 %6505, %v5705
    %v6507 = vpop.permute.xlu0 %6506
    %6508 = vset.pattern.permute.xlu0 0
    %6509 = vperm.xlu0 %6508, %v5722
    %v6510 = vpop.permute.xlu0 %6509
    %6511 = vset.pattern.permute.xlu0 0
    %6512 = vperm.xlu0 %6511, %v5739
    %v6513 = vpop.permute.xlu0 %6512
    %6514 = vset.pattern.permute.xlu0 0
    %6515 = vperm.xlu0 %6514, %v5756
    %v6516 = vpop.permute.xlu0 %6515
    %6517 = vset.pattern.permute.xlu0 0
    %6518 = vperm.xlu0 %6517, %v5773
    %v6519 = vpop.permute.xlu0 %6518
    %6520 = vset.pattern.permute.xlu0 0
    %6521 = vperm.xlu0 %6520, %v5790
    %v6522 = vpop.permute.xlu0 %6521
    %6523 = vset.pattern.permute.xlu0 0
    %6524 = vperm.xlu0 %6523, %v5807
    %v6525 = vpop.permute.xlu0 %6524
    %6526 = vset.pattern.permute.xlu0 0
    %6527 = vperm.xlu0 %6526, %v5824
    %v6528 = vpop.permute.xlu0 %6527
    %6529 = vset.pattern.permute.xlu0 0
    %6530 = vperm.xlu0 %6529, %v5841
    %v6531 = vpop.permute.xlu0 %6530
    %6532 = vset.pattern.permute.xlu0 0
    %6533 = vperm.xlu0 %6532, %v5858
    %v6534 = vpop.permute.xlu0 %6533
    %6535 = vset.pattern.permute.xlu0 0
    %6536 = vperm.xlu0 %6535, %v5875
    %v6537 = vpop.permute.xlu0 %6536
    %6538 = vset.pattern.permute.xlu0 0
    %6539 = vperm.xlu0 %6538, %v5892
    %v6540 = vpop.permute.xlu0 %6539
    %6541 = vset.pattern.permute.xlu0 0
    %6542 = vperm.xlu0 %6541, %v5909
    %v6543 = vpop.permute.xlu0 %6542
    %6544 = vset.pattern.permute.xlu0 0
    %6545 = vperm.xlu0 %6544, %v5926
    %v6546 = vpop.permute.xlu0 %6545
    %6547 = vset.pattern.permute.xlu0 0
    %6548 = vperm.xlu0 %6547, %v5943
    %v6549 = vpop.permute.xlu0 %6548
    %6550 = vset.pattern.permute.xlu0 0
    %6551 = vperm.xlu0 %6550, %v5960
    %v6552 = vpop.permute.xlu0 %6551
    %6553 = vset.pattern.permute.xlu0 0
    %6554 = vperm.xlu0 %6553, %v5977
    %v6555 = vpop.permute.xlu0 %6554
    %6556 = vset.pattern.permute.xlu0 0
    %6557 = vperm.xlu0 %6556, %v5994
    %v6558 = vpop.permute.xlu0 %6557
    %6559 = vset.pattern.permute.xlu0 0
    %6560 = vperm.xlu0 %6559, %v6011
    %v6561 = vpop.permute.xlu0 %6560
    %6562 = vset.pattern.permute.xlu0 0
    %6563 = vperm.xlu0 %6562, %v6028
    %v6564 = vpop.permute.xlu0 %6563
    %6565 = vset.pattern.permute.xlu0 0
    %6566 = vperm.xlu0 %6565, %v6045
    %v6567 = vpop.permute.xlu0 %6566
    %6568 = vset.pattern.permute.xlu0 0
    %6569 = vperm.xlu0 %6568, %v6062
    %v6570 = vpop.permute.xlu0 %6569
    %6571 = vset.pattern.permute.xlu0 0
    %6572 = vperm.xlu0 %6571, %v6079
    %v6573 = vpop.permute.xlu0 %6572
    %6574 = vset.pattern.permute.xlu0 0
    %6575 = vperm.xlu0 %6574, %v6096
    %v6576 = vpop.permute.xlu0 %6575
    %6577 = vset.pattern.permute.xlu0 0
    %6578 = vperm.xlu0 %6577, %v6113
    %v6579 = vpop.permute.xlu0 %6578
    %6580 = vset.pattern.permute.xlu0 0
    %6581 = vperm.xlu0 %6580, %v6130
    %v6582 = vpop.permute.xlu0 %6581
    %6583 = vset.pattern.permute.xlu0 0
    %6584 = vperm.xlu0 %6583, %v6147
    %v6585 = vpop.permute.xlu0 %6584
    %6586 = vset.pattern.permute.xlu0 0
    %6587 = vperm.xlu0 %6586, %v6164
    %v6588 = vpop.permute.xlu0 %6587
    %6589 = vset.pattern.permute.xlu0 0
    %6590 = vperm.xlu0 %6589, %v6181
    %v6591 = vpop.permute.xlu0 %6590
    %6592 = vset.pattern.permute.xlu0 0
    %6593 = vperm.xlu0 %6592, %v6198
    %v6594 = vpop.permute.xlu0 %6593
    %6595 = vset.pattern.permute.xlu0 0
    %6596 = vperm.xlu0 %6595, %v6215
    %v6597 = vpop.permute.xlu0 %6596
    %6598 = vset.pattern.permute.xlu0 0
    %6599 = vperm.xlu0 %6598, %v6232
    %v6600 = vpop.permute.xlu0 %6599
    %6601 = vset.pattern.permute.xlu0 0
    %6602 = vperm.xlu0 %6601, %v6249
    %v6603 = vpop.permute.xlu0 %6602
    %6604 = vset.pattern.permute.xlu0 0
    %6605 = vperm.xlu0 %6604, %v6266
    %v6606 = vpop.permute.xlu0 %6605
    %6607 = vset.pattern.permute.xlu0 0
    %6608 = vperm.xlu0 %6607, %v6283
    %v6609 = vpop.permute.xlu0 %6608
    %6610 = vset.pattern.permute.xlu0 0
    %6611 = vperm.xlu0 %6610, %v6300
    %v6612 = vpop.permute.xlu0 %6611
    %6613 = vset.pattern.permute.xlu0 0
    %6614 = vperm.xlu0 %6613, %v6317
    %v6615 = vpop.permute.xlu0 %6614
    %6616 = vset.pattern.permute.xlu0 0
    %6617 = vperm.xlu0 %6616, %v6334
    %v6618 = vpop.permute.xlu0 %6617
    %6619 = vset.pattern.permute.xlu0 0
    %6620 = vperm.xlu0 %6619, %v6351
    %v6621 = vpop.permute.xlu0 %6620
    %6622 = vset.pattern.permute.xlu0 0
    %6623 = vperm.xlu0 %6622, %v6368
    %v6624 = vpop.permute.xlu0 %6623
    %6625 = vset.pattern.permute.xlu0 0
    %6626 = vperm.xlu0 %6625, %v6385
    %v6627 = vpop.permute.xlu0 %6626
    %6628 = vset.pattern.permute.xlu0 0
    %6629 = vperm.xlu0 %6628, %v6402
    %v6630 = vpop.permute.xlu0 %6629
    %6631 = vset.pattern.permute.xlu0 0
    %6632 = vperm.xlu0 %6631, %v6419
    %v6633 = vpop.permute.xlu0 %6632
    %6634 = vset.pattern.permute.xlu0 0
    %6635 = vperm.xlu0 %6634, %v6436
    %v6636 = vpop.permute.xlu0 %6635
    %6637 = vset.pattern.permute.xlu0 0
    %6638 = vperm.xlu0 %6637, %v6453
    %v6639 = vpop.permute.xlu0 %6638
    %6640 = vset.pattern.permute.xlu0 0
    %6641 = vperm.xlu0 %6640, %v6470
    %v6642 = vpop.permute.xlu0 %6641
    %6643 = vset.pattern.permute.xlu0 0
    %6644 = vperm.xlu0 %6643, %v6487
    %v6645 = vpop.permute.xlu0 %6644
    %6646 = vset.pattern.permute.xlu0 0
    %6647 = vperm.xlu0 %6646, %v6504
    %v6648 = vpop.permute.xlu0 %6647
    %v6649 = vlaneseq
    %v6650 = vshrl.u32 %v6649, 7
    %v6651 = vsub.s32 %v3223, %v6650
    %v6652 = vrot.slane %v6507, %v6651
    %v6653 = vlaneseq
    %v6654 = vshrl.u32 %v6653, 7
    %v6655 = vsub.s32 %v3228, %v6654
    %v6656 = vrot.slane %v6510, %v6655
    %v6657 = vsel %vm3233, %v6656, %v6652
    %v6658 = vlaneseq
    %v6659 = vshrl.u32 %v6658, 7
    %v6660 = vsub.s32 %v3235, %v6659
    %v6661 = vrot.slane %v6513, %v6660
    %v6662 = vsel %vm3240, %v6661, %v6657
    %v6663 = vlaneseq
    %v6664 = vshrl.u32 %v6663, 7
    %v6665 = vsub.s32 %v3242, %v6664
    %v6666 = vrot.slane %v6516, %v6665
    %v6667 = vsel %vm3247, %v6666, %v6662
    %v6668 = vlaneseq
    %v6669 = vshrl.u32 %v6668, 7
    %v6670 = vsub.s32 %v3249, %v6669
    %v6671 = vrot.slane %v6519, %v6670
    %v6672 = vsel %vm3254, %v6671, %v6667
    %v6673 = vlaneseq
    %v6674 = vshrl.u32 %v6673, 7
    %v6675 = vsub.s32 %v3256, %v6674
    %v6676 = vrot.slane %v6522, %v6675
    %v6677 = vsel %vm3261, %v6676, %v6672
    %v6678 = vlaneseq
    %v6679 = vshrl.u32 %v6678, 7
    %v6680 = vsub.s32 %v3263, %v6679
    %v6681 = vrot.slane %v6525, %v6680
    %v6682 = vsel %vm3268, %v6681, %v6677
    %v6683 = vlaneseq
    %v6684 = vshrl.u32 %v6683, 7
    %v6685 = vsub.s32 %v3270, %v6684
    %v6686 = vrot.slane %v6528, %v6685
    %v6687 = vsel %vm3275, %v6686, %v6682
    %v6688 = vlaneseq
    %v6689 = vshrl.u32 %v6688, 7
    %v6690 = vsub.s32 %v3277, %v6689
    %v6691 = vrot.slane %v6531, %v6690
    %v6692 = vsel %vm3282, %v6691, %v6687
    %v6693 = vlaneseq
    %v6694 = vshrl.u32 %v6693, 7
    %v6695 = vsub.s32 %v3284, %v6694
    %v6696 = vrot.slane %v6534, %v6695
    %v6697 = vsel %vm3289, %v6696, %v6692
    %v6698 = vlaneseq
    %v6699 = vshrl.u32 %v6698, 7
    %v6700 = vsub.s32 %v3291, %v6699
    %v6701 = vrot.slane %v6537, %v6700
    %v6702 = vsel %vm3296, %v6701, %v6697
    %v6703 = vlaneseq
    %v6704 = vshrl.u32 %v6703, 7
    %v6705 = vsub.s32 %v3298, %v6704
    %v6706 = vrot.slane %v6540, %v6705
    %v6707 = vsel %vm3303, %v6706, %v6702
    %v6708 = vlaneseq
    %v6709 = vshrl.u32 %v6708, 7
    %v6710 = vsub.s32 %v3305, %v6709
    %v6711 = vrot.slane %v6543, %v6710
    %v6712 = vsel %vm3310, %v6711, %v6707
    %v6713 = vlaneseq
    %v6714 = vshrl.u32 %v6713, 7
    %v6715 = vsub.s32 %v3312, %v6714
    %v6716 = vrot.slane %v6546, %v6715
    %v6717 = vsel %vm3317, %v6716, %v6712
    %v6718 = vlaneseq
    %v6719 = vshrl.u32 %v6718, 7
    %v6720 = vsub.s32 %v3319, %v6719
    %v6721 = vrot.slane %v6549, %v6720
    %v6722 = vsel %vm3324, %v6721, %v6717
    %v6723 = vlaneseq
    %v6724 = vshrl.u32 %v6723, 7
    %v6725 = vsub.s32 %v3326, %v6724
    %v6726 = vrot.slane %v6552, %v6725
    %v6727 = vsel %vm3331, %v6726, %v6722
    %v6728 = vlaneseq
    %v6729 = vshrl.u32 %v6728, 7
    %v6730 = vsub.s32 %v3223, %v6729
    %v6731 = vrot.slane %v6555, %v6730
    %v6732 = vlaneseq
    %v6733 = vshrl.u32 %v6732, 7
    %v6734 = vsub.s32 %v3228, %v6733
    %v6735 = vrot.slane %v6558, %v6734
    %v6736 = vsel %vm3233, %v6735, %v6731
    %v6737 = vlaneseq
    %v6738 = vshrl.u32 %v6737, 7
    %v6739 = vsub.s32 %v3235, %v6738
    %v6740 = vrot.slane %v6561, %v6739
    %v6741 = vsel %vm3240, %v6740, %v6736
    %v6742 = vlaneseq
    %v6743 = vshrl.u32 %v6742, 7
    %v6744 = vsub.s32 %v3242, %v6743
    %v6745 = vrot.slane %v6564, %v6744
    %v6746 = vsel %vm3247, %v6745, %v6741
    %v6747 = vlaneseq
    %v6748 = vshrl.u32 %v6747, 7
    %v6749 = vsub.s32 %v3249, %v6748
    %v6750 = vrot.slane %v6567, %v6749
    %v6751 = vsel %vm3254, %v6750, %v6746
    %v6752 = vlaneseq
    %v6753 = vshrl.u32 %v6752, 7
    %v6754 = vsub.s32 %v3256, %v6753
    %v6755 = vrot.slane %v6570, %v6754
    %v6756 = vsel %vm3261, %v6755, %v6751
    %v6757 = vlaneseq
    %v6758 = vshrl.u32 %v6757, 7
    %v6759 = vsub.s32 %v3263, %v6758
    %v6760 = vrot.slane %v6573, %v6759
    %v6761 = vsel %vm3268, %v6760, %v6756
    %v6762 = vlaneseq
    %v6763 = vshrl.u32 %v6762, 7
    %v6764 = vsub.s32 %v3270, %v6763
    %v6765 = vrot.slane %v6576, %v6764
    %v6766 = vsel %vm3275, %v6765, %v6761
    %v6767 = vlaneseq
    %v6768 = vshrl.u32 %v6767, 7
    %v6769 = vsub.s32 %v3223, %v6768
    %v6770 = vrot.slane %v6579, %v6769
    %v6771 = vlaneseq
    %v6772 = vshrl.u32 %v6771, 7
    %v6773 = vsub.s32 %v3228, %v6772
    %v6774 = vrot.slane %v6582, %v6773
    %v6775 = vsel %vm3233, %v6774, %v6770
    %v6776 = vlaneseq
    %v6777 = vshrl.u32 %v6776, 7
    %v6778 = vsub.s32 %v3235, %v6777
    %v6779 = vrot.slane %v6585, %v6778
    %v6780 = vsel %vm3240, %v6779, %v6775
    %v6781 = vlaneseq
    %v6782 = vshrl.u32 %v6781, 7
    %v6783 = vsub.s32 %v3242, %v6782
    %v6784 = vrot.slane %v6588, %v6783
    %v6785 = vsel %vm3247, %v6784, %v6780
    %v6786 = vlaneseq
    %v6787 = vshrl.u32 %v6786, 7
    %v6788 = vsub.s32 %v3249, %v6787
    %v6789 = vrot.slane %v6591, %v6788
    %v6790 = vsel %vm3254, %v6789, %v6785
    %v6791 = vlaneseq
    %v6792 = vshrl.u32 %v6791, 7
    %v6793 = vsub.s32 %v3256, %v6792
    %v6794 = vrot.slane %v6594, %v6793
    %v6795 = vsel %vm3261, %v6794, %v6790
    %v6796 = vlaneseq
    %v6797 = vshrl.u32 %v6796, 7
    %v6798 = vsub.s32 %v3263, %v6797
    %v6799 = vrot.slane %v6597, %v6798
    %v6800 = vsel %vm3268, %v6799, %v6795
    %v6801 = vlaneseq
    %v6802 = vshrl.u32 %v6801, 7
    %v6803 = vsub.s32 %v3270, %v6802
    %v6804 = vrot.slane %v6600, %v6803
    %v6805 = vsel %vm3275, %v6804, %v6800
    %v6806 = vlaneseq
    %v6807 = vshrl.u32 %v6806, 7
    %v6808 = vsub.s32 %v3277, %v6807
    %v6809 = vrot.slane %v6603, %v6808
    %v6810 = vsel %vm3282, %v6809, %v6805
    %v6811 = vlaneseq
    %v6812 = vshrl.u32 %v6811, 7
    %v6813 = vsub.s32 %v3284, %v6812
    %v6814 = vrot.slane %v6606, %v6813
    %v6815 = vsel %vm3289, %v6814, %v6810
    %v6816 = vlaneseq
    %v6817 = vshrl.u32 %v6816, 7
    %v6818 = vsub.s32 %v3291, %v6817
    %v6819 = vrot.slane %v6609, %v6818
    %v6820 = vsel %vm3296, %v6819, %v6815
    %v6821 = vlaneseq
    %v6822 = vshrl.u32 %v6821, 7
    %v6823 = vsub.s32 %v3298, %v6822
    %v6824 = vrot.slane %v6612, %v6823
    %v6825 = vsel %vm3303, %v6824, %v6820
    %v6826 = vlaneseq
    %v6827 = vshrl.u32 %v6826, 7
    %v6828 = vsub.s32 %v3305, %v6827
    %v6829 = vrot.slane %v6615, %v6828
    %v6830 = vsel %vm3310, %v6829, %v6825
    %v6831 = vlaneseq
    %v6832 = vshrl.u32 %v6831, 7
    %v6833 = vsub.s32 %v3312, %v6832
    %v6834 = vrot.slane %v6618, %v6833
    %v6835 = vsel %vm3317, %v6834, %v6830
    %v6836 = vlaneseq
    %v6837 = vshrl.u32 %v6836, 7
    %v6838 = vsub.s32 %v3319, %v6837
    %v6839 = vrot.slane %v6621, %v6838
    %v6840 = vsel %vm3324, %v6839, %v6835
    %v6841 = vlaneseq
    %v6842 = vshrl.u32 %v6841, 7
    %v6843 = vsub.s32 %v3326, %v6842
    %v6844 = vrot.slane %v6624, %v6843
    %v6845 = vsel %vm3331, %v6844, %v6840
    %v6846 = vlaneseq
    %v6847 = vshrl.u32 %v6846, 7
    %v6848 = vsub.s32 %v3223, %v6847
    %v6849 = vrot.slane %v6627, %v6848
    %v6850 = vlaneseq
    %v6851 = vshrl.u32 %v6850, 7
    %v6852 = vsub.s32 %v3228, %v6851
    %v6853 = vrot.slane %v6630, %v6852
    %v6854 = vsel %vm3233, %v6853, %v6849
    %v6855 = vlaneseq
    %v6856 = vshrl.u32 %v6855, 7
    %v6857 = vsub.s32 %v3235, %v6856
    %v6858 = vrot.slane %v6633, %v6857
    %v6859 = vsel %vm3240, %v6858, %v6854
    %v6860 = vlaneseq
    %v6861 = vshrl.u32 %v6860, 7
    %v6862 = vsub.s32 %v3242, %v6861
    %v6863 = vrot.slane %v6636, %v6862
    %v6864 = vsel %vm3247, %v6863, %v6859
    %v6865 = vlaneseq
    %v6866 = vshrl.u32 %v6865, 7
    %v6867 = vsub.s32 %v3249, %v6866
    %v6868 = vrot.slane %v6639, %v6867
    %v6869 = vsel %vm3254, %v6868, %v6864
    %v6870 = vlaneseq
    %v6871 = vshrl.u32 %v6870, 7
    %v6872 = vsub.s32 %v3256, %v6871
    %v6873 = vrot.slane %v6642, %v6872
    %v6874 = vsel %vm3261, %v6873, %v6869
    %v6875 = vlaneseq
    %v6876 = vshrl.u32 %v6875, 7
    %v6877 = vsub.s32 %v3263, %v6876
    %v6878 = vrot.slane %v6645, %v6877
    %v6879 = vsel %vm3268, %v6878, %v6874
    %v6880 = vlaneseq
    %v6881 = vshrl.u32 %v6880, 7
    %v6882 = vsub.s32 %v3270, %v6881
    %v6883 = vrot.slane %v6648, %v6882
    %v6884 = vsel %vm3275, %v6883, %v6879
    %v6885 = vsel %vm3490, %v6845, %v6727
    %v6886 = vsel %vm3490, %v6884, %v6766
    %v6887 = vcombine.low %v6885, %v6886
    %v6889 = vunpack.c.l.s4 1983009808
    %v6890 = vunpack.c.0.s8 %v6889
    %v6891 = vlaneseq
    %v6892 = vshrl.u32 %v6891, 7
    %v6893 = vsub.s32 %v6890, %v6892
    %v6894 = vrot.slane %v6887, %v6893
    %v6896 = vadd.f32 %v3505, %v6894
    %v6897 = vlog2.pop %v6896
    %v6898 = vmul.f32 %v6897, 0.6931472
    %v6899 = vadd.f32 %v3502, %v6898
    %v6900 = vsub.f32 %v6899, %v89
    %vm6901 = vcmask 1041408
    %vm6902 = vcmask 519170
    %vm6903 = vmor %vm6902, %vm6901
    %6904 = vst.msk [vmem:[#allocation5] sm:$0xf] %vm6903, %v6900
    // Predicated region
    $region22: #{tpu_custom_call.1} parent=1 // pred_check
      _
    $region23: #{tpu_custom_call.1} parent=1 // pred_check_branch
      %6906 = sbr.rel (0) target = $region25
    $region24: #{tpu_custom_call.1} parent=1 // pred_region
      %s6908 = ssub.s32 64, 64
      %6909 = vsyncadd [#allocation4], %s6908
      %s6911 = sshll.u32 [#allocation5], 4
      %s6912 = int_to_ptr.vmem [resolvable:$true] %s6911
      %6914 = dma.vmem_to_hbm [thread:$0]  %s6912, 64, %s4, [#allocation4]
    $region25: #{tpu_custom_call.1} parent=1 // pred_fallthru
      _
    // Predicated region
    $region26: #{tpu_custom_call.1} parent=1 // pred_check
      _
    $region27: #{tpu_custom_call.1} parent=1 // pred_check_branch
      %6916 = sbr.rel (0) target = $region29
    $region28: #{tpu_custom_call.1} parent=1 // pred_region
      %6917 = dma.done [#allocation4], 64
    $region29: #{tpu_custom_call.1} parent=1 // pred_fallthru
      _
    %6918 = vsyncpa [#allocation3], 1
    %6919 = vsyncpa [#allocation4], 1

</llo_original>
